<compile_context>
chip_gen: v5e
topology: v5e:2x2
jax: 0.10.0
libtpu: 0.0.40
codegen_flags: <defaults>
</compile_context>

<pallas_src>
import functools

import jax
import jax.numpy as jnp
import numpy as np
from jax.experimental import pallas as pl
from jax.experimental.pallas import tpu as pltpu


def _sigmoid(x):
    # sigmoid via tanh: one EUP transcendental instead of exp + divide.
    return 0.5 * jnp.tanh(0.5 * x) + 0.5


# -----------------------------------------------------------------------------
# Pallas kernel: one bidirectional LSTM layer.
# Grid = (batch_blocks [parallel], time_chunks [arbitrary]); h/c carried in scratch.
# -----------------------------------------------------------------------------
def _bilstm_layer_kernel(len_ref, gxf_ref, gxb_ref, whf_ref, whb_ref,
                         yf_ref, yb_ref, hf_s, hb_s, cf_s, cb_s,
                         *, hidden_size, time_block, seq_len):
    H = hidden_size
    tt = time_block
    T = seq_len
    k = pl.program_id(1)

    # New batch block starts: reset the recurrent state carries.
    @pl.when(k == 0)
    def _():
        hf_s[...] = jnp.zeros_like(hf_s)
        hb_s[...] = jnp.zeros_like(hb_s)
        cf_s[...] = jnp.zeros_like(cf_s)
        cb_s[...] = jnp.zeros_like(cb_s)

    L = len_ref[...]                      # (bb, 1) int32 per-example lengths
    w_hh_f = whf_ref[...]                 # (H, 4H) per-direction recurrent weights
    w_hh_b = whb_ref[...]
    t0 = k * tt                           # global forward time of this chunk's first step

    def step(s, carry):
        h_f, h_b, c_f, c_b = carry        # h in matmul dtype, c in f32
        t_f = t0 + s                      # global forward time
        t_b = T - 1 - t_f                 # global backward time

        # One (bb,H)x(H,4H) MXU push per direction (no block-diagonal zero padding).
        rec_f = jnp.dot(h_f, w_hh_f, preferred_element_type=jnp.float32)
        rec_b = jnp.dot(h_b, w_hh_b, preferred_element_type=jnp.float32)

        # Precomputed input gates: forward chunk walks ascending (local s), backward chunk
        # walks descending (local tt-1-s).  Half-width loads, no lane select.
        g_f = gxf_ref[s].astype(jnp.float32) + rec_f            # (bb, 4H)
        g_b = gxb_ref[tt - 1 - s].astype(jnp.float32) + rec_b   # (bb, 4H)

        def cell(gates, c):
            i = _sigmoid(gates[:, 0 * H:1 * H])
            f = _sigmoid(gates[:, 1 * H:2 * H])
            g = jnp.tanh(gates[:, 2 * H:3 * H])
            o = _sigmoid(gates[:, 3 * H:4 * H])
            c_new = f * c + i * g
            h_new = o * jnp.tanh(c_new)
            return h_new, c_new

        hf_new, cf_new = cell(g_f, c_f)
        hb_new, cb_new = cell(g_b, c_b)

        # Validity gating: forward valid for t_f < L, backward for t_b < L.
        vf = t_f < L                       # (bb, 1)
        vb = t_b < L

        hf_lo = hf_new.astype(hf_s.dtype)  # cast once; keeps the serial chain in matmul dtype
        hb_lo = hb_new.astype(hb_s.dtype)

        c_f = jnp.where(vf, cf_new, c_f)
        c_b = jnp.where(vb, cb_new, c_b)
        h_f = jnp.where(vf, hf_lo, h_f)
        h_b = jnp.where(vb, hb_lo, h_b)

        # Outputs are zero at padded positions (pad_packed_sequence semantics).
        yf_ref[s] = jnp.where(vf, hf_lo, jnp.zeros_like(hf_lo)).astype(yf_ref.dtype)
        yb_ref[tt - 1 - s] = jnp.where(vb, hb_lo, jnp.zeros_like(hb_lo)).astype(yb_ref.dtype)
        return h_f, h_b, c_f, c_b

    carry0 = (hf_s[...], hb_s[...], cf_s[...], cb_s[...])
    unroll = True if tt <= 32 else 2       # partial unroll: overlap loads/stores with MXU/EUP chain
    h_f, h_b, c_f, c_b = jax.lax.fori_loop(0, tt, step, carry0, unroll=unroll)

    hf_s[...] = h_f
    hb_s[...] = h_b
    cf_s[...] = c_f
    cb_s[...] = c_b


# -----------------------------------------------------------------------------
# Block-size selection and VMEM accounting.
# -----------------------------------------------------------------------------
def _choose_batch_block(B):
    """Largest multiple-of-8 divisor of B up to 256, preferring >= 2 grid steps (v7x TCs)."""
    cands = [d for d in range(8, min(B, 256) + 1, 8) if B % d == 0]
    if not cands:
        return B                                  # block == full batch dim is always legal
    two_plus = [d for d in cands if B // d >= 2]
    return max(two_plus) if two_plus else max(cands)


def _vmem_bytes(tt, bb, H, slab_bytes, w_bytes):
    gx = 2 * 2 * tt * bb * 4 * H * slab_bytes     # two gx streams, double-buffered
    y = 2 * 2 * tt * bb * H * slab_bytes          # two output streams, double-buffered
    w = 2 * 2 * H * 4 * H * w_bytes               # two recurrent weights, double-buffered
    scr = 4 * bb * H * 4                          # h/c carries
    ln = 2 * bb * 4                               # lengths
    return gx + y + w + scr + ln


def _choose_time_block(T, bb, H, slab_bytes, w_bytes, budget):
    best = 1
    for d in range(1, T + 1):
        if T % d == 0 and _vmem_bytes(d, bb, H, slab_bytes, w_bytes) <= budget:
            best = d
    return best


# -----------------------------------------------------------------------------
# One bidirectional LSTM layer recurrence: pallas_call wrapper.
# -----------------------------------------------------------------------------
def _bilstm_recurrence(gx_f, gx_b, lengths2d, w_hh_f, w_hh_b, *, hidden_size,
                       batch_block=None, time_block=None,
                       vmem_budget_bytes=24 * 1024 * 1024):
    """gx_{f,b}: (T, B, 4H) precomputed input gates; returns (y_fwd, y_bwd), each (T, B, H)."""
    T, B, G = gx_f.shape
    H = hidden_size
    assert G == 4 * H

    bb = _choose_batch_block(B) if batch_block is None else batch_block
    assert B % bb == 0, "batch_block must divide batch"
    assert bb % 8 == 0 or bb == B, "batch_block must be a multiple of 8 (or the full batch)"
    nb = B // bb

    slab_bytes = np.dtype(gx_f.dtype).itemsize
    w_bytes = np.dtype(w_hh_f.dtype).itemsize
    tt = (_choose_time_block(T, bb, H, slab_bytes, w_bytes, vmem_budget_bytes)
          if time_block is None else time_block)
    assert T % tt == 0, "time_block must divide seq_len"
    nt = T // tt

    # Derive the VMEM limit from the actual block footprint; cap at 48 MiB (v7x headroom).
    est = _vmem_bytes(tt, bb, H, slab_bytes, w_bytes)
    vmem_limit = int(min(max(int(est * 1.5), 32 * 1024 * 1024), 48 * 1024 * 1024))

    kernel = functools.partial(_bilstm_layer_kernel,
                               hidden_size=H, time_block=tt, seq_len=T)
    out_dtype = gx_f.dtype
    return pl.pallas_call(
        kernel,
        out_shape=(jax.ShapeDtypeStruct((T, B, H), out_dtype),
                   jax.ShapeDtypeStruct((T, B, H), out_dtype)),
        grid_spec=pltpu.PrefetchScalarGridSpec(
            num_scalar_prefetch=0,
            grid=(nb, nt),                                          # batch shards, then time chunks
            in_specs=[
                pl.BlockSpec((bb, 1), lambda b, k: (b, 0)),                  # lengths
                pl.BlockSpec((tt, bb, 4 * H), lambda b, k: (k, b, 0)),       # fwd gates: chunk k
                pl.BlockSpec((tt, bb, 4 * H), lambda b, k: (nt - 1 - k, b, 0)),  # bwd gates: chunk nt-1-k
                pl.BlockSpec((H, 4 * H), lambda b, k: (0, 0)),               # W_hh forward
                pl.BlockSpec((H, 4 * H), lambda b, k: (0, 0)),               # W_hh backward
            ],
            out_specs=[
                pl.BlockSpec((tt, bb, H), lambda b, k: (k, b, 0)),           # forward outputs
                pl.BlockSpec((tt, bb, H), lambda b, k: (nt - 1 - k, b, 0)),  # backward outputs
            ],
            scratch_shapes=[
                pltpu.VMEM((bb, H), w_hh_f.dtype),   # h_f carry (matmul dtype: no per-step cast)
                pltpu.VMEM((bb, H), w_hh_f.dtype),   # h_b carry
                pltpu.VMEM((bb, H), jnp.float32),    # c_f carry
                pltpu.VMEM((bb, H), jnp.float32),    # c_b carry
            ],
        ),
        compiler_params=pltpu.CompilerParams(
            dimension_semantics=("parallel", "arbitrary"),   # batch across TCs; time sequential
            vmem_limit_bytes=vmem_limit,
        ),
    )(lengths2d, gx_f, gx_b, w_hh_f, w_hh_b)


# -----------------------------------------------------------------------------
# Hoisted input projection: x @ W_ih + b for both directions / all timesteps.
# -----------------------------------------------------------------------------
def _input_projection(h_parts, w_ih_cat, b_cat, matmul_dtype, slab_dtype):
    row, acc = 0, None
    for part in h_parts:                      # avoids materializing concat([y_f, y_b])
        d = part.shape[-1]
        w_part = w_ih_cat[row:row + d].astype(matmul_dtype)
        contrib = jnp.dot(part.astype(matmul_dtype), w_part,
                          preferred_element_type=jnp.float32)        # (T, B, 8H)
        acc = contrib if acc is None else acc + contrib
        row += d
    gx = acc + b_cat[None, None, :]
    G = gx.shape[-1] // 2
    # Split into per-direction slabs stored in the (narrow) slab dtype.
    return gx[..., :G].astype(slab_dtype), gx[..., G:].astype(slab_dtype)


# -----------------------------------------------------------------------------
# RNNEncoder forward (eval mode): bidirectional, multi-layer.
# -----------------------------------------------------------------------------
def rnn_encoder_forward(x, lengths, packed_params, *, matmul_dtype=jnp.bfloat16,
                        batch_block=None, time_block=None):
    """x: (B, T, input_size) f32; lengths: (B,) int. Returns (B, T, 2*hidden_size) f32."""
    B, T, _ = x.shape
    lengths2d = lengths.reshape(B, 1).astype(jnp.int32)
    slab_dtype = matmul_dtype                  # bf16 slabs halve HBM traffic / VMEM footprint
    h_parts = [jnp.transpose(x, (1, 0, 2))]    # time-major once for the whole stack
    for (w_ih_cat, b_cat, w_hh_f, w_hh_b) in packed_params:
        H = w_hh_f.shape[0]
        gx_f, gx_b = _input_projection(h_parts, w_ih_cat, b_cat, matmul_dtype, slab_dtype)
        y_f, y_b = _bilstm_recurrence(gx_f, gx_b, lengths2d,
                                      w_hh_f.astype(matmul_dtype),
                                      w_hh_b.astype(matmul_dtype),
                                      hidden_size=H, batch_block=batch_block,
                                      time_block=time_block)
        h_parts = [y_f, y_b]
        # inter-layer dropout: identity in eval mode.
    out_tm = jnp.concatenate(h_parts, axis=-1).astype(jnp.float32)   # (T, B, 2H), [fwd | bwd]
    # final F.dropout: identity in eval mode.
    return jnp.transpose(out_tm, (1, 0, 2))                          # batch-first (B, T, 2H)


# -----------------------------------------------------------------------------
# Parameter init (PyTorch nn.LSTM layout) + packing into the kernel layout.
# -----------------------------------------------------------------------------
def init_torch_params(key, input_size, hidden_size, num_layers):
    """PyTorch layout: per layer, per direction: W_ih (4H, D_in), W_hh (4H, H), b = b_ih + b_hh."""
    k = 1.0 / np.sqrt(hidden_size)
    params = []
    for layer in range(num_layers):
        d_in = input_size if layer == 0 else 2 * hidden_size
        dirs = []
        for _ in range(2):  # forward, backward
            key, k1, k2, k3, k4 = jax.random.split(key, 5)
            w_ih = jax.random.uniform(k1, (4 * hidden_size, d_in), jnp.float32, -k, k)
            w_hh = jax.random.uniform(k2, (4 * hidden_size, hidden_size), jnp.float32, -k, k)
            b_ih = jax.random.uniform(k3, (4 * hidden_size,), jnp.float32, -k, k)
            b_hh = jax.random.uniform(k4, (4 * hidden_size,), jnp.float32, -k, k)
            dirs.append((w_ih, w_hh, b_ih + b_hh))
        params.append(tuple(dirs))
    return params


def pack_params(torch_params, hidden_size):
    """De-interleaved layout: columns [i f g o]_fwd | [i f g o]_bwd (PyTorch order, transposed)."""
    del hidden_size
    packed = []
    for (w_ih_f, w_hh_f, b_f), (w_ih_b, w_hh_b, b_b) in torch_params:
        w_ih_cat = jnp.concatenate([w_ih_f.T, w_ih_b.T], axis=1)     # (D_in, 8H)
        b_cat = jnp.concatenate([b_f, b_b])                          # (8H,)
        packed.append((w_ih_cat, b_cat, w_hh_f.T, w_hh_b.T))         # W_hh: (H, 4H) each
    return packed


# -----------------------------------------------------------------------------
# Pure-JAX reference (spec-level: per-direction scan + reverse-within-length).
# -----------------------------------------------------------------------------
def _ref_direction(x, lengths, w_ih, w_hh, b, matmul_dtype):
    B, T, _ = x.shape
    H = w_hh.shape[1]
    w_ih_t = w_ih.T.astype(matmul_dtype)
    w_hh_t = w_hh.T.astype(matmul_dtype)

    def step(carry, inp):
        h, c = carry
        xt, t = inp
        gates = (jnp.dot(xt.astype(matmul_dtype), w_ih_t, preferred_element_type=jnp.float32)
                 + jnp.dot(h.astype(matmul_dtype), w_hh_t, preferred_element_type=jnp.float32)
                 + b)
        i = _sigmoid(gates[:, :H])
        f = _sigmoid(gates[:, H:2 * H])
        g = jnp.tanh(gates[:, 2 * H:3 * H])
        o = _sigmoid(gates[:, 3 * H:])
        c = f * c + i * g
        h = o * jnp.tanh(c)
        y = jnp.where((t < lengths)[:, None], h, 0.0)
        return (h, c), y

    xs = (jnp.transpose(x, (1, 0, 2)), jnp.arange(T, dtype=jnp.int32))
    init = (jnp.zeros((B, H), jnp.float32), jnp.zeros((B, H), jnp.float32))
    (_, _), ys = jax.lax.scan(step, init, xs)
    return jnp.transpose(ys, (1, 0, 2))


def _ref_encoder(x, lengths, torch_params, matmul_dtype):
    B, T, _ = x.shape
    t_ar = jnp.arange(T, dtype=jnp.int32)[None, :]
    L = lengths.astype(jnp.int32)[:, None]
    rev_idx = jnp.where(t_ar < L, L - 1 - t_ar, t_ar)
    h_in = x
    for (w_ih_f, w_hh_f, b_f), (w_ih_b, w_hh_b, b_b) in torch_params:
        y_f = _ref_direction(h_in, lengths, w_ih_f, w_hh_f, b_f, matmul_dtype)
        x_rev = jnp.take_along_axis(h_in, rev_idx[:, :, None], axis=1)
        y_b = _ref_direction(x_rev, lengths, w_ih_b, w_hh_b, b_b, matmul_dtype)
        y_b = jnp.take_along_axis(y_b, rev_idx[:, :, None], axis=1)
        h_in = jnp.concatenate([y_f, y_b], axis=-1)
    return h_in


if __name__ == "__main__":
    B, T, input_size, hidden_size, num_layers = 16, 12, 16, 32, 2

    key = jax.random.PRNGKey(0)
    key, kx = jax.random.split(key)
    x = jax.random.normal(kx, (B, T, input_size), jnp.float32)
    lengths = jnp.array([12, 11, 10, 9, 8, 7, 6, 5, 4, 3, 2, 1, 12, 6, 3, 1], dtype=jnp.int32)

    torch_params = init_torch_params(key, input_size, hidden_size, num_layers)
    packed = pack_params(torch_params, hidden_size)

    # bf16 slabs + matmuls (recommended for v6e/v7x); elementwise gate math stays f32.
    fwd_bf16 = jax.jit(functools.partial(rnn_encoder_forward, matmul_dtype=jnp.bfloat16))
    out16 = jax.block_until_ready(fwd_bf16(x, lengths, packed))
    assert out16.shape == (B, T, 2 * hidden_size)
    ref16 = jax.block_until_ready(_ref_encoder(x, lengths, torch_params, jnp.bfloat16))
    np.testing.assert_allclose(np.asarray(out16), np.asarray(ref16), rtol=2e-2, atol=2e-2)

    # f32 path (keeps an exact-precision recurrent-weight option).
    fwd_f32 = jax.jit(functools.partial(rnn_encoder_forward, matmul_dtype=jnp.float32))
    out32 = jax.block_until_ready(fwd_f32(x, lengths, packed))
    ref32 = jax.block_until_ready(_ref_encoder(x, lengths, torch_params, jnp.float32))
    np.testing.assert_allclose(np.asarray(out32), np.asarray(ref32), rtol=1e-3, atol=1e-3)

    print("KERNEL_OK")
</pallas_src>

<mosaic_0001>
module attributes {stable_mosaic.version = 11 : i64} {
  func.func @_bilstm_layer_kernel(%arg0: i32, %arg1: i32, %arg2: memref<8x1xi32, #tpu.memory_space<vmem>>, %arg3: memref<12x8x128xbf16, #tpu.memory_space<vmem>>, %arg4: memref<12x8x128xbf16, #tpu.memory_space<vmem>>, %arg5: memref<32x128xbf16, #tpu.memory_space<vmem>>, %arg6: memref<32x128xbf16, #tpu.memory_space<vmem>>, %arg7: memref<12x8x32xbf16, #tpu.memory_space<vmem>>, %arg8: memref<12x8x32xbf16, #tpu.memory_space<vmem>>, %arg9: memref<8x32xbf16, #tpu.memory_space<vmem>>, %arg10: memref<8x32xbf16, #tpu.memory_space<vmem>>, %arg11: memref<8x32xf32, #tpu.memory_space<vmem>>, %arg12: memref<8x32xf32, #tpu.memory_space<vmem>>) attributes {dimension_semantics = [#tpu.dimension_semantics<parallel>, #tpu.dimension_semantics<arbitrary>], iteration_bounds = array<i64: 2, 1>, scalar_prefetch = 0 : i64, scratch_operands = 4 : i64, tpu.core_type = #tpu.core_type<tc>, window_params = [{transform_indices = @transform_0, window_bounds = array<i64: 8, 1>}, {transform_indices = @transform_1, window_bounds = array<i64: 12, 8, 128>}, {transform_indices = @transform_2, window_bounds = array<i64: 12, 8, 128>}, {pipeline_mode = #tpu.pipeline_mode<synchronous>, transform_indices = @transform_3, window_bounds = array<i64: 32, 128>}, {pipeline_mode = #tpu.pipeline_mode<synchronous>, transform_indices = @transform_4, window_bounds = array<i64: 32, 128>}, {transform_indices = @transform_5, window_bounds = array<i64: 12, 8, 32>}, {transform_indices = @transform_6, window_bounds = array<i64: 12, 8, 32>}]} {
    %c0_i32 = arith.constant 0 : i32
    %0 = arith.cmpi eq, %arg1, %c0_i32 : i32
    %1 = arith.extui %0 : i1 to i32
    %c0_i32_0 = arith.constant 0 : i32
    %2 = arith.cmpi ne, %1, %c0_i32_0 : i32
    scf.if %2 {
      %cst_419 = arith.constant 0.000000e+00 : bf16
      %1359 = vector.broadcast %cst_419 : bf16 to vector<8x32xbf16>
      %c0_420 = arith.constant 0 : index
      %c0_421 = arith.constant 0 : index
      %1360 = vector.load %arg9[%c0_420, %c0_421] : memref<8x32xbf16, #tpu.memory_space<vmem>>, vector<8x32xbf16>
      tpu.vector_store %arg9[%c0_420, %c0_421], %1359 {strides = array<i32>} : memref<8x32xbf16, #tpu.memory_space<vmem>>, vector<8x32xbf16>,
      %cst_422 = arith.constant 0.000000e+00 : bf16
      %1361 = vector.broadcast %cst_422 : bf16 to vector<8x32xbf16>
      %c0_423 = arith.constant 0 : index
      %c0_424 = arith.constant 0 : index
      %1362 = vector.load %arg10[%c0_423, %c0_424] : memref<8x32xbf16, #tpu.memory_space<vmem>>, vector<8x32xbf16>
      tpu.vector_store %arg10[%c0_423, %c0_424], %1361 {strides = array<i32>} : memref<8x32xbf16, #tpu.memory_space<vmem>>, vector<8x32xbf16>,
      %cst_425 = arith.constant 0.000000e+00 : f32
      %1363 = vector.broadcast %cst_425 : f32 to vector<8x32xf32>
      %c0_426 = arith.constant 0 : index
      %c0_427 = arith.constant 0 : index
      %1364 = vector.load %arg11[%c0_426, %c0_427] : memref<8x32xf32, #tpu.memory_space<vmem>>, vector<8x32xf32>
      tpu.vector_store %arg11[%c0_426, %c0_427], %1363 {strides = array<i32>} : memref<8x32xf32, #tpu.memory_space<vmem>>, vector<8x32xf32>,
      %cst_428 = arith.constant 0.000000e+00 : f32
      %1365 = vector.broadcast %cst_428 : f32 to vector<8x32xf32>
      %c0_429 = arith.constant 0 : index
      %c0_430 = arith.constant 0 : index
      %1366 = vector.load %arg12[%c0_429, %c0_430] : memref<8x32xf32, #tpu.memory_space<vmem>>, vector<8x32xf32>
      tpu.vector_store %arg12[%c0_429, %c0_430], %1365 {strides = array<i32>} : memref<8x32xf32, #tpu.memory_space<vmem>>, vector<8x32xf32>,
    } else {
    }
    %c0 = arith.constant 0 : index
    %c0_1 = arith.constant 0 : index
    %3 = vector.load %arg2[%c0, %c0_1] : memref<8x1xi32, #tpu.memory_space<vmem>>, vector<8x1xi32>
    %c0_2 = arith.constant 0 : index
    %c0_3 = arith.constant 0 : index
    %4 = vector.load %arg5[%c0_2, %c0_3] : memref<32x128xbf16, #tpu.memory_space<vmem>>, vector<32x128xbf16>
    %c0_4 = arith.constant 0 : index
    %c0_5 = arith.constant 0 : index
    %5 = vector.load %arg6[%c0_4, %c0_5] : memref<32x128xbf16, #tpu.memory_space<vmem>>, vector<32x128xbf16>
    %c12_i32 = arith.constant 12 : i32
    %6 = arith.muli %arg1, %c12_i32 : i32
    %c0_6 = arith.constant 0 : index
    %c0_7 = arith.constant 0 : index
    %7 = vector.load %arg9[%c0_6, %c0_7] : memref<8x32xbf16, #tpu.memory_space<vmem>>, vector<8x32xbf16>
    %c0_8 = arith.constant 0 : index
    %c0_9 = arith.constant 0 : index
    %8 = vector.load %arg10[%c0_8, %c0_9] : memref<8x32xbf16, #tpu.memory_space<vmem>>, vector<8x32xbf16>
    %c0_10 = arith.constant 0 : index
    %c0_11 = arith.constant 0 : index
    %9 = vector.load %arg11[%c0_10, %c0_11] : memref<8x32xf32, #tpu.memory_space<vmem>>, vector<8x32xf32>
    %c0_12 = arith.constant 0 : index
    %c0_13 = arith.constant 0 : index
    %10 = vector.load %arg12[%c0_12, %c0_13] : memref<8x32xf32, #tpu.memory_space<vmem>>, vector<8x32xf32>
    %c0_i32_14 = arith.constant 0 : i32
    %11 = arith.addi %6, %c0_i32_14 : i32
    %c11_i32 = arith.constant 11 : i32
    %12 = arith.subi %c11_i32, %11 : i32
    %cst = arith.constant dense<0.000000e+00> : vector<8x128xf32>
    %13 = tpu.matmul %7, %4, %cst {dimension_numbers = #tpu.dot_dimension_numbers<[1], [0], [0], [1], [0, 0, 1, 1], [], []>} : vector<8x32xbf16>, vector<32x128xbf16>, vector<8x128xf32> -> vector<8x128xf32>
    %cst_15 = arith.constant dense<0.000000e+00> : vector<8x128xf32>
    %14 = tpu.matmul %8, %5, %cst_15 {dimension_numbers = #tpu.dot_dimension_numbers<[1], [0], [0], [1], [0, 0, 1, 1], [], []>} : vector<8x32xbf16>, vector<32x128xbf16>, vector<8x128xf32> -> vector<8x128xf32>
    %15 = arith.index_cast %c0_i32_14 : i32 to index
    %c0_16 = arith.constant 0 : index
    %c0_17 = arith.constant 0 : index
    %16 = vector.load %arg3[%15, %c0_16, %c0_17] : memref<12x8x128xbf16, #tpu.memory_space<vmem>>, vector<1x8x128xbf16>
    %17 = vector.shape_cast %16 : vector<1x8x128xbf16> to vector<8x128xbf16>
    %18 = arith.extf %17 : vector<8x128xbf16> to vector<8x128xf32>
    %19 = arith.addf %18, %13 : vector<8x128xf32>
    %c11_i32_18 = arith.constant 11 : i32
    %20 = arith.subi %c11_i32_18, %c0_i32_14 : i32
    %21 = arith.index_cast %20 : i32 to index
    %c0_19 = arith.constant 0 : index
    %c0_20 = arith.constant 0 : index
    %22 = vector.load %arg4[%21, %c0_19, %c0_20] : memref<12x8x128xbf16, #tpu.memory_space<vmem>>, vector<1x8x128xbf16>
    %23 = vector.shape_cast %22 : vector<1x8x128xbf16> to vector<8x128xbf16>
    %24 = arith.extf %23 : vector<8x128xbf16> to vector<8x128xf32>
    %25 = arith.addf %24, %14 : vector<8x128xf32>
    %26 = vector.extract_strided_slice %19 {offsets = [0, 0], sizes = [8, 32], strides = [1, 1]} : vector<8x128xf32> to vector<8x32xf32>
    %cst_21 = arith.constant 5.000000e-01 : f32
    %27 = vector.broadcast %cst_21 : f32 to vector<8x32xf32>
    %28 = arith.mulf %27, %26 : vector<8x32xf32>
    %29 = math.tanh %28 : vector<8x32xf32>
    %cst_22 = arith.constant 5.000000e-01 : f32
    %30 = vector.broadcast %cst_22 : f32 to vector<8x32xf32>
    %31 = arith.mulf %30, %29 : vector<8x32xf32>
    %cst_23 = arith.constant 5.000000e-01 : f32
    %32 = vector.broadcast %cst_23 : f32 to vector<8x32xf32>
    %33 = arith.addf %31, %32 : vector<8x32xf32>
    %34 = vector.extract_strided_slice %19 {offsets = [0, 32], sizes = [8, 32], strides = [1, 1]} : vector<8x128xf32> to vector<8x32xf32>
    %cst_24 = arith.constant 5.000000e-01 : f32
    %35 = vector.broadcast %cst_24 : f32 to vector<8x32xf32>
    %36 = arith.mulf %35, %34 : vector<8x32xf32>
    %37 = math.tanh %36 : vector<8x32xf32>
    %cst_25 = arith.constant 5.000000e-01 : f32
    %38 = vector.broadcast %cst_25 : f32 to vector<8x32xf32>
    %39 = arith.mulf %38, %37 : vector<8x32xf32>
    %cst_26 = arith.constant 5.000000e-01 : f32
    %40 = vector.broadcast %cst_26 : f32 to vector<8x32xf32>
    %41 = arith.addf %39, %40 : vector<8x32xf32>
    %42 = vector.extract_strided_slice %19 {offsets = [0, 64], sizes = [8, 32], strides = [1, 1]} : vector<8x128xf32> to vector<8x32xf32>
    %43 = math.tanh %42 : vector<8x32xf32>
    %44 = vector.extract_strided_slice %19 {offsets = [0, 96], sizes = [8, 32], strides = [1, 1]} : vector<8x128xf32> to vector<8x32xf32>
    %cst_27 = arith.constant 5.000000e-01 : f32
    %45 = vector.broadcast %cst_27 : f32 to vector<8x32xf32>
    %46 = arith.mulf %45, %44 : vector<8x32xf32>
    %47 = math.tanh %46 : vector<8x32xf32>
    %cst_28 = arith.constant 5.000000e-01 : f32
    %48 = vector.broadcast %cst_28 : f32 to vector<8x32xf32>
    %49 = arith.mulf %48, %47 : vector<8x32xf32>
    %cst_29 = arith.constant 5.000000e-01 : f32
    %50 = vector.broadcast %cst_29 : f32 to vector<8x32xf32>
    %51 = arith.addf %49, %50 : vector<8x32xf32>
    %52 = arith.mulf %41, %9 : vector<8x32xf32>
    %53 = arith.mulf %33, %43 : vector<8x32xf32>
    %54 = arith.addf %52, %53 : vector<8x32xf32>
    %55 = math.tanh %54 : vector<8x32xf32>
    %56 = arith.mulf %51, %55 : vector<8x32xf32>
    %57 = vector.extract_strided_slice %25 {offsets = [0, 0], sizes = [8, 32], strides = [1, 1]} : vector<8x128xf32> to vector<8x32xf32>
    %cst_30 = arith.constant 5.000000e-01 : f32
    %58 = vector.broadcast %cst_30 : f32 to vector<8x32xf32>
    %59 = arith.mulf %58, %57 : vector<8x32xf32>
    %60 = math.tanh %59 : vector<8x32xf32>
    %cst_31 = arith.constant 5.000000e-01 : f32
    %61 = vector.broadcast %cst_31 : f32 to vector<8x32xf32>
    %62 = arith.mulf %61, %60 : vector<8x32xf32>
    %cst_32 = arith.constant 5.000000e-01 : f32
    %63 = vector.broadcast %cst_32 : f32 to vector<8x32xf32>
    %64 = arith.addf %62, %63 : vector<8x32xf32>
    %65 = vector.extract_strided_slice %25 {offsets = [0, 32], sizes = [8, 32], strides = [1, 1]} : vector<8x128xf32> to vector<8x32xf32>
    %cst_33 = arith.constant 5.000000e-01 : f32
    %66 = vector.broadcast %cst_33 : f32 to vector<8x32xf32>
    %67 = arith.mulf %66, %65 : vector<8x32xf32>
    %68 = math.tanh %67 : vector<8x32xf32>
    %cst_34 = arith.constant 5.000000e-01 : f32
    %69 = vector.broadcast %cst_34 : f32 to vector<8x32xf32>
    %70 = arith.mulf %69, %68 : vector<8x32xf32>
    %cst_35 = arith.constant 5.000000e-01 : f32
    %71 = vector.broadcast %cst_35 : f32 to vector<8x32xf32>
    %72 = arith.addf %70, %71 : vector<8x32xf32>
    %73 = vector.extract_strided_slice %25 {offsets = [0, 64], sizes = [8, 32], strides = [1, 1]} : vector<8x128xf32> to vector<8x32xf32>
    %74 = math.tanh %73 : vector<8x32xf32>
    %75 = vector.extract_strided_slice %25 {offsets = [0, 96], sizes = [8, 32], strides = [1, 1]} : vector<8x128xf32> to vector<8x32xf32>
    %cst_36 = arith.constant 5.000000e-01 : f32
    %76 = vector.broadcast %cst_36 : f32 to vector<8x32xf32>
    %77 = arith.mulf %76, %75 : vector<8x32xf32>
    %78 = math.tanh %77 : vector<8x32xf32>
    %cst_37 = arith.constant 5.000000e-01 : f32
    %79 = vector.broadcast %cst_37 : f32 to vector<8x32xf32>
    %80 = arith.mulf %79, %78 : vector<8x32xf32>
    %cst_38 = arith.constant 5.000000e-01 : f32
    %81 = vector.broadcast %cst_38 : f32 to vector<8x32xf32>
    %82 = arith.addf %80, %81 : vector<8x32xf32>
    %83 = arith.mulf %72, %10 : vector<8x32xf32>
    %84 = arith.mulf %64, %74 : vector<8x32xf32>
    %85 = arith.addf %83, %84 : vector<8x32xf32>
    %86 = math.tanh %85 : vector<8x32xf32>
    %87 = arith.mulf %82, %86 : vector<8x32xf32>
    %88 = vector.broadcast %11 : i32 to vector<8x1xi32>
    %89 = arith.cmpi slt, %88, %3 : vector<8x1xi32>
    %90 = vector.broadcast %12 : i32 to vector<8x1xi32>
    %91 = arith.cmpi slt, %90, %3 : vector<8x1xi32>
    %92 = arith.truncf %56 : vector<8x32xf32> to vector<8x32xbf16>
    %93 = arith.truncf %87 : vector<8x32xf32> to vector<8x32xbf16>
    %94 = vector.shape_cast %89 : vector<8x1xi1> to vector<8x1xi1>
    %95 = vector.broadcast %94 : vector<8x1xi1> to vector<8x32xi1>
    %96 = arith.select %95, %54, %9 : vector<8x32xi1>, vector<8x32xf32>
    %97 = vector.shape_cast %91 : vector<8x1xi1> to vector<8x1xi1>
    %98 = vector.broadcast %97 : vector<8x1xi1> to vector<8x32xi1>
    %99 = arith.select %98, %85, %10 : vector<8x32xi1>, vector<8x32xf32>
    %100 = vector.shape_cast %89 : vector<8x1xi1> to vector<8x1xi1>
    %101 = vector.broadcast %100 : vector<8x1xi1> to vector<8x32xi1>
    %102 = arith.select %101, %92, %7 : vector<8x32xi1>, vector<8x32xbf16>
    %103 = vector.shape_cast %91 : vector<8x1xi1> to vector<8x1xi1>
    %104 = vector.broadcast %103 : vector<8x1xi1> to vector<8x32xi1>
    %105 = arith.select %104, %93, %8 : vector<8x32xi1>, vector<8x32xbf16>
    %cst_39 = arith.constant 0.000000e+00 : bf16
    %106 = vector.broadcast %cst_39 : bf16 to vector<8x32xbf16>
    %107 = vector.shape_cast %89 : vector<8x1xi1> to vector<8x1xi1>
    %108 = vector.broadcast %107 : vector<8x1xi1> to vector<8x32xi1>
    %109 = arith.select %108, %92, %106 : vector<8x32xi1>, vector<8x32xbf16>
    %110 = arith.index_cast %c0_i32_14 : i32 to index
    %c0_40 = arith.constant 0 : index
    %c0_41 = arith.constant 0 : index
    %111 = vector.load %arg7[%110, %c0_40, %c0_41] : memref<12x8x32xbf16, #tpu.memory_space<vmem>>, vector<1x8x32xbf16>
    %112 = vector.shape_cast %111 : vector<1x8x32xbf16> to vector<8x32xbf16>
    %113 = vector.shape_cast %109 : vector<8x32xbf16> to vector<1x8x32xbf16>
    tpu.vector_store %arg7[%110, %c0_40, %c0_41], %113 {strides = array<i32>} : memref<12x8x32xbf16, #tpu.memory_space<vmem>>, vector<1x8x32xbf16>,
    %cst_42 = arith.constant 0.000000e+00 : bf16
    %114 = vector.broadcast %cst_42 : bf16 to vector<8x32xbf16>
    %115 = vector.shape_cast %91 : vector<8x1xi1> to vector<8x1xi1>
    %116 = vector.broadcast %115 : vector<8x1xi1> to vector<8x32xi1>
    %117 = arith.select %116, %93, %114 : vector<8x32xi1>, vector<8x32xbf16>
    %c11_i32_43 = arith.constant 11 : i32
    %118 = arith.subi %c11_i32_43, %c0_i32_14 : i32
    %119 = arith.index_cast %118 : i32 to index
    %c0_44 = arith.constant 0 : index
    %c0_45 = arith.constant 0 : index
    %120 = vector.load %arg8[%119, %c0_44, %c0_45] : memref<12x8x32xbf16, #tpu.memory_space<vmem>>, vector<1x8x32xbf16>
    %121 = vector.shape_cast %120 : vector<1x8x32xbf16> to vector<8x32xbf16>
    %122 = vector.shape_cast %117 : vector<8x32xbf16> to vector<1x8x32xbf16>
    tpu.vector_store %arg8[%119, %c0_44, %c0_45], %122 {strides = array<i32>} : memref<12x8x32xbf16, #tpu.memory_space<vmem>>, vector<1x8x32xbf16>,
    %c1_i32 = arith.constant 1 : i32
    %123 = arith.addi %6, %c1_i32 : i32
    %c11_i32_46 = arith.constant 11 : i32
    %124 = arith.subi %c11_i32_46, %123 : i32
    %cst_47 = arith.constant dense<0.000000e+00> : vector<8x128xf32>
    %125 = tpu.matmul %102, %4, %cst_47 {dimension_numbers = #tpu.dot_dimension_numbers<[1], [0], [0], [1], [0, 0, 1, 1], [], []>} : vector<8x32xbf16>, vector<32x128xbf16>, vector<8x128xf32> -> vector<8x128xf32>
    %cst_48 = arith.constant dense<0.000000e+00> : vector<8x128xf32>
    %126 = tpu.matmul %105, %5, %cst_48 {dimension_numbers = #tpu.dot_dimension_numbers<[1], [0], [0], [1], [0, 0, 1, 1], [], []>} : vector<8x32xbf16>, vector<32x128xbf16>, vector<8x128xf32> -> vector<8x128xf32>
    %127 = arith.index_cast %c1_i32 : i32 to index
    %c0_49 = arith.constant 0 : index
    %c0_50 = arith.constant 0 : index
    %128 = vector.load %arg3[%127, %c0_49, %c0_50] : memref<12x8x128xbf16, #tpu.memory_space<vmem>>, vector<1x8x128xbf16>
    %129 = vector.shape_cast %128 : vector<1x8x128xbf16> to vector<8x128xbf16>
    %130 = arith.extf %129 : vector<8x128xbf16> to vector<8x128xf32>
    %131 = arith.addf %130, %125 : vector<8x128xf32>
    %c11_i32_51 = arith.constant 11 : i32
    %132 = arith.subi %c11_i32_51, %c1_i32 : i32
    %133 = arith.index_cast %132 : i32 to index
    %c0_52 = arith.constant 0 : index
    %c0_53 = arith.constant 0 : index
    %134 = vector.load %arg4[%133, %c0_52, %c0_53] : memref<12x8x128xbf16, #tpu.memory_space<vmem>>, vector<1x8x128xbf16>
    %135 = vector.shape_cast %134 : vector<1x8x128xbf16> to vector<8x128xbf16>
    %136 = arith.extf %135 : vector<8x128xbf16> to vector<8x128xf32>
    %137 = arith.addf %136, %126 : vector<8x128xf32>
    %138 = vector.extract_strided_slice %131 {offsets = [0, 0], sizes = [8, 32], strides = [1, 1]} : vector<8x128xf32> to vector<8x32xf32>
    %cst_54 = arith.constant 5.000000e-01 : f32
    %139 = vector.broadcast %cst_54 : f32 to vector<8x32xf32>
    %140 = arith.mulf %139, %138 : vector<8x32xf32>
    %141 = math.tanh %140 : vector<8x32xf32>
    %cst_55 = arith.constant 5.000000e-01 : f32
    %142 = vector.broadcast %cst_55 : f32 to vector<8x32xf32>
    %143 = arith.mulf %142, %141 : vector<8x32xf32>
    %cst_56 = arith.constant 5.000000e-01 : f32
    %144 = vector.broadcast %cst_56 : f32 to vector<8x32xf32>
    %145 = arith.addf %143, %144 : vector<8x32xf32>
    %146 = vector.extract_strided_slice %131 {offsets = [0, 32], sizes = [8, 32], strides = [1, 1]} : vector<8x128xf32> to vector<8x32xf32>
    %cst_57 = arith.constant 5.000000e-01 : f32
    %147 = vector.broadcast %cst_57 : f32 to vector<8x32xf32>
    %148 = arith.mulf %147, %146 : vector<8x32xf32>
    %149 = math.tanh %148 : vector<8x32xf32>
    %cst_58 = arith.constant 5.000000e-01 : f32
    %150 = vector.broadcast %cst_58 : f32 to vector<8x32xf32>
    %151 = arith.mulf %150, %149 : vector<8x32xf32>
    %cst_59 = arith.constant 5.000000e-01 : f32
    %152 = vector.broadcast %cst_59 : f32 to vector<8x32xf32>
    %153 = arith.addf %151, %152 : vector<8x32xf32>
    %154 = vector.extract_strided_slice %131 {offsets = [0, 64], sizes = [8, 32], strides = [1, 1]} : vector<8x128xf32> to vector<8x32xf32>
    %155 = math.tanh %154 : vector<8x32xf32>
    %156 = vector.extract_strided_slice %131 {offsets = [0, 96], sizes = [8, 32], strides = [1, 1]} : vector<8x128xf32> to vector<8x32xf32>
    %cst_60 = arith.constant 5.000000e-01 : f32
    %157 = vector.broadcast %cst_60 : f32 to vector<8x32xf32>
    %158 = arith.mulf %157, %156 : vector<8x32xf32>
    %159 = math.tanh %158 : vector<8x32xf32>
    %cst_61 = arith.constant 5.000000e-01 : f32
    %160 = vector.broadcast %cst_61 : f32 to vector<8x32xf32>
    %161 = arith.mulf %160, %159 : vector<8x32xf32>
    %cst_62 = arith.constant 5.000000e-01 : f32
    %162 = vector.broadcast %cst_62 : f32 to vector<8x32xf32>
    %163 = arith.addf %161, %162 : vector<8x32xf32>
    %164 = arith.mulf %153, %96 : vector<8x32xf32>
    %165 = arith.mulf %145, %155 : vector<8x32xf32>
    %166 = arith.addf %164, %165 : vector<8x32xf32>
    %167 = math.tanh %166 : vector<8x32xf32>
    %168 = arith.mulf %163, %167 : vector<8x32xf32>
    %169 = vector.extract_strided_slice %137 {offsets = [0, 0], sizes = [8, 32], strides = [1, 1]} : vector<8x128xf32> to vector<8x32xf32>
    %cst_63 = arith.constant 5.000000e-01 : f32
    %170 = vector.broadcast %cst_63 : f32 to vector<8x32xf32>
    %171 = arith.mulf %170, %169 : vector<8x32xf32>
    %172 = math.tanh %171 : vector<8x32xf32>
    %cst_64 = arith.constant 5.000000e-01 : f32
    %173 = vector.broadcast %cst_64 : f32 to vector<8x32xf32>
    %174 = arith.mulf %173, %172 : vector<8x32xf32>
    %cst_65 = arith.constant 5.000000e-01 : f32
    %175 = vector.broadcast %cst_65 : f32 to vector<8x32xf32>
    %176 = arith.addf %174, %175 : vector<8x32xf32>
    %177 = vector.extract_strided_slice %137 {offsets = [0, 32], sizes = [8, 32], strides = [1, 1]} : vector<8x128xf32> to vector<8x32xf32>
    %cst_66 = arith.constant 5.000000e-01 : f32
    %178 = vector.broadcast %cst_66 : f32 to vector<8x32xf32>
    %179 = arith.mulf %178, %177 : vector<8x32xf32>
    %180 = math.tanh %179 : vector<8x32xf32>
    %cst_67 = arith.constant 5.000000e-01 : f32
    %181 = vector.broadcast %cst_67 : f32 to vector<8x32xf32>
    %182 = arith.mulf %181, %180 : vector<8x32xf32>
    %cst_68 = arith.constant 5.000000e-01 : f32
    %183 = vector.broadcast %cst_68 : f32 to vector<8x32xf32>
    %184 = arith.addf %182, %183 : vector<8x32xf32>
    %185 = vector.extract_strided_slice %137 {offsets = [0, 64], sizes = [8, 32], strides = [1, 1]} : vector<8x128xf32> to vector<8x32xf32>
    %186 = math.tanh %185 : vector<8x32xf32>
    %187 = vector.extract_strided_slice %137 {offsets = [0, 96], sizes = [8, 32], strides = [1, 1]} : vector<8x128xf32> to vector<8x32xf32>
    %cst_69 = arith.constant 5.000000e-01 : f32
    %188 = vector.broadcast %cst_69 : f32 to vector<8x32xf32>
    %189 = arith.mulf %188, %187 : vector<8x32xf32>
    %190 = math.tanh %189 : vector<8x32xf32>
    %cst_70 = arith.constant 5.000000e-01 : f32
    %191 = vector.broadcast %cst_70 : f32 to vector<8x32xf32>
    %192 = arith.mulf %191, %190 : vector<8x32xf32>
    %cst_71 = arith.constant 5.000000e-01 : f32
    %193 = vector.broadcast %cst_71 : f32 to vector<8x32xf32>
    %194 = arith.addf %192, %193 : vector<8x32xf32>
    %195 = arith.mulf %184, %99 : vector<8x32xf32>
    %196 = arith.mulf %176, %186 : vector<8x32xf32>
    %197 = arith.addf %195, %196 : vector<8x32xf32>
    %198 = math.tanh %197 : vector<8x32xf32>
    %199 = arith.mulf %194, %198 : vector<8x32xf32>
    %200 = vector.broadcast %123 : i32 to vector<8x1xi32>
    %201 = arith.cmpi slt, %200, %3 : vector<8x1xi32>
    %202 = vector.broadcast %124 : i32 to vector<8x1xi32>
    %203 = arith.cmpi slt, %202, %3 : vector<8x1xi32>
    %204 = arith.truncf %168 : vector<8x32xf32> to vector<8x32xbf16>
    %205 = arith.truncf %199 : vector<8x32xf32> to vector<8x32xbf16>
    %206 = vector.shape_cast %201 : vector<8x1xi1> to vector<8x1xi1>
    %207 = vector.broadcast %206 : vector<8x1xi1> to vector<8x32xi1>
    %208 = arith.select %207, %166, %96 : vector<8x32xi1>, vector<8x32xf32>
    %209 = vector.shape_cast %203 : vector<8x1xi1> to vector<8x1xi1>
    %210 = vector.broadcast %209 : vector<8x1xi1> to vector<8x32xi1>
    %211 = arith.select %210, %197, %99 : vector<8x32xi1>, vector<8x32xf32>
    %212 = vector.shape_cast %201 : vector<8x1xi1> to vector<8x1xi1>
    %213 = vector.broadcast %212 : vector<8x1xi1> to vector<8x32xi1>
    %214 = arith.select %213, %204, %102 : vector<8x32xi1>, vector<8x32xbf16>
    %215 = vector.shape_cast %203 : vector<8x1xi1> to vector<8x1xi1>
    %216 = vector.broadcast %215 : vector<8x1xi1> to vector<8x32xi1>
    %217 = arith.select %216, %205, %105 : vector<8x32xi1>, vector<8x32xbf16>
    %cst_72 = arith.constant 0.000000e+00 : bf16
    %218 = vector.broadcast %cst_72 : bf16 to vector<8x32xbf16>
    %219 = vector.shape_cast %201 : vector<8x1xi1> to vector<8x1xi1>
    %220 = vector.broadcast %219 : vector<8x1xi1> to vector<8x32xi1>
    %221 = arith.select %220, %204, %218 : vector<8x32xi1>, vector<8x32xbf16>
    %222 = arith.index_cast %c1_i32 : i32 to index
    %c0_73 = arith.constant 0 : index
    %c0_74 = arith.constant 0 : index
    %223 = vector.load %arg7[%222, %c0_73, %c0_74] : memref<12x8x32xbf16, #tpu.memory_space<vmem>>, vector<1x8x32xbf16>
    %224 = vector.shape_cast %223 : vector<1x8x32xbf16> to vector<8x32xbf16>
    %225 = vector.shape_cast %221 : vector<8x32xbf16> to vector<1x8x32xbf16>
    tpu.vector_store %arg7[%222, %c0_73, %c0_74], %225 {strides = array<i32>} : memref<12x8x32xbf16, #tpu.memory_space<vmem>>, vector<1x8x32xbf16>,
    %cst_75 = arith.constant 0.000000e+00 : bf16
    %226 = vector.broadcast %cst_75 : bf16 to vector<8x32xbf16>
    %227 = vector.shape_cast %203 : vector<8x1xi1> to vector<8x1xi1>
    %228 = vector.broadcast %227 : vector<8x1xi1> to vector<8x32xi1>
    %229 = arith.select %228, %205, %226 : vector<8x32xi1>, vector<8x32xbf16>
    %c11_i32_76 = arith.constant 11 : i32
    %230 = arith.subi %c11_i32_76, %c1_i32 : i32
    %231 = arith.index_cast %230 : i32 to index
    %c0_77 = arith.constant 0 : index
    %c0_78 = arith.constant 0 : index
    %232 = vector.load %arg8[%231, %c0_77, %c0_78] : memref<12x8x32xbf16, #tpu.memory_space<vmem>>, vector<1x8x32xbf16>
    %233 = vector.shape_cast %232 : vector<1x8x32xbf16> to vector<8x32xbf16>
    %234 = vector.shape_cast %229 : vector<8x32xbf16> to vector<1x8x32xbf16>
    tpu.vector_store %arg8[%231, %c0_77, %c0_78], %234 {strides = array<i32>} : memref<12x8x32xbf16, #tpu.memory_space<vmem>>, vector<1x8x32xbf16>,
    %c2_i32 = arith.constant 2 : i32
    %235 = arith.addi %6, %c2_i32 : i32
    %c11_i32_79 = arith.constant 11 : i32
    %236 = arith.subi %c11_i32_79, %235 : i32
    %cst_80 = arith.constant dense<0.000000e+00> : vector<8x128xf32>
    %237 = tpu.matmul %214, %4, %cst_80 {dimension_numbers = #tpu.dot_dimension_numbers<[1], [0], [0], [1], [0, 0, 1, 1], [], []>} : vector<8x32xbf16>, vector<32x128xbf16>, vector<8x128xf32> -> vector<8x128xf32>
    %cst_81 = arith.constant dense<0.000000e+00> : vector<8x128xf32>
    %238 = tpu.matmul %217, %5, %cst_81 {dimension_numbers = #tpu.dot_dimension_numbers<[1], [0], [0], [1], [0, 0, 1, 1], [], []>} : vector<8x32xbf16>, vector<32x128xbf16>, vector<8x128xf32> -> vector<8x128xf32>
    %239 = arith.index_cast %c2_i32 : i32 to index
    %c0_82 = arith.constant 0 : index
    %c0_83 = arith.constant 0 : index
    %240 = vector.load %arg3[%239, %c0_82, %c0_83] : memref<12x8x128xbf16, #tpu.memory_space<vmem>>, vector<1x8x128xbf16>
    %241 = vector.shape_cast %240 : vector<1x8x128xbf16> to vector<8x128xbf16>
    %242 = arith.extf %241 : vector<8x128xbf16> to vector<8x128xf32>
    %243 = arith.addf %242, %237 : vector<8x128xf32>
    %c11_i32_84 = arith.constant 11 : i32
    %244 = arith.subi %c11_i32_84, %c2_i32 : i32
    %245 = arith.index_cast %244 : i32 to index
    %c0_85 = arith.constant 0 : index
    %c0_86 = arith.constant 0 : index
    %246 = vector.load %arg4[%245, %c0_85, %c0_86] : memref<12x8x128xbf16, #tpu.memory_space<vmem>>, vector<1x8x128xbf16>
    %247 = vector.shape_cast %246 : vector<1x8x128xbf16> to vector<8x128xbf16>
    %248 = arith.extf %247 : vector<8x128xbf16> to vector<8x128xf32>
    %249 = arith.addf %248, %238 : vector<8x128xf32>
    %250 = vector.extract_strided_slice %243 {offsets = [0, 0], sizes = [8, 32], strides = [1, 1]} : vector<8x128xf32> to vector<8x32xf32>
    %cst_87 = arith.constant 5.000000e-01 : f32
    %251 = vector.broadcast %cst_87 : f32 to vector<8x32xf32>
    %252 = arith.mulf %251, %250 : vector<8x32xf32>
    %253 = math.tanh %252 : vector<8x32xf32>
    %cst_88 = arith.constant 5.000000e-01 : f32
    %254 = vector.broadcast %cst_88 : f32 to vector<8x32xf32>
    %255 = arith.mulf %254, %253 : vector<8x32xf32>
    %cst_89 = arith.constant 5.000000e-01 : f32
    %256 = vector.broadcast %cst_89 : f32 to vector<8x32xf32>
    %257 = arith.addf %255, %256 : vector<8x32xf32>
    %258 = vector.extract_strided_slice %243 {offsets = [0, 32], sizes = [8, 32], strides = [1, 1]} : vector<8x128xf32> to vector<8x32xf32>
    %cst_90 = arith.constant 5.000000e-01 : f32
    %259 = vector.broadcast %cst_90 : f32 to vector<8x32xf32>
    %260 = arith.mulf %259, %258 : vector<8x32xf32>
    %261 = math.tanh %260 : vector<8x32xf32>
    %cst_91 = arith.constant 5.000000e-01 : f32
    %262 = vector.broadcast %cst_91 : f32 to vector<8x32xf32>
    %263 = arith.mulf %262, %261 : vector<8x32xf32>
    %cst_92 = arith.constant 5.000000e-01 : f32
    %264 = vector.broadcast %cst_92 : f32 to vector<8x32xf32>
    %265 = arith.addf %263, %264 : vector<8x32xf32>
    %266 = vector.extract_strided_slice %243 {offsets = [0, 64], sizes = [8, 32], strides = [1, 1]} : vector<8x128xf32> to vector<8x32xf32>
    %267 = math.tanh %266 : vector<8x32xf32>
    %268 = vector.extract_strided_slice %243 {offsets = [0, 96], sizes = [8, 32], strides = [1, 1]} : vector<8x128xf32> to vector<8x32xf32>
    %cst_93 = arith.constant 5.000000e-01 : f32
    %269 = vector.broadcast %cst_93 : f32 to vector<8x32xf32>
    %270 = arith.mulf %269, %268 : vector<8x32xf32>
    %271 = math.tanh %270 : vector<8x32xf32>
    %cst_94 = arith.constant 5.000000e-01 : f32
    %272 = vector.broadcast %cst_94 : f32 to vector<8x32xf32>
    %273 = arith.mulf %272, %271 : vector<8x32xf32>
    %cst_95 = arith.constant 5.000000e-01 : f32
    %274 = vector.broadcast %cst_95 : f32 to vector<8x32xf32>
    %275 = arith.addf %273, %274 : vector<8x32xf32>
    %276 = arith.mulf %265, %208 : vector<8x32xf32>
    %277 = arith.mulf %257, %267 : vector<8x32xf32>
    %278 = arith.addf %276, %277 : vector<8x32xf32>
    %279 = math.tanh %278 : vector<8x32xf32>
    %280 = arith.mulf %275, %279 : vector<8x32xf32>
    %281 = vector.extract_strided_slice %249 {offsets = [0, 0], sizes = [8, 32], strides = [1, 1]} : vector<8x128xf32> to vector<8x32xf32>
    %cst_96 = arith.constant 5.000000e-01 : f32
    %282 = vector.broadcast %cst_96 : f32 to vector<8x32xf32>
    %283 = arith.mulf %282, %281 : vector<8x32xf32>
    %284 = math.tanh %283 : vector<8x32xf32>
    %cst_97 = arith.constant 5.000000e-01 : f32
    %285 = vector.broadcast %cst_97 : f32 to vector<8x32xf32>
    %286 = arith.mulf %285, %284 : vector<8x32xf32>
    %cst_98 = arith.constant 5.000000e-01 : f32
    %287 = vector.broadcast %cst_98 : f32 to vector<8x32xf32>
    %288 = arith.addf %286, %287 : vector<8x32xf32>
    %289 = vector.extract_strided_slice %249 {offsets = [0, 32], sizes = [8, 32], strides = [1, 1]} : vector<8x128xf32> to vector<8x32xf32>
    %cst_99 = arith.constant 5.000000e-01 : f32
    %290 = vector.broadcast %cst_99 : f32 to vector<8x32xf32>
    %291 = arith.mulf %290, %289 : vector<8x32xf32>
    %292 = math.tanh %291 : vector<8x32xf32>
    %cst_100 = arith.constant 5.000000e-01 : f32
    %293 = vector.broadcast %cst_100 : f32 to vector<8x32xf32>
    %294 = arith.mulf %293, %292 : vector<8x32xf32>
    %cst_101 = arith.constant 5.000000e-01 : f32
    %295 = vector.broadcast %cst_101 : f32 to vector<8x32xf32>
    %296 = arith.addf %294, %295 : vector<8x32xf32>
    %297 = vector.extract_strided_slice %249 {offsets = [0, 64], sizes = [8, 32], strides = [1, 1]} : vector<8x128xf32> to vector<8x32xf32>
    %298 = math.tanh %297 : vector<8x32xf32>
    %299 = vector.extract_strided_slice %249 {offsets = [0, 96], sizes = [8, 32], strides = [1, 1]} : vector<8x128xf32> to vector<8x32xf32>
    %cst_102 = arith.constant 5.000000e-01 : f32
    %300 = vector.broadcast %cst_102 : f32 to vector<8x32xf32>
    %301 = arith.mulf %300, %299 : vector<8x32xf32>
    %302 = math.tanh %301 : vector<8x32xf32>
    %cst_103 = arith.constant 5.000000e-01 : f32
    %303 = vector.broadcast %cst_103 : f32 to vector<8x32xf32>
    %304 = arith.mulf %303, %302 : vector<8x32xf32>
    %cst_104 = arith.constant 5.000000e-01 : f32
    %305 = vector.broadcast %cst_104 : f32 to vector<8x32xf32>
    %306 = arith.addf %304, %305 : vector<8x32xf32>
    %307 = arith.mulf %296, %211 : vector<8x32xf32>
    %308 = arith.mulf %288, %298 : vector<8x32xf32>
    %309 = arith.addf %307, %308 : vector<8x32xf32>
    %310 = math.tanh %309 : vector<8x32xf32>
    %311 = arith.mulf %306, %310 : vector<8x32xf32>
    %312 = vector.broadcast %235 : i32 to vector<8x1xi32>
    %313 = arith.cmpi slt, %312, %3 : vector<8x1xi32>
    %314 = vector.broadcast %236 : i32 to vector<8x1xi32>
    %315 = arith.cmpi slt, %314, %3 : vector<8x1xi32>
    %316 = arith.truncf %280 : vector<8x32xf32> to vector<8x32xbf16>
    %317 = arith.truncf %311 : vector<8x32xf32> to vector<8x32xbf16>
    %318 = vector.shape_cast %313 : vector<8x1xi1> to vector<8x1xi1>
    %319 = vector.broadcast %318 : vector<8x1xi1> to vector<8x32xi1>
    %320 = arith.select %319, %278, %208 : vector<8x32xi1>, vector<8x32xf32>
    %321 = vector.shape_cast %315 : vector<8x1xi1> to vector<8x1xi1>
    %322 = vector.broadcast %321 : vector<8x1xi1> to vector<8x32xi1>
    %323 = arith.select %322, %309, %211 : vector<8x32xi1>, vector<8x32xf32>
    %324 = vector.shape_cast %313 : vector<8x1xi1> to vector<8x1xi1>
    %325 = vector.broadcast %324 : vector<8x1xi1> to vector<8x32xi1>
    %326 = arith.select %325, %316, %214 : vector<8x32xi1>, vector<8x32xbf16>
    %327 = vector.shape_cast %315 : vector<8x1xi1> to vector<8x1xi1>
    %328 = vector.broadcast %327 : vector<8x1xi1> to vector<8x32xi1>
    %329 = arith.select %328, %317, %217 : vector<8x32xi1>, vector<8x32xbf16>
    %cst_105 = arith.constant 0.000000e+00 : bf16
    %330 = vector.broadcast %cst_105 : bf16 to vector<8x32xbf16>
    %331 = vector.shape_cast %313 : vector<8x1xi1> to vector<8x1xi1>
    %332 = vector.broadcast %331 : vector<8x1xi1> to vector<8x32xi1>
    %333 = arith.select %332, %316, %330 : vector<8x32xi1>, vector<8x32xbf16>
    %334 = arith.index_cast %c2_i32 : i32 to index
    %c0_106 = arith.constant 0 : index
    %c0_107 = arith.constant 0 : index
    %335 = vector.load %arg7[%334, %c0_106, %c0_107] : memref<12x8x32xbf16, #tpu.memory_space<vmem>>, vector<1x8x32xbf16>
    %336 = vector.shape_cast %335 : vector<1x8x32xbf16> to vector<8x32xbf16>
    %337 = vector.shape_cast %333 : vector<8x32xbf16> to vector<1x8x32xbf16>
    tpu.vector_store %arg7[%334, %c0_106, %c0_107], %337 {strides = array<i32>} : memref<12x8x32xbf16, #tpu.memory_space<vmem>>, vector<1x8x32xbf16>,
    %cst_108 = arith.constant 0.000000e+00 : bf16
    %338 = vector.broadcast %cst_108 : bf16 to vector<8x32xbf16>
    %339 = vector.shape_cast %315 : vector<8x1xi1> to vector<8x1xi1>
    %340 = vector.broadcast %339 : vector<8x1xi1> to vector<8x32xi1>
    %341 = arith.select %340, %317, %338 : vector<8x32xi1>, vector<8x32xbf16>
    %c11_i32_109 = arith.constant 11 : i32
    %342 = arith.subi %c11_i32_109, %c2_i32 : i32
    %343 = arith.index_cast %342 : i32 to index
    %c0_110 = arith.constant 0 : index
    %c0_111 = arith.constant 0 : index
    %344 = vector.load %arg8[%343, %c0_110, %c0_111] : memref<12x8x32xbf16, #tpu.memory_space<vmem>>, vector<1x8x32xbf16>
    %345 = vector.shape_cast %344 : vector<1x8x32xbf16> to vector<8x32xbf16>
    %346 = vector.shape_cast %341 : vector<8x32xbf16> to vector<1x8x32xbf16>
    tpu.vector_store %arg8[%343, %c0_110, %c0_111], %346 {strides = array<i32>} : memref<12x8x32xbf16, #tpu.memory_space<vmem>>, vector<1x8x32xbf16>,
    %c3_i32 = arith.constant 3 : i32
    %347 = arith.addi %6, %c3_i32 : i32
    %c11_i32_112 = arith.constant 11 : i32
    %348 = arith.subi %c11_i32_112, %347 : i32
    %cst_113 = arith.constant dense<0.000000e+00> : vector<8x128xf32>
    %349 = tpu.matmul %326, %4, %cst_113 {dimension_numbers = #tpu.dot_dimension_numbers<[1], [0], [0], [1], [0, 0, 1, 1], [], []>} : vector<8x32xbf16>, vector<32x128xbf16>, vector<8x128xf32> -> vector<8x128xf32>
    %cst_114 = arith.constant dense<0.000000e+00> : vector<8x128xf32>
    %350 = tpu.matmul %329, %5, %cst_114 {dimension_numbers = #tpu.dot_dimension_numbers<[1], [0], [0], [1], [0, 0, 1, 1], [], []>} : vector<8x32xbf16>, vector<32x128xbf16>, vector<8x128xf32> -> vector<8x128xf32>
    %351 = arith.index_cast %c3_i32 : i32 to index
    %c0_115 = arith.constant 0 : index
    %c0_116 = arith.constant 0 : index
    %352 = vector.load %arg3[%351, %c0_115, %c0_116] : memref<12x8x128xbf16, #tpu.memory_space<vmem>>, vector<1x8x128xbf16>
    %353 = vector.shape_cast %352 : vector<1x8x128xbf16> to vector<8x128xbf16>
    %354 = arith.extf %353 : vector<8x128xbf16> to vector<8x128xf32>
    %355 = arith.addf %354, %349 : vector<8x128xf32>
    %c11_i32_117 = arith.constant 11 : i32
    %356 = arith.subi %c11_i32_117, %c3_i32 : i32
    %357 = arith.index_cast %356 : i32 to index
    %c0_118 = arith.constant 0 : index
    %c0_119 = arith.constant 0 : index
    %358 = vector.load %arg4[%357, %c0_118, %c0_119] : memref<12x8x128xbf16, #tpu.memory_space<vmem>>, vector<1x8x128xbf16>
    %359 = vector.shape_cast %358 : vector<1x8x128xbf16> to vector<8x128xbf16>
    %360 = arith.extf %359 : vector<8x128xbf16> to vector<8x128xf32>
    %361 = arith.addf %360, %350 : vector<8x128xf32>
    %362 = vector.extract_strided_slice %355 {offsets = [0, 0], sizes = [8, 32], strides = [1, 1]} : vector<8x128xf32> to vector<8x32xf32>
    %cst_120 = arith.constant 5.000000e-01 : f32
    %363 = vector.broadcast %cst_120 : f32 to vector<8x32xf32>
    %364 = arith.mulf %363, %362 : vector<8x32xf32>
    %365 = math.tanh %364 : vector<8x32xf32>
    %cst_121 = arith.constant 5.000000e-01 : f32
    %366 = vector.broadcast %cst_121 : f32 to vector<8x32xf32>
    %367 = arith.mulf %366, %365 : vector<8x32xf32>
    %cst_122 = arith.constant 5.000000e-01 : f32
    %368 = vector.broadcast %cst_122 : f32 to vector<8x32xf32>
    %369 = arith.addf %367, %368 : vector<8x32xf32>
    %370 = vector.extract_strided_slice %355 {offsets = [0, 32], sizes = [8, 32], strides = [1, 1]} : vector<8x128xf32> to vector<8x32xf32>
    %cst_123 = arith.constant 5.000000e-01 : f32
    %371 = vector.broadcast %cst_123 : f32 to vector<8x32xf32>
    %372 = arith.mulf %371, %370 : vector<8x32xf32>
    %373 = math.tanh %372 : vector<8x32xf32>
    %cst_124 = arith.constant 5.000000e-01 : f32
    %374 = vector.broadcast %cst_124 : f32 to vector<8x32xf32>
    %375 = arith.mulf %374, %373 : vector<8x32xf32>
    %cst_125 = arith.constant 5.000000e-01 : f32
    %376 = vector.broadcast %cst_125 : f32 to vector<8x32xf32>
    %377 = arith.addf %375, %376 : vector<8x32xf32>
    %378 = vector.extract_strided_slice %355 {offsets = [0, 64], sizes = [8, 32], strides = [1, 1]} : vector<8x128xf32> to vector<8x32xf32>
    %379 = math.tanh %378 : vector<8x32xf32>
    %380 = vector.extract_strided_slice %355 {offsets = [0, 96], sizes = [8, 32], strides = [1, 1]} : vector<8x128xf32> to vector<8x32xf32>
    %cst_126 = arith.constant 5.000000e-01 : f32
    %381 = vector.broadcast %cst_126 : f32 to vector<8x32xf32>
    %382 = arith.mulf %381, %380 : vector<8x32xf32>
    %383 = math.tanh %382 : vector<8x32xf32>
    %cst_127 = arith.constant 5.000000e-01 : f32
    %384 = vector.broadcast %cst_127 : f32 to vector<8x32xf32>
    %385 = arith.mulf %384, %383 : vector<8x32xf32>
    %cst_128 = arith.constant 5.000000e-01 : f32
    %386 = vector.broadcast %cst_128 : f32 to vector<8x32xf32>
    %387 = arith.addf %385, %386 : vector<8x32xf32>
    %388 = arith.mulf %377, %320 : vector<8x32xf32>
    %389 = arith.mulf %369, %379 : vector<8x32xf32>
    %390 = arith.addf %388, %389 : vector<8x32xf32>
    %391 = math.tanh %390 : vector<8x32xf32>
    %392 = arith.mulf %387, %391 : vector<8x32xf32>
    %393 = vector.extract_strided_slice %361 {offsets = [0, 0], sizes = [8, 32], strides = [1, 1]} : vector<8x128xf32> to vector<8x32xf32>
    %cst_129 = arith.constant 5.000000e-01 : f32
    %394 = vector.broadcast %cst_129 : f32 to vector<8x32xf32>
    %395 = arith.mulf %394, %393 : vector<8x32xf32>
    %396 = math.tanh %395 : vector<8x32xf32>
    %cst_130 = arith.constant 5.000000e-01 : f32
    %397 = vector.broadcast %cst_130 : f32 to vector<8x32xf32>
    %398 = arith.mulf %397, %396 : vector<8x32xf32>
    %cst_131 = arith.constant 5.000000e-01 : f32
    %399 = vector.broadcast %cst_131 : f32 to vector<8x32xf32>
    %400 = arith.addf %398, %399 : vector<8x32xf32>
    %401 = vector.extract_strided_slice %361 {offsets = [0, 32], sizes = [8, 32], strides = [1, 1]} : vector<8x128xf32> to vector<8x32xf32>
    %cst_132 = arith.constant 5.000000e-01 : f32
    %402 = vector.broadcast %cst_132 : f32 to vector<8x32xf32>
    %403 = arith.mulf %402, %401 : vector<8x32xf32>
    %404 = math.tanh %403 : vector<8x32xf32>
    %cst_133 = arith.constant 5.000000e-01 : f32
    %405 = vector.broadcast %cst_133 : f32 to vector<8x32xf32>
    %406 = arith.mulf %405, %404 : vector<8x32xf32>
    %cst_134 = arith.constant 5.000000e-01 : f32
    %407 = vector.broadcast %cst_134 : f32 to vector<8x32xf32>
    %408 = arith.addf %406, %407 : vector<8x32xf32>
    %409 = vector.extract_strided_slice %361 {offsets = [0, 64], sizes = [8, 32], strides = [1, 1]} : vector<8x128xf32> to vector<8x32xf32>
    %410 = math.tanh %409 : vector<8x32xf32>
    %411 = vector.extract_strided_slice %361 {offsets = [0, 96], sizes = [8, 32], strides = [1, 1]} : vector<8x128xf32> to vector<8x32xf32>
    %cst_135 = arith.constant 5.000000e-01 : f32
    %412 = vector.broadcast %cst_135 : f32 to vector<8x32xf32>
    %413 = arith.mulf %412, %411 : vector<8x32xf32>
    %414 = math.tanh %413 : vector<8x32xf32>
    %cst_136 = arith.constant 5.000000e-01 : f32
    %415 = vector.broadcast %cst_136 : f32 to vector<8x32xf32>
    %416 = arith.mulf %415, %414 : vector<8x32xf32>
    %cst_137 = arith.constant 5.000000e-01 : f32
    %417 = vector.broadcast %cst_137 : f32 to vector<8x32xf32>
    %418 = arith.addf %416, %417 : vector<8x32xf32>
    %419 = arith.mulf %408, %323 : vector<8x32xf32>
    %420 = arith.mulf %400, %410 : vector<8x32xf32>
    %421 = arith.addf %419, %420 : vector<8x32xf32>
    %422 = math.tanh %421 : vector<8x32xf32>
    %423 = arith.mulf %418, %422 : vector<8x32xf32>
    %424 = vector.broadcast %347 : i32 to vector<8x1xi32>
    %425 = arith.cmpi slt, %424, %3 : vector<8x1xi32>
    %426 = vector.broadcast %348 : i32 to vector<8x1xi32>
    %427 = arith.cmpi slt, %426, %3 : vector<8x1xi32>
    %428 = arith.truncf %392 : vector<8x32xf32> to vector<8x32xbf16>
    %429 = arith.truncf %423 : vector<8x32xf32> to vector<8x32xbf16>
    %430 = vector.shape_cast %425 : vector<8x1xi1> to vector<8x1xi1>
    %431 = vector.broadcast %430 : vector<8x1xi1> to vector<8x32xi1>
    %432 = arith.select %431, %390, %320 : vector<8x32xi1>, vector<8x32xf32>
    %433 = vector.shape_cast %427 : vector<8x1xi1> to vector<8x1xi1>
    %434 = vector.broadcast %433 : vector<8x1xi1> to vector<8x32xi1>
    %435 = arith.select %434, %421, %323 : vector<8x32xi1>, vector<8x32xf32>
    %436 = vector.shape_cast %425 : vector<8x1xi1> to vector<8x1xi1>
    %437 = vector.broadcast %436 : vector<8x1xi1> to vector<8x32xi1>
    %438 = arith.select %437, %428, %326 : vector<8x32xi1>, vector<8x32xbf16>
    %439 = vector.shape_cast %427 : vector<8x1xi1> to vector<8x1xi1>
    %440 = vector.broadcast %439 : vector<8x1xi1> to vector<8x32xi1>
    %441 = arith.select %440, %429, %329 : vector<8x32xi1>, vector<8x32xbf16>
    %cst_138 = arith.constant 0.000000e+00 : bf16
    %442 = vector.broadcast %cst_138 : bf16 to vector<8x32xbf16>
    %443 = vector.shape_cast %425 : vector<8x1xi1> to vector<8x1xi1>
    %444 = vector.broadcast %443 : vector<8x1xi1> to vector<8x32xi1>
    %445 = arith.select %444, %428, %442 : vector<8x32xi1>, vector<8x32xbf16>
    %446 = arith.index_cast %c3_i32 : i32 to index
    %c0_139 = arith.constant 0 : index
    %c0_140 = arith.constant 0 : index
    %447 = vector.load %arg7[%446, %c0_139, %c0_140] : memref<12x8x32xbf16, #tpu.memory_space<vmem>>, vector<1x8x32xbf16>
    %448 = vector.shape_cast %447 : vector<1x8x32xbf16> to vector<8x32xbf16>
    %449 = vector.shape_cast %445 : vector<8x32xbf16> to vector<1x8x32xbf16>
    tpu.vector_store %arg7[%446, %c0_139, %c0_140], %449 {strides = array<i32>} : memref<12x8x32xbf16, #tpu.memory_space<vmem>>, vector<1x8x32xbf16>,
    %cst_141 = arith.constant 0.000000e+00 : bf16
    %450 = vector.broadcast %cst_141 : bf16 to vector<8x32xbf16>
    %451 = vector.shape_cast %427 : vector<8x1xi1> to vector<8x1xi1>
    %452 = vector.broadcast %451 : vector<8x1xi1> to vector<8x32xi1>
    %453 = arith.select %452, %429, %450 : vector<8x32xi1>, vector<8x32xbf16>
    %c11_i32_142 = arith.constant 11 : i32
    %454 = arith.subi %c11_i32_142, %c3_i32 : i32
    %455 = arith.index_cast %454 : i32 to index
    %c0_143 = arith.constant 0 : index
    %c0_144 = arith.constant 0 : index
    %456 = vector.load %arg8[%455, %c0_143, %c0_144] : memref<12x8x32xbf16, #tpu.memory_space<vmem>>, vector<1x8x32xbf16>
    %457 = vector.shape_cast %456 : vector<1x8x32xbf16> to vector<8x32xbf16>
    %458 = vector.shape_cast %453 : vector<8x32xbf16> to vector<1x8x32xbf16>
    tpu.vector_store %arg8[%455, %c0_143, %c0_144], %458 {strides = array<i32>} : memref<12x8x32xbf16, #tpu.memory_space<vmem>>, vector<1x8x32xbf16>,
    %c4_i32 = arith.constant 4 : i32
    %459 = arith.addi %6, %c4_i32 : i32
    %c11_i32_145 = arith.constant 11 : i32
    %460 = arith.subi %c11_i32_145, %459 : i32
    %cst_146 = arith.constant dense<0.000000e+00> : vector<8x128xf32>
    %461 = tpu.matmul %438, %4, %cst_146 {dimension_numbers = #tpu.dot_dimension_numbers<[1], [0], [0], [1], [0, 0, 1, 1], [], []>} : vector<8x32xbf16>, vector<32x128xbf16>, vector<8x128xf32> -> vector<8x128xf32>
    %cst_147 = arith.constant dense<0.000000e+00> : vector<8x128xf32>
    %462 = tpu.matmul %441, %5, %cst_147 {dimension_numbers = #tpu.dot_dimension_numbers<[1], [0], [0], [1], [0, 0, 1, 1], [], []>} : vector<8x32xbf16>, vector<32x128xbf16>, vector<8x128xf32> -> vector<8x128xf32>
    %463 = arith.index_cast %c4_i32 : i32 to index
    %c0_148 = arith.constant 0 : index
    %c0_149 = arith.constant 0 : index
    %464 = vector.load %arg3[%463, %c0_148, %c0_149] : memref<12x8x128xbf16, #tpu.memory_space<vmem>>, vector<1x8x128xbf16>
    %465 = vector.shape_cast %464 : vector<1x8x128xbf16> to vector<8x128xbf16>
    %466 = arith.extf %465 : vector<8x128xbf16> to vector<8x128xf32>
    %467 = arith.addf %466, %461 : vector<8x128xf32>
    %c11_i32_150 = arith.constant 11 : i32
    %468 = arith.subi %c11_i32_150, %c4_i32 : i32
    %469 = arith.index_cast %468 : i32 to index
    %c0_151 = arith.constant 0 : index
    %c0_152 = arith.constant 0 : index
    %470 = vector.load %arg4[%469, %c0_151, %c0_152] : memref<12x8x128xbf16, #tpu.memory_space<vmem>>, vector<1x8x128xbf16>
    %471 = vector.shape_cast %470 : vector<1x8x128xbf16> to vector<8x128xbf16>
    %472 = arith.extf %471 : vector<8x128xbf16> to vector<8x128xf32>
    %473 = arith.addf %472, %462 : vector<8x128xf32>
    %474 = vector.extract_strided_slice %467 {offsets = [0, 0], sizes = [8, 32], strides = [1, 1]} : vector<8x128xf32> to vector<8x32xf32>
    %cst_153 = arith.constant 5.000000e-01 : f32
    %475 = vector.broadcast %cst_153 : f32 to vector<8x32xf32>
    %476 = arith.mulf %475, %474 : vector<8x32xf32>
    %477 = math.tanh %476 : vector<8x32xf32>
    %cst_154 = arith.constant 5.000000e-01 : f32
    %478 = vector.broadcast %cst_154 : f32 to vector<8x32xf32>
    %479 = arith.mulf %478, %477 : vector<8x32xf32>
    %cst_155 = arith.constant 5.000000e-01 : f32
    %480 = vector.broadcast %cst_155 : f32 to vector<8x32xf32>
    %481 = arith.addf %479, %480 : vector<8x32xf32>
    %482 = vector.extract_strided_slice %467 {offsets = [0, 32], sizes = [8, 32], strides = [1, 1]} : vector<8x128xf32> to vector<8x32xf32>
    %cst_156 = arith.constant 5.000000e-01 : f32
    %483 = vector.broadcast %cst_156 : f32 to vector<8x32xf32>
    %484 = arith.mulf %483, %482 : vector<8x32xf32>
    %485 = math.tanh %484 : vector<8x32xf32>
    %cst_157 = arith.constant 5.000000e-01 : f32
    %486 = vector.broadcast %cst_157 : f32 to vector<8x32xf32>
    %487 = arith.mulf %486, %485 : vector<8x32xf32>
    %cst_158 = arith.constant 5.000000e-01 : f32
    %488 = vector.broadcast %cst_158 : f32 to vector<8x32xf32>
    %489 = arith.addf %487, %488 : vector<8x32xf32>
    %490 = vector.extract_strided_slice %467 {offsets = [0, 64], sizes = [8, 32], strides = [1, 1]} : vector<8x128xf32> to vector<8x32xf32>
    %491 = math.tanh %490 : vector<8x32xf32>
    %492 = vector.extract_strided_slice %467 {offsets = [0, 96], sizes = [8, 32], strides = [1, 1]} : vector<8x128xf32> to vector<8x32xf32>
    %cst_159 = arith.constant 5.000000e-01 : f32
    %493 = vector.broadcast %cst_159 : f32 to vector<8x32xf32>
    %494 = arith.mulf %493, %492 : vector<8x32xf32>
    %495 = math.tanh %494 : vector<8x32xf32>
    %cst_160 = arith.constant 5.000000e-01 : f32
    %496 = vector.broadcast %cst_160 : f32 to vector<8x32xf32>
    %497 = arith.mulf %496, %495 : vector<8x32xf32>
    %cst_161 = arith.constant 5.000000e-01 : f32
    %498 = vector.broadcast %cst_161 : f32 to vector<8x32xf32>
    %499 = arith.addf %497, %498 : vector<8x32xf32>
    %500 = arith.mulf %489, %432 : vector<8x32xf32>
    %501 = arith.mulf %481, %491 : vector<8x32xf32>
    %502 = arith.addf %500, %501 : vector<8x32xf32>
    %503 = math.tanh %502 : vector<8x32xf32>
    %504 = arith.mulf %499, %503 : vector<8x32xf32>
    %505 = vector.extract_strided_slice %473 {offsets = [0, 0], sizes = [8, 32], strides = [1, 1]} : vector<8x128xf32> to vector<8x32xf32>
    %cst_162 = arith.constant 5.000000e-01 : f32
    %506 = vector.broadcast %cst_162 : f32 to vector<8x32xf32>
    %507 = arith.mulf %506, %505 : vector<8x32xf32>
    %508 = math.tanh %507 : vector<8x32xf32>
    %cst_163 = arith.constant 5.000000e-01 : f32
    %509 = vector.broadcast %cst_163 : f32 to vector<8x32xf32>
    %510 = arith.mulf %509, %508 : vector<8x32xf32>
    %cst_164 = arith.constant 5.000000e-01 : f32
    %511 = vector.broadcast %cst_164 : f32 to vector<8x32xf32>
    %512 = arith.addf %510, %511 : vector<8x32xf32>
    %513 = vector.extract_strided_slice %473 {offsets = [0, 32], sizes = [8, 32], strides = [1, 1]} : vector<8x128xf32> to vector<8x32xf32>
    %cst_165 = arith.constant 5.000000e-01 : f32
    %514 = vector.broadcast %cst_165 : f32 to vector<8x32xf32>
    %515 = arith.mulf %514, %513 : vector<8x32xf32>
    %516 = math.tanh %515 : vector<8x32xf32>
    %cst_166 = arith.constant 5.000000e-01 : f32
    %517 = vector.broadcast %cst_166 : f32 to vector<8x32xf32>
    %518 = arith.mulf %517, %516 : vector<8x32xf32>
    %cst_167 = arith.constant 5.000000e-01 : f32
    %519 = vector.broadcast %cst_167 : f32 to vector<8x32xf32>
    %520 = arith.addf %518, %519 : vector<8x32xf32>
    %521 = vector.extract_strided_slice %473 {offsets = [0, 64], sizes = [8, 32], strides = [1, 1]} : vector<8x128xf32> to vector<8x32xf32>
    %522 = math.tanh %521 : vector<8x32xf32>
    %523 = vector.extract_strided_slice %473 {offsets = [0, 96], sizes = [8, 32], strides = [1, 1]} : vector<8x128xf32> to vector<8x32xf32>
    %cst_168 = arith.constant 5.000000e-01 : f32
    %524 = vector.broadcast %cst_168 : f32 to vector<8x32xf32>
    %525 = arith.mulf %524, %523 : vector<8x32xf32>
    %526 = math.tanh %525 : vector<8x32xf32>
    %cst_169 = arith.constant 5.000000e-01 : f32
    %527 = vector.broadcast %cst_169 : f32 to vector<8x32xf32>
    %528 = arith.mulf %527, %526 : vector<8x32xf32>
    %cst_170 = arith.constant 5.000000e-01 : f32
    %529 = vector.broadcast %cst_170 : f32 to vector<8x32xf32>
    %530 = arith.addf %528, %529 : vector<8x32xf32>
    %531 = arith.mulf %520, %435 : vector<8x32xf32>
    %532 = arith.mulf %512, %522 : vector<8x32xf32>
    %533 = arith.addf %531, %532 : vector<8x32xf32>
    %534 = math.tanh %533 : vector<8x32xf32>
    %535 = arith.mulf %530, %534 : vector<8x32xf32>
    %536 = vector.broadcast %459 : i32 to vector<8x1xi32>
    %537 = arith.cmpi slt, %536, %3 : vector<8x1xi32>
    %538 = vector.broadcast %460 : i32 to vector<8x1xi32>
    %539 = arith.cmpi slt, %538, %3 : vector<8x1xi32>
    %540 = arith.truncf %504 : vector<8x32xf32> to vector<8x32xbf16>
    %541 = arith.truncf %535 : vector<8x32xf32> to vector<8x32xbf16>
    %542 = vector.shape_cast %537 : vector<8x1xi1> to vector<8x1xi1>
    %543 = vector.broadcast %542 : vector<8x1xi1> to vector<8x32xi1>
    %544 = arith.select %543, %502, %432 : vector<8x32xi1>, vector<8x32xf32>
    %545 = vector.shape_cast %539 : vector<8x1xi1> to vector<8x1xi1>
    %546 = vector.broadcast %545 : vector<8x1xi1> to vector<8x32xi1>
    %547 = arith.select %546, %533, %435 : vector<8x32xi1>, vector<8x32xf32>
    %548 = vector.shape_cast %537 : vector<8x1xi1> to vector<8x1xi1>
    %549 = vector.broadcast %548 : vector<8x1xi1> to vector<8x32xi1>
    %550 = arith.select %549, %540, %438 : vector<8x32xi1>, vector<8x32xbf16>
    %551 = vector.shape_cast %539 : vector<8x1xi1> to vector<8x1xi1>
    %552 = vector.broadcast %551 : vector<8x1xi1> to vector<8x32xi1>
    %553 = arith.select %552, %541, %441 : vector<8x32xi1>, vector<8x32xbf16>
    %cst_171 = arith.constant 0.000000e+00 : bf16
    %554 = vector.broadcast %cst_171 : bf16 to vector<8x32xbf16>
    %555 = vector.shape_cast %537 : vector<8x1xi1> to vector<8x1xi1>
    %556 = vector.broadcast %555 : vector<8x1xi1> to vector<8x32xi1>
    %557 = arith.select %556, %540, %554 : vector<8x32xi1>, vector<8x32xbf16>
    %558 = arith.index_cast %c4_i32 : i32 to index
    %c0_172 = arith.constant 0 : index
    %c0_173 = arith.constant 0 : index
    %559 = vector.load %arg7[%558, %c0_172, %c0_173] : memref<12x8x32xbf16, #tpu.memory_space<vmem>>, vector<1x8x32xbf16>
    %560 = vector.shape_cast %559 : vector<1x8x32xbf16> to vector<8x32xbf16>
    %561 = vector.shape_cast %557 : vector<8x32xbf16> to vector<1x8x32xbf16>
    tpu.vector_store %arg7[%558, %c0_172, %c0_173], %561 {strides = array<i32>} : memref<12x8x32xbf16, #tpu.memory_space<vmem>>, vector<1x8x32xbf16>,
    %cst_174 = arith.constant 0.000000e+00 : bf16
    %562 = vector.broadcast %cst_174 : bf16 to vector<8x32xbf16>
    %563 = vector.shape_cast %539 : vector<8x1xi1> to vector<8x1xi1>
    %564 = vector.broadcast %563 : vector<8x1xi1> to vector<8x32xi1>
    %565 = arith.select %564, %541, %562 : vector<8x32xi1>, vector<8x32xbf16>
    %c11_i32_175 = arith.constant 11 : i32
    %566 = arith.subi %c11_i32_175, %c4_i32 : i32
    %567 = arith.index_cast %566 : i32 to index
    %c0_176 = arith.constant 0 : index
    %c0_177 = arith.constant 0 : index
    %568 = vector.load %arg8[%567, %c0_176, %c0_177] : memref<12x8x32xbf16, #tpu.memory_space<vmem>>, vector<1x8x32xbf16>
    %569 = vector.shape_cast %568 : vector<1x8x32xbf16> to vector<8x32xbf16>
    %570 = vector.shape_cast %565 : vector<8x32xbf16> to vector<1x8x32xbf16>
    tpu.vector_store %arg8[%567, %c0_176, %c0_177], %570 {strides = array<i32>} : memref<12x8x32xbf16, #tpu.memory_space<vmem>>, vector<1x8x32xbf16>,
    %c5_i32 = arith.constant 5 : i32
    %571 = arith.addi %6, %c5_i32 : i32
    %c11_i32_178 = arith.constant 11 : i32
    %572 = arith.subi %c11_i32_178, %571 : i32
    %cst_179 = arith.constant dense<0.000000e+00> : vector<8x128xf32>
    %573 = tpu.matmul %550, %4, %cst_179 {dimension_numbers = #tpu.dot_dimension_numbers<[1], [0], [0], [1], [0, 0, 1, 1], [], []>} : vector<8x32xbf16>, vector<32x128xbf16>, vector<8x128xf32> -> vector<8x128xf32>
    %cst_180 = arith.constant dense<0.000000e+00> : vector<8x128xf32>
    %574 = tpu.matmul %553, %5, %cst_180 {dimension_numbers = #tpu.dot_dimension_numbers<[1], [0], [0], [1], [0, 0, 1, 1], [], []>} : vector<8x32xbf16>, vector<32x128xbf16>, vector<8x128xf32> -> vector<8x128xf32>
    %575 = arith.index_cast %c5_i32 : i32 to index
    %c0_181 = arith.constant 0 : index
    %c0_182 = arith.constant 0 : index
    %576 = vector.load %arg3[%575, %c0_181, %c0_182] : memref<12x8x128xbf16, #tpu.memory_space<vmem>>, vector<1x8x128xbf16>
    %577 = vector.shape_cast %576 : vector<1x8x128xbf16> to vector<8x128xbf16>
    %578 = arith.extf %577 : vector<8x128xbf16> to vector<8x128xf32>
    %579 = arith.addf %578, %573 : vector<8x128xf32>
    %c11_i32_183 = arith.constant 11 : i32
    %580 = arith.subi %c11_i32_183, %c5_i32 : i32
    %581 = arith.index_cast %580 : i32 to index
    %c0_184 = arith.constant 0 : index
    %c0_185 = arith.constant 0 : index
    %582 = vector.load %arg4[%581, %c0_184, %c0_185] : memref<12x8x128xbf16, #tpu.memory_space<vmem>>, vector<1x8x128xbf16>
    %583 = vector.shape_cast %582 : vector<1x8x128xbf16> to vector<8x128xbf16>
    %584 = arith.extf %583 : vector<8x128xbf16> to vector<8x128xf32>
    %585 = arith.addf %584, %574 : vector<8x128xf32>
    %586 = vector.extract_strided_slice %579 {offsets = [0, 0], sizes = [8, 32], strides = [1, 1]} : vector<8x128xf32> to vector<8x32xf32>
    %cst_186 = arith.constant 5.000000e-01 : f32
    %587 = vector.broadcast %cst_186 : f32 to vector<8x32xf32>
    %588 = arith.mulf %587, %586 : vector<8x32xf32>
    %589 = math.tanh %588 : vector<8x32xf32>
    %cst_187 = arith.constant 5.000000e-01 : f32
    %590 = vector.broadcast %cst_187 : f32 to vector<8x32xf32>
    %591 = arith.mulf %590, %589 : vector<8x32xf32>
    %cst_188 = arith.constant 5.000000e-01 : f32
    %592 = vector.broadcast %cst_188 : f32 to vector<8x32xf32>
    %593 = arith.addf %591, %592 : vector<8x32xf32>
    %594 = vector.extract_strided_slice %579 {offsets = [0, 32], sizes = [8, 32], strides = [1, 1]} : vector<8x128xf32> to vector<8x32xf32>
    %cst_189 = arith.constant 5.000000e-01 : f32
    %595 = vector.broadcast %cst_189 : f32 to vector<8x32xf32>
    %596 = arith.mulf %595, %594 : vector<8x32xf32>
    %597 = math.tanh %596 : vector<8x32xf32>
    %cst_190 = arith.constant 5.000000e-01 : f32
    %598 = vector.broadcast %cst_190 : f32 to vector<8x32xf32>
    %599 = arith.mulf %598, %597 : vector<8x32xf32>
    %cst_191 = arith.constant 5.000000e-01 : f32
    %600 = vector.broadcast %cst_191 : f32 to vector<8x32xf32>
    %601 = arith.addf %599, %600 : vector<8x32xf32>
    %602 = vector.extract_strided_slice %579 {offsets = [0, 64], sizes = [8, 32], strides = [1, 1]} : vector<8x128xf32> to vector<8x32xf32>
    %603 = math.tanh %602 : vector<8x32xf32>
    %604 = vector.extract_strided_slice %579 {offsets = [0, 96], sizes = [8, 32], strides = [1, 1]} : vector<8x128xf32> to vector<8x32xf32>
    %cst_192 = arith.constant 5.000000e-01 : f32
    %605 = vector.broadcast %cst_192 : f32 to vector<8x32xf32>
    %606 = arith.mulf %605, %604 : vector<8x32xf32>
    %607 = math.tanh %606 : vector<8x32xf32>
    %cst_193 = arith.constant 5.000000e-01 : f32
    %608 = vector.broadcast %cst_193 : f32 to vector<8x32xf32>
    %609 = arith.mulf %608, %607 : vector<8x32xf32>
    %cst_194 = arith.constant 5.000000e-01 : f32
    %610 = vector.broadcast %cst_194 : f32 to vector<8x32xf32>
    %611 = arith.addf %609, %610 : vector<8x32xf32>
    %612 = arith.mulf %601, %544 : vector<8x32xf32>
    %613 = arith.mulf %593, %603 : vector<8x32xf32>
    %614 = arith.addf %612, %613 : vector<8x32xf32>
    %615 = math.tanh %614 : vector<8x32xf32>
    %616 = arith.mulf %611, %615 : vector<8x32xf32>
    %617 = vector.extract_strided_slice %585 {offsets = [0, 0], sizes = [8, 32], strides = [1, 1]} : vector<8x128xf32> to vector<8x32xf32>
    %cst_195 = arith.constant 5.000000e-01 : f32
    %618 = vector.broadcast %cst_195 : f32 to vector<8x32xf32>
    %619 = arith.mulf %618, %617 : vector<8x32xf32>
    %620 = math.tanh %619 : vector<8x32xf32>
    %cst_196 = arith.constant 5.000000e-01 : f32
    %621 = vector.broadcast %cst_196 : f32 to vector<8x32xf32>
    %622 = arith.mulf %621, %620 : vector<8x32xf32>
    %cst_197 = arith.constant 5.000000e-01 : f32
    %623 = vector.broadcast %cst_197 : f32 to vector<8x32xf32>
    %624 = arith.addf %622, %623 : vector<8x32xf32>
    %625 = vector.extract_strided_slice %585 {offsets = [0, 32], sizes = [8, 32], strides = [1, 1]} : vector<8x128xf32> to vector<8x32xf32>
    %cst_198 = arith.constant 5.000000e-01 : f32
    %626 = vector.broadcast %cst_198 : f32 to vector<8x32xf32>
    %627 = arith.mulf %626, %625 : vector<8x32xf32>
    %628 = math.tanh %627 : vector<8x32xf32>
    %cst_199 = arith.constant 5.000000e-01 : f32
    %629 = vector.broadcast %cst_199 : f32 to vector<8x32xf32>
    %630 = arith.mulf %629, %628 : vector<8x32xf32>
    %cst_200 = arith.constant 5.000000e-01 : f32
    %631 = vector.broadcast %cst_200 : f32 to vector<8x32xf32>
    %632 = arith.addf %630, %631 : vector<8x32xf32>
    %633 = vector.extract_strided_slice %585 {offsets = [0, 64], sizes = [8, 32], strides = [1, 1]} : vector<8x128xf32> to vector<8x32xf32>
    %634 = math.tanh %633 : vector<8x32xf32>
    %635 = vector.extract_strided_slice %585 {offsets = [0, 96], sizes = [8, 32], strides = [1, 1]} : vector<8x128xf32> to vector<8x32xf32>
    %cst_201 = arith.constant 5.000000e-01 : f32
    %636 = vector.broadcast %cst_201 : f32 to vector<8x32xf32>
    %637 = arith.mulf %636, %635 : vector<8x32xf32>
    %638 = math.tanh %637 : vector<8x32xf32>
    %cst_202 = arith.constant 5.000000e-01 : f32
    %639 = vector.broadcast %cst_202 : f32 to vector<8x32xf32>
    %640 = arith.mulf %639, %638 : vector<8x32xf32>
    %cst_203 = arith.constant 5.000000e-01 : f32
    %641 = vector.broadcast %cst_203 : f32 to vector<8x32xf32>
    %642 = arith.addf %640, %641 : vector<8x32xf32>
    %643 = arith.mulf %632, %547 : vector<8x32xf32>
    %644 = arith.mulf %624, %634 : vector<8x32xf32>
    %645 = arith.addf %643, %644 : vector<8x32xf32>
    %646 = math.tanh %645 : vector<8x32xf32>
    %647 = arith.mulf %642, %646 : vector<8x32xf32>
    %648 = vector.broadcast %571 : i32 to vector<8x1xi32>
    %649 = arith.cmpi slt, %648, %3 : vector<8x1xi32>
    %650 = vector.broadcast %572 : i32 to vector<8x1xi32>
    %651 = arith.cmpi slt, %650, %3 : vector<8x1xi32>
    %652 = arith.truncf %616 : vector<8x32xf32> to vector<8x32xbf16>
    %653 = arith.truncf %647 : vector<8x32xf32> to vector<8x32xbf16>
    %654 = vector.shape_cast %649 : vector<8x1xi1> to vector<8x1xi1>
    %655 = vector.broadcast %654 : vector<8x1xi1> to vector<8x32xi1>
    %656 = arith.select %655, %614, %544 : vector<8x32xi1>, vector<8x32xf32>
    %657 = vector.shape_cast %651 : vector<8x1xi1> to vector<8x1xi1>
    %658 = vector.broadcast %657 : vector<8x1xi1> to vector<8x32xi1>
    %659 = arith.select %658, %645, %547 : vector<8x32xi1>, vector<8x32xf32>
    %660 = vector.shape_cast %649 : vector<8x1xi1> to vector<8x1xi1>
    %661 = vector.broadcast %660 : vector<8x1xi1> to vector<8x32xi1>
    %662 = arith.select %661, %652, %550 : vector<8x32xi1>, vector<8x32xbf16>
    %663 = vector.shape_cast %651 : vector<8x1xi1> to vector<8x1xi1>
    %664 = vector.broadcast %663 : vector<8x1xi1> to vector<8x32xi1>
    %665 = arith.select %664, %653, %553 : vector<8x32xi1>, vector<8x32xbf16>
    %cst_204 = arith.constant 0.000000e+00 : bf16
    %666 = vector.broadcast %cst_204 : bf16 to vector<8x32xbf16>
    %667 = vector.shape_cast %649 : vector<8x1xi1> to vector<8x1xi1>
    %668 = vector.broadcast %667 : vector<8x1xi1> to vector<8x32xi1>
    %669 = arith.select %668, %652, %666 : vector<8x32xi1>, vector<8x32xbf16>
    %670 = arith.index_cast %c5_i32 : i32 to index
    %c0_205 = arith.constant 0 : index
    %c0_206 = arith.constant 0 : index
    %671 = vector.load %arg7[%670, %c0_205, %c0_206] : memref<12x8x32xbf16, #tpu.memory_space<vmem>>, vector<1x8x32xbf16>
    %672 = vector.shape_cast %671 : vector<1x8x32xbf16> to vector<8x32xbf16>
    %673 = vector.shape_cast %669 : vector<8x32xbf16> to vector<1x8x32xbf16>
    tpu.vector_store %arg7[%670, %c0_205, %c0_206], %673 {strides = array<i32>} : memref<12x8x32xbf16, #tpu.memory_space<vmem>>, vector<1x8x32xbf16>,
    %cst_207 = arith.constant 0.000000e+00 : bf16
    %674 = vector.broadcast %cst_207 : bf16 to vector<8x32xbf16>
    %675 = vector.shape_cast %651 : vector<8x1xi1> to vector<8x1xi1>
    %676 = vector.broadcast %675 : vector<8x1xi1> to vector<8x32xi1>
    %677 = arith.select %676, %653, %674 : vector<8x32xi1>, vector<8x32xbf16>
    %c11_i32_208 = arith.constant 11 : i32
    %678 = arith.subi %c11_i32_208, %c5_i32 : i32
    %679 = arith.index_cast %678 : i32 to index
    %c0_209 = arith.constant 0 : index
    %c0_210 = arith.constant 0 : index
    %680 = vector.load %arg8[%679, %c0_209, %c0_210] : memref<12x8x32xbf16, #tpu.memory_space<vmem>>, vector<1x8x32xbf16>
    %681 = vector.shape_cast %680 : vector<1x8x32xbf16> to vector<8x32xbf16>
    %682 = vector.shape_cast %677 : vector<8x32xbf16> to vector<1x8x32xbf16>
    tpu.vector_store %arg8[%679, %c0_209, %c0_210], %682 {strides = array<i32>} : memref<12x8x32xbf16, #tpu.memory_space<vmem>>, vector<1x8x32xbf16>,
    %c6_i32 = arith.constant 6 : i32
    %683 = arith.addi %6, %c6_i32 : i32
    %c11_i32_211 = arith.constant 11 : i32
    %684 = arith.subi %c11_i32_211, %683 : i32
    %cst_212 = arith.constant dense<0.000000e+00> : vector<8x128xf32>
    %685 = tpu.matmul %662, %4, %cst_212 {dimension_numbers = #tpu.dot_dimension_numbers<[1], [0], [0], [1], [0, 0, 1, 1], [], []>} : vector<8x32xbf16>, vector<32x128xbf16>, vector<8x128xf32> -> vector<8x128xf32>
    %cst_213 = arith.constant dense<0.000000e+00> : vector<8x128xf32>
    %686 = tpu.matmul %665, %5, %cst_213 {dimension_numbers = #tpu.dot_dimension_numbers<[1], [0], [0], [1], [0, 0, 1, 1], [], []>} : vector<8x32xbf16>, vector<32x128xbf16>, vector<8x128xf32> -> vector<8x128xf32>
    %687 = arith.index_cast %c6_i32 : i32 to index
    %c0_214 = arith.constant 0 : index
    %c0_215 = arith.constant 0 : index
    %688 = vector.load %arg3[%687, %c0_214, %c0_215] : memref<12x8x128xbf16, #tpu.memory_space<vmem>>, vector<1x8x128xbf16>
    %689 = vector.shape_cast %688 : vector<1x8x128xbf16> to vector<8x128xbf16>
    %690 = arith.extf %689 : vector<8x128xbf16> to vector<8x128xf32>
    %691 = arith.addf %690, %685 : vector<8x128xf32>
    %c11_i32_216 = arith.constant 11 : i32
    %692 = arith.subi %c11_i32_216, %c6_i32 : i32
    %693 = arith.index_cast %692 : i32 to index
    %c0_217 = arith.constant 0 : index
    %c0_218 = arith.constant 0 : index
    %694 = vector.load %arg4[%693, %c0_217, %c0_218] : memref<12x8x128xbf16, #tpu.memory_space<vmem>>, vector<1x8x128xbf16>
    %695 = vector.shape_cast %694 : vector<1x8x128xbf16> to vector<8x128xbf16>
    %696 = arith.extf %695 : vector<8x128xbf16> to vector<8x128xf32>
    %697 = arith.addf %696, %686 : vector<8x128xf32>
    %698 = vector.extract_strided_slice %691 {offsets = [0, 0], sizes = [8, 32], strides = [1, 1]} : vector<8x128xf32> to vector<8x32xf32>
    %cst_219 = arith.constant 5.000000e-01 : f32
    %699 = vector.broadcast %cst_219 : f32 to vector<8x32xf32>
    %700 = arith.mulf %699, %698 : vector<8x32xf32>
    %701 = math.tanh %700 : vector<8x32xf32>
    %cst_220 = arith.constant 5.000000e-01 : f32
    %702 = vector.broadcast %cst_220 : f32 to vector<8x32xf32>
    %703 = arith.mulf %702, %701 : vector<8x32xf32>
    %cst_221 = arith.constant 5.000000e-01 : f32
    %704 = vector.broadcast %cst_221 : f32 to vector<8x32xf32>
    %705 = arith.addf %703, %704 : vector<8x32xf32>
    %706 = vector.extract_strided_slice %691 {offsets = [0, 32], sizes = [8, 32], strides = [1, 1]} : vector<8x128xf32> to vector<8x32xf32>
    %cst_222 = arith.constant 5.000000e-01 : f32
    %707 = vector.broadcast %cst_222 : f32 to vector<8x32xf32>
    %708 = arith.mulf %707, %706 : vector<8x32xf32>
    %709 = math.tanh %708 : vector<8x32xf32>
    %cst_223 = arith.constant 5.000000e-01 : f32
    %710 = vector.broadcast %cst_223 : f32 to vector<8x32xf32>
    %711 = arith.mulf %710, %709 : vector<8x32xf32>
    %cst_224 = arith.constant 5.000000e-01 : f32
    %712 = vector.broadcast %cst_224 : f32 to vector<8x32xf32>
    %713 = arith.addf %711, %712 : vector<8x32xf32>
    %714 = vector.extract_strided_slice %691 {offsets = [0, 64], sizes = [8, 32], strides = [1, 1]} : vector<8x128xf32> to vector<8x32xf32>
    %715 = math.tanh %714 : vector<8x32xf32>
    %716 = vector.extract_strided_slice %691 {offsets = [0, 96], sizes = [8, 32], strides = [1, 1]} : vector<8x128xf32> to vector<8x32xf32>
    %cst_225 = arith.constant 5.000000e-01 : f32
    %717 = vector.broadcast %cst_225 : f32 to vector<8x32xf32>
    %718 = arith.mulf %717, %716 : vector<8x32xf32>
    %719 = math.tanh %718 : vector<8x32xf32>
    %cst_226 = arith.constant 5.000000e-01 : f32
    %720 = vector.broadcast %cst_226 : f32 to vector<8x32xf32>
    %721 = arith.mulf %720, %719 : vector<8x32xf32>
    %cst_227 = arith.constant 5.000000e-01 : f32
    %722 = vector.broadcast %cst_227 : f32 to vector<8x32xf32>
    %723 = arith.addf %721, %722 : vector<8x32xf32>
    %724 = arith.mulf %713, %656 : vector<8x32xf32>
    %725 = arith.mulf %705, %715 : vector<8x32xf32>
    %726 = arith.addf %724, %725 : vector<8x32xf32>
    %727 = math.tanh %726 : vector<8x32xf32>
    %728 = arith.mulf %723, %727 : vector<8x32xf32>
    %729 = vector.extract_strided_slice %697 {offsets = [0, 0], sizes = [8, 32], strides = [1, 1]} : vector<8x128xf32> to vector<8x32xf32>
    %cst_228 = arith.constant 5.000000e-01 : f32
    %730 = vector.broadcast %cst_228 : f32 to vector<8x32xf32>
    %731 = arith.mulf %730, %729 : vector<8x32xf32>
    %732 = math.tanh %731 : vector<8x32xf32>
    %cst_229 = arith.constant 5.000000e-01 : f32
    %733 = vector.broadcast %cst_229 : f32 to vector<8x32xf32>
    %734 = arith.mulf %733, %732 : vector<8x32xf32>
    %cst_230 = arith.constant 5.000000e-01 : f32
    %735 = vector.broadcast %cst_230 : f32 to vector<8x32xf32>
    %736 = arith.addf %734, %735 : vector<8x32xf32>
    %737 = vector.extract_strided_slice %697 {offsets = [0, 32], sizes = [8, 32], strides = [1, 1]} : vector<8x128xf32> to vector<8x32xf32>
    %cst_231 = arith.constant 5.000000e-01 : f32
    %738 = vector.broadcast %cst_231 : f32 to vector<8x32xf32>
    %739 = arith.mulf %738, %737 : vector<8x32xf32>
    %740 = math.tanh %739 : vector<8x32xf32>
    %cst_232 = arith.constant 5.000000e-01 : f32
    %741 = vector.broadcast %cst_232 : f32 to vector<8x32xf32>
    %742 = arith.mulf %741, %740 : vector<8x32xf32>
    %cst_233 = arith.constant 5.000000e-01 : f32
    %743 = vector.broadcast %cst_233 : f32 to vector<8x32xf32>
    %744 = arith.addf %742, %743 : vector<8x32xf32>
    %745 = vector.extract_strided_slice %697 {offsets = [0, 64], sizes = [8, 32], strides = [1, 1]} : vector<8x128xf32> to vector<8x32xf32>
    %746 = math.tanh %745 : vector<8x32xf32>
    %747 = vector.extract_strided_slice %697 {offsets = [0, 96], sizes = [8, 32], strides = [1, 1]} : vector<8x128xf32> to vector<8x32xf32>
    %cst_234 = arith.constant 5.000000e-01 : f32
    %748 = vector.broadcast %cst_234 : f32 to vector<8x32xf32>
    %749 = arith.mulf %748, %747 : vector<8x32xf32>
    %750 = math.tanh %749 : vector<8x32xf32>
    %cst_235 = arith.constant 5.000000e-01 : f32
    %751 = vector.broadcast %cst_235 : f32 to vector<8x32xf32>
    %752 = arith.mulf %751, %750 : vector<8x32xf32>
    %cst_236 = arith.constant 5.000000e-01 : f32
    %753 = vector.broadcast %cst_236 : f32 to vector<8x32xf32>
    %754 = arith.addf %752, %753 : vector<8x32xf32>
    %755 = arith.mulf %744, %659 : vector<8x32xf32>
    %756 = arith.mulf %736, %746 : vector<8x32xf32>
    %757 = arith.addf %755, %756 : vector<8x32xf32>
    %758 = math.tanh %757 : vector<8x32xf32>
    %759 = arith.mulf %754, %758 : vector<8x32xf32>
    %760 = vector.broadcast %683 : i32 to vector<8x1xi32>
    %761 = arith.cmpi slt, %760, %3 : vector<8x1xi32>
    %762 = vector.broadcast %684 : i32 to vector<8x1xi32>
    %763 = arith.cmpi slt, %762, %3 : vector<8x1xi32>
    %764 = arith.truncf %728 : vector<8x32xf32> to vector<8x32xbf16>
    %765 = arith.truncf %759 : vector<8x32xf32> to vector<8x32xbf16>
    %766 = vector.shape_cast %761 : vector<8x1xi1> to vector<8x1xi1>
    %767 = vector.broadcast %766 : vector<8x1xi1> to vector<8x32xi1>
    %768 = arith.select %767, %726, %656 : vector<8x32xi1>, vector<8x32xf32>
    %769 = vector.shape_cast %763 : vector<8x1xi1> to vector<8x1xi1>
    %770 = vector.broadcast %769 : vector<8x1xi1> to vector<8x32xi1>
    %771 = arith.select %770, %757, %659 : vector<8x32xi1>, vector<8x32xf32>
    %772 = vector.shape_cast %761 : vector<8x1xi1> to vector<8x1xi1>
    %773 = vector.broadcast %772 : vector<8x1xi1> to vector<8x32xi1>
    %774 = arith.select %773, %764, %662 : vector<8x32xi1>, vector<8x32xbf16>
    %775 = vector.shape_cast %763 : vector<8x1xi1> to vector<8x1xi1>
    %776 = vector.broadcast %775 : vector<8x1xi1> to vector<8x32xi1>
    %777 = arith.select %776, %765, %665 : vector<8x32xi1>, vector<8x32xbf16>
    %cst_237 = arith.constant 0.000000e+00 : bf16
    %778 = vector.broadcast %cst_237 : bf16 to vector<8x32xbf16>
    %779 = vector.shape_cast %761 : vector<8x1xi1> to vector<8x1xi1>
    %780 = vector.broadcast %779 : vector<8x1xi1> to vector<8x32xi1>
    %781 = arith.select %780, %764, %778 : vector<8x32xi1>, vector<8x32xbf16>
    %782 = arith.index_cast %c6_i32 : i32 to index
    %c0_238 = arith.constant 0 : index
    %c0_239 = arith.constant 0 : index
    %783 = vector.load %arg7[%782, %c0_238, %c0_239] : memref<12x8x32xbf16, #tpu.memory_space<vmem>>, vector<1x8x32xbf16>
    %784 = vector.shape_cast %783 : vector<1x8x32xbf16> to vector<8x32xbf16>
    %785 = vector.shape_cast %781 : vector<8x32xbf16> to vector<1x8x32xbf16>
    tpu.vector_store %arg7[%782, %c0_238, %c0_239], %785 {strides = array<i32>} : memref<12x8x32xbf16, #tpu.memory_space<vmem>>, vector<1x8x32xbf16>,
    %cst_240 = arith.constant 0.000000e+00 : bf16
    %786 = vector.broadcast %cst_240 : bf16 to vector<8x32xbf16>
    %787 = vector.shape_cast %763 : vector<8x1xi1> to vector<8x1xi1>
    %788 = vector.broadcast %787 : vector<8x1xi1> to vector<8x32xi1>
    %789 = arith.select %788, %765, %786 : vector<8x32xi1>, vector<8x32xbf16>
    %c11_i32_241 = arith.constant 11 : i32
    %790 = arith.subi %c11_i32_241, %c6_i32 : i32
    %791 = arith.index_cast %790 : i32 to index
    %c0_242 = arith.constant 0 : index
    %c0_243 = arith.constant 0 : index
    %792 = vector.load %arg8[%791, %c0_242, %c0_243] : memref<12x8x32xbf16, #tpu.memory_space<vmem>>, vector<1x8x32xbf16>
    %793 = vector.shape_cast %792 : vector<1x8x32xbf16> to vector<8x32xbf16>
    %794 = vector.shape_cast %789 : vector<8x32xbf16> to vector<1x8x32xbf16>
    tpu.vector_store %arg8[%791, %c0_242, %c0_243], %794 {strides = array<i32>} : memref<12x8x32xbf16, #tpu.memory_space<vmem>>, vector<1x8x32xbf16>,
    %c7_i32 = arith.constant 7 : i32
    %795 = arith.addi %6, %c7_i32 : i32
    %c11_i32_244 = arith.constant 11 : i32
    %796 = arith.subi %c11_i32_244, %795 : i32
    %cst_245 = arith.constant dense<0.000000e+00> : vector<8x128xf32>
    %797 = tpu.matmul %774, %4, %cst_245 {dimension_numbers = #tpu.dot_dimension_numbers<[1], [0], [0], [1], [0, 0, 1, 1], [], []>} : vector<8x32xbf16>, vector<32x128xbf16>, vector<8x128xf32> -> vector<8x128xf32>
    %cst_246 = arith.constant dense<0.000000e+00> : vector<8x128xf32>
    %798 = tpu.matmul %777, %5, %cst_246 {dimension_numbers = #tpu.dot_dimension_numbers<[1], [0], [0], [1], [0, 0, 1, 1], [], []>} : vector<8x32xbf16>, vector<32x128xbf16>, vector<8x128xf32> -> vector<8x128xf32>
    %799 = arith.index_cast %c7_i32 : i32 to index
    %c0_247 = arith.constant 0 : index
    %c0_248 = arith.constant 0 : index
    %800 = vector.load %arg3[%799, %c0_247, %c0_248] : memref<12x8x128xbf16, #tpu.memory_space<vmem>>, vector<1x8x128xbf16>
    %801 = vector.shape_cast %800 : vector<1x8x128xbf16> to vector<8x128xbf16>
    %802 = arith.extf %801 : vector<8x128xbf16> to vector<8x128xf32>
    %803 = arith.addf %802, %797 : vector<8x128xf32>
    %c11_i32_249 = arith.constant 11 : i32
    %804 = arith.subi %c11_i32_249, %c7_i32 : i32
    %805 = arith.index_cast %804 : i32 to index
    %c0_250 = arith.constant 0 : index
    %c0_251 = arith.constant 0 : index
    %806 = vector.load %arg4[%805, %c0_250, %c0_251] : memref<12x8x128xbf16, #tpu.memory_space<vmem>>, vector<1x8x128xbf16>
    %807 = vector.shape_cast %806 : vector<1x8x128xbf16> to vector<8x128xbf16>
    %808 = arith.extf %807 : vector<8x128xbf16> to vector<8x128xf32>
    %809 = arith.addf %808, %798 : vector<8x128xf32>
    %810 = vector.extract_strided_slice %803 {offsets = [0, 0], sizes = [8, 32], strides = [1, 1]} : vector<8x128xf32> to vector<8x32xf32>
    %cst_252 = arith.constant 5.000000e-01 : f32
    %811 = vector.broadcast %cst_252 : f32 to vector<8x32xf32>
    %812 = arith.mulf %811, %810 : vector<8x32xf32>
    %813 = math.tanh %812 : vector<8x32xf32>
    %cst_253 = arith.constant 5.000000e-01 : f32
    %814 = vector.broadcast %cst_253 : f32 to vector<8x32xf32>
    %815 = arith.mulf %814, %813 : vector<8x32xf32>
    %cst_254 = arith.constant 5.000000e-01 : f32
    %816 = vector.broadcast %cst_254 : f32 to vector<8x32xf32>
    %817 = arith.addf %815, %816 : vector<8x32xf32>
    %818 = vector.extract_strided_slice %803 {offsets = [0, 32], sizes = [8, 32], strides = [1, 1]} : vector<8x128xf32> to vector<8x32xf32>
    %cst_255 = arith.constant 5.000000e-01 : f32
    %819 = vector.broadcast %cst_255 : f32 to vector<8x32xf32>
    %820 = arith.mulf %819, %818 : vector<8x32xf32>
    %821 = math.tanh %820 : vector<8x32xf32>
    %cst_256 = arith.constant 5.000000e-01 : f32
    %822 = vector.broadcast %cst_256 : f32 to vector<8x32xf32>
    %823 = arith.mulf %822, %821 : vector<8x32xf32>
    %cst_257 = arith.constant 5.000000e-01 : f32
    %824 = vector.broadcast %cst_257 : f32 to vector<8x32xf32>
    %825 = arith.addf %823, %824 : vector<8x32xf32>
    %826 = vector.extract_strided_slice %803 {offsets = [0, 64], sizes = [8, 32], strides = [1, 1]} : vector<8x128xf32> to vector<8x32xf32>
    %827 = math.tanh %826 : vector<8x32xf32>
    %828 = vector.extract_strided_slice %803 {offsets = [0, 96], sizes = [8, 32], strides = [1, 1]} : vector<8x128xf32> to vector<8x32xf32>
    %cst_258 = arith.constant 5.000000e-01 : f32
    %829 = vector.broadcast %cst_258 : f32 to vector<8x32xf32>
    %830 = arith.mulf %829, %828 : vector<8x32xf32>
    %831 = math.tanh %830 : vector<8x32xf32>
    %cst_259 = arith.constant 5.000000e-01 : f32
    %832 = vector.broadcast %cst_259 : f32 to vector<8x32xf32>
    %833 = arith.mulf %832, %831 : vector<8x32xf32>
    %cst_260 = arith.constant 5.000000e-01 : f32
    %834 = vector.broadcast %cst_260 : f32 to vector<8x32xf32>
    %835 = arith.addf %833, %834 : vector<8x32xf32>
    %836 = arith.mulf %825, %768 : vector<8x32xf32>
    %837 = arith.mulf %817, %827 : vector<8x32xf32>
    %838 = arith.addf %836, %837 : vector<8x32xf32>
    %839 = math.tanh %838 : vector<8x32xf32>
    %840 = arith.mulf %835, %839 : vector<8x32xf32>
    %841 = vector.extract_strided_slice %809 {offsets = [0, 0], sizes = [8, 32], strides = [1, 1]} : vector<8x128xf32> to vector<8x32xf32>
    %cst_261 = arith.constant 5.000000e-01 : f32
    %842 = vector.broadcast %cst_261 : f32 to vector<8x32xf32>
    %843 = arith.mulf %842, %841 : vector<8x32xf32>
    %844 = math.tanh %843 : vector<8x32xf32>
    %cst_262 = arith.constant 5.000000e-01 : f32
    %845 = vector.broadcast %cst_262 : f32 to vector<8x32xf32>
    %846 = arith.mulf %845, %844 : vector<8x32xf32>
    %cst_263 = arith.constant 5.000000e-01 : f32
    %847 = vector.broadcast %cst_263 : f32 to vector<8x32xf32>
    %848 = arith.addf %846, %847 : vector<8x32xf32>
    %849 = vector.extract_strided_slice %809 {offsets = [0, 32], sizes = [8, 32], strides = [1, 1]} : vector<8x128xf32> to vector<8x32xf32>
    %cst_264 = arith.constant 5.000000e-01 : f32
    %850 = vector.broadcast %cst_264 : f32 to vector<8x32xf32>
    %851 = arith.mulf %850, %849 : vector<8x32xf32>
    %852 = math.tanh %851 : vector<8x32xf32>
    %cst_265 = arith.constant 5.000000e-01 : f32
    %853 = vector.broadcast %cst_265 : f32 to vector<8x32xf32>
    %854 = arith.mulf %853, %852 : vector<8x32xf32>
    %cst_266 = arith.constant 5.000000e-01 : f32
    %855 = vector.broadcast %cst_266 : f32 to vector<8x32xf32>
    %856 = arith.addf %854, %855 : vector<8x32xf32>
    %857 = vector.extract_strided_slice %809 {offsets = [0, 64], sizes = [8, 32], strides = [1, 1]} : vector<8x128xf32> to vector<8x32xf32>
    %858 = math.tanh %857 : vector<8x32xf32>
    %859 = vector.extract_strided_slice %809 {offsets = [0, 96], sizes = [8, 32], strides = [1, 1]} : vector<8x128xf32> to vector<8x32xf32>
    %cst_267 = arith.constant 5.000000e-01 : f32
    %860 = vector.broadcast %cst_267 : f32 to vector<8x32xf32>
    %861 = arith.mulf %860, %859 : vector<8x32xf32>
    %862 = math.tanh %861 : vector<8x32xf32>
    %cst_268 = arith.constant 5.000000e-01 : f32
    %863 = vector.broadcast %cst_268 : f32 to vector<8x32xf32>
    %864 = arith.mulf %863, %862 : vector<8x32xf32>
    %cst_269 = arith.constant 5.000000e-01 : f32
    %865 = vector.broadcast %cst_269 : f32 to vector<8x32xf32>
    %866 = arith.addf %864, %865 : vector<8x32xf32>
    %867 = arith.mulf %856, %771 : vector<8x32xf32>
    %868 = arith.mulf %848, %858 : vector<8x32xf32>
    %869 = arith.addf %867, %868 : vector<8x32xf32>
    %870 = math.tanh %869 : vector<8x32xf32>
    %871 = arith.mulf %866, %870 : vector<8x32xf32>
    %872 = vector.broadcast %795 : i32 to vector<8x1xi32>
    %873 = arith.cmpi slt, %872, %3 : vector<8x1xi32>
    %874 = vector.broadcast %796 : i32 to vector<8x1xi32>
    %875 = arith.cmpi slt, %874, %3 : vector<8x1xi32>
    %876 = arith.truncf %840 : vector<8x32xf32> to vector<8x32xbf16>
    %877 = arith.truncf %871 : vector<8x32xf32> to vector<8x32xbf16>
    %878 = vector.shape_cast %873 : vector<8x1xi1> to vector<8x1xi1>
    %879 = vector.broadcast %878 : vector<8x1xi1> to vector<8x32xi1>
    %880 = arith.select %879, %838, %768 : vector<8x32xi1>, vector<8x32xf32>
    %881 = vector.shape_cast %875 : vector<8x1xi1> to vector<8x1xi1>
    %882 = vector.broadcast %881 : vector<8x1xi1> to vector<8x32xi1>
    %883 = arith.select %882, %869, %771 : vector<8x32xi1>, vector<8x32xf32>
    %884 = vector.shape_cast %873 : vector<8x1xi1> to vector<8x1xi1>
    %885 = vector.broadcast %884 : vector<8x1xi1> to vector<8x32xi1>
    %886 = arith.select %885, %876, %774 : vector<8x32xi1>, vector<8x32xbf16>
    %887 = vector.shape_cast %875 : vector<8x1xi1> to vector<8x1xi1>
    %888 = vector.broadcast %887 : vector<8x1xi1> to vector<8x32xi1>
    %889 = arith.select %888, %877, %777 : vector<8x32xi1>, vector<8x32xbf16>
    %cst_270 = arith.constant 0.000000e+00 : bf16
    %890 = vector.broadcast %cst_270 : bf16 to vector<8x32xbf16>
    %891 = vector.shape_cast %873 : vector<8x1xi1> to vector<8x1xi1>
    %892 = vector.broadcast %891 : vector<8x1xi1> to vector<8x32xi1>
    %893 = arith.select %892, %876, %890 : vector<8x32xi1>, vector<8x32xbf16>
    %894 = arith.index_cast %c7_i32 : i32 to index
    %c0_271 = arith.constant 0 : index
    %c0_272 = arith.constant 0 : index
    %895 = vector.load %arg7[%894, %c0_271, %c0_272] : memref<12x8x32xbf16, #tpu.memory_space<vmem>>, vector<1x8x32xbf16>
    %896 = vector.shape_cast %895 : vector<1x8x32xbf16> to vector<8x32xbf16>
    %897 = vector.shape_cast %893 : vector<8x32xbf16> to vector<1x8x32xbf16>
    tpu.vector_store %arg7[%894, %c0_271, %c0_272], %897 {strides = array<i32>} : memref<12x8x32xbf16, #tpu.memory_space<vmem>>, vector<1x8x32xbf16>,
    %cst_273 = arith.constant 0.000000e+00 : bf16
    %898 = vector.broadcast %cst_273 : bf16 to vector<8x32xbf16>
    %899 = vector.shape_cast %875 : vector<8x1xi1> to vector<8x1xi1>
    %900 = vector.broadcast %899 : vector<8x1xi1> to vector<8x32xi1>
    %901 = arith.select %900, %877, %898 : vector<8x32xi1>, vector<8x32xbf16>
    %c11_i32_274 = arith.constant 11 : i32
    %902 = arith.subi %c11_i32_274, %c7_i32 : i32
    %903 = arith.index_cast %902 : i32 to index
    %c0_275 = arith.constant 0 : index
    %c0_276 = arith.constant 0 : index
    %904 = vector.load %arg8[%903, %c0_275, %c0_276] : memref<12x8x32xbf16, #tpu.memory_space<vmem>>, vector<1x8x32xbf16>
    %905 = vector.shape_cast %904 : vector<1x8x32xbf16> to vector<8x32xbf16>
    %906 = vector.shape_cast %901 : vector<8x32xbf16> to vector<1x8x32xbf16>
    tpu.vector_store %arg8[%903, %c0_275, %c0_276], %906 {strides = array<i32>} : memref<12x8x32xbf16, #tpu.memory_space<vmem>>, vector<1x8x32xbf16>,
    %c8_i32 = arith.constant 8 : i32
    %907 = arith.addi %6, %c8_i32 : i32
    %c11_i32_277 = arith.constant 11 : i32
    %908 = arith.subi %c11_i32_277, %907 : i32
    %cst_278 = arith.constant dense<0.000000e+00> : vector<8x128xf32>
    %909 = tpu.matmul %886, %4, %cst_278 {dimension_numbers = #tpu.dot_dimension_numbers<[1], [0], [0], [1], [0, 0, 1, 1], [], []>} : vector<8x32xbf16>, vector<32x128xbf16>, vector<8x128xf32> -> vector<8x128xf32>
    %cst_279 = arith.constant dense<0.000000e+00> : vector<8x128xf32>
    %910 = tpu.matmul %889, %5, %cst_279 {dimension_numbers = #tpu.dot_dimension_numbers<[1], [0], [0], [1], [0, 0, 1, 1], [], []>} : vector<8x32xbf16>, vector<32x128xbf16>, vector<8x128xf32> -> vector<8x128xf32>
    %911 = arith.index_cast %c8_i32 : i32 to index
    %c0_280 = arith.constant 0 : index
    %c0_281 = arith.constant 0 : index
    %912 = vector.load %arg3[%911, %c0_280, %c0_281] : memref<12x8x128xbf16, #tpu.memory_space<vmem>>, vector<1x8x128xbf16>
    %913 = vector.shape_cast %912 : vector<1x8x128xbf16> to vector<8x128xbf16>
    %914 = arith.extf %913 : vector<8x128xbf16> to vector<8x128xf32>
    %915 = arith.addf %914, %909 : vector<8x128xf32>
    %c11_i32_282 = arith.constant 11 : i32
    %916 = arith.subi %c11_i32_282, %c8_i32 : i32
    %917 = arith.index_cast %916 : i32 to index
    %c0_283 = arith.constant 0 : index
    %c0_284 = arith.constant 0 : index
    %918 = vector.load %arg4[%917, %c0_283, %c0_284] : memref<12x8x128xbf16, #tpu.memory_space<vmem>>, vector<1x8x128xbf16>
    %919 = vector.shape_cast %918 : vector<1x8x128xbf16> to vector<8x128xbf16>
    %920 = arith.extf %919 : vector<8x128xbf16> to vector<8x128xf32>
    %921 = arith.addf %920, %910 : vector<8x128xf32>
    %922 = vector.extract_strided_slice %915 {offsets = [0, 0], sizes = [8, 32], strides = [1, 1]} : vector<8x128xf32> to vector<8x32xf32>
    %cst_285 = arith.constant 5.000000e-01 : f32
    %923 = vector.broadcast %cst_285 : f32 to vector<8x32xf32>
    %924 = arith.mulf %923, %922 : vector<8x32xf32>
    %925 = math.tanh %924 : vector<8x32xf32>
    %cst_286 = arith.constant 5.000000e-01 : f32
    %926 = vector.broadcast %cst_286 : f32 to vector<8x32xf32>
    %927 = arith.mulf %926, %925 : vector<8x32xf32>
    %cst_287 = arith.constant 5.000000e-01 : f32
    %928 = vector.broadcast %cst_287 : f32 to vector<8x32xf32>
    %929 = arith.addf %927, %928 : vector<8x32xf32>
    %930 = vector.extract_strided_slice %915 {offsets = [0, 32], sizes = [8, 32], strides = [1, 1]} : vector<8x128xf32> to vector<8x32xf32>
    %cst_288 = arith.constant 5.000000e-01 : f32
    %931 = vector.broadcast %cst_288 : f32 to vector<8x32xf32>
    %932 = arith.mulf %931, %930 : vector<8x32xf32>
    %933 = math.tanh %932 : vector<8x32xf32>
    %cst_289 = arith.constant 5.000000e-01 : f32
    %934 = vector.broadcast %cst_289 : f32 to vector<8x32xf32>
    %935 = arith.mulf %934, %933 : vector<8x32xf32>
    %cst_290 = arith.constant 5.000000e-01 : f32
    %936 = vector.broadcast %cst_290 : f32 to vector<8x32xf32>
    %937 = arith.addf %935, %936 : vector<8x32xf32>
    %938 = vector.extract_strided_slice %915 {offsets = [0, 64], sizes = [8, 32], strides = [1, 1]} : vector<8x128xf32> to vector<8x32xf32>
    %939 = math.tanh %938 : vector<8x32xf32>
    %940 = vector.extract_strided_slice %915 {offsets = [0, 96], sizes = [8, 32], strides = [1, 1]} : vector<8x128xf32> to vector<8x32xf32>
    %cst_291 = arith.constant 5.000000e-01 : f32
    %941 = vector.broadcast %cst_291 : f32 to vector<8x32xf32>
    %942 = arith.mulf %941, %940 : vector<8x32xf32>
    %943 = math.tanh %942 : vector<8x32xf32>
    %cst_292 = arith.constant 5.000000e-01 : f32
    %944 = vector.broadcast %cst_292 : f32 to vector<8x32xf32>
    %945 = arith.mulf %944, %943 : vector<8x32xf32>
    %cst_293 = arith.constant 5.000000e-01 : f32
    %946 = vector.broadcast %cst_293 : f32 to vector<8x32xf32>
    %947 = arith.addf %945, %946 : vector<8x32xf32>
    %948 = arith.mulf %937, %880 : vector<8x32xf32>
    %949 = arith.mulf %929, %939 : vector<8x32xf32>
    %950 = arith.addf %948, %949 : vector<8x32xf32>
    %951 = math.tanh %950 : vector<8x32xf32>
    %952 = arith.mulf %947, %951 : vector<8x32xf32>
    %953 = vector.extract_strided_slice %921 {offsets = [0, 0], sizes = [8, 32], strides = [1, 1]} : vector<8x128xf32> to vector<8x32xf32>
    %cst_294 = arith.constant 5.000000e-01 : f32
    %954 = vector.broadcast %cst_294 : f32 to vector<8x32xf32>
    %955 = arith.mulf %954, %953 : vector<8x32xf32>
    %956 = math.tanh %955 : vector<8x32xf32>
    %cst_295 = arith.constant 5.000000e-01 : f32
    %957 = vector.broadcast %cst_295 : f32 to vector<8x32xf32>
    %958 = arith.mulf %957, %956 : vector<8x32xf32>
    %cst_296 = arith.constant 5.000000e-01 : f32
    %959 = vector.broadcast %cst_296 : f32 to vector<8x32xf32>
    %960 = arith.addf %958, %959 : vector<8x32xf32>
    %961 = vector.extract_strided_slice %921 {offsets = [0, 32], sizes = [8, 32], strides = [1, 1]} : vector<8x128xf32> to vector<8x32xf32>
    %cst_297 = arith.constant 5.000000e-01 : f32
    %962 = vector.broadcast %cst_297 : f32 to vector<8x32xf32>
    %963 = arith.mulf %962, %961 : vector<8x32xf32>
    %964 = math.tanh %963 : vector<8x32xf32>
    %cst_298 = arith.constant 5.000000e-01 : f32
    %965 = vector.broadcast %cst_298 : f32 to vector<8x32xf32>
    %966 = arith.mulf %965, %964 : vector<8x32xf32>
    %cst_299 = arith.constant 5.000000e-01 : f32
    %967 = vector.broadcast %cst_299 : f32 to vector<8x32xf32>
    %968 = arith.addf %966, %967 : vector<8x32xf32>
    %969 = vector.extract_strided_slice %921 {offsets = [0, 64], sizes = [8, 32], strides = [1, 1]} : vector<8x128xf32> to vector<8x32xf32>
    %970 = math.tanh %969 : vector<8x32xf32>
    %971 = vector.extract_strided_slice %921 {offsets = [0, 96], sizes = [8, 32], strides = [1, 1]} : vector<8x128xf32> to vector<8x32xf32>
    %cst_300 = arith.constant 5.000000e-01 : f32
    %972 = vector.broadcast %cst_300 : f32 to vector<8x32xf32>
    %973 = arith.mulf %972, %971 : vector<8x32xf32>
    %974 = math.tanh %973 : vector<8x32xf32>
    %cst_301 = arith.constant 5.000000e-01 : f32
    %975 = vector.broadcast %cst_301 : f32 to vector<8x32xf32>
    %976 = arith.mulf %975, %974 : vector<8x32xf32>
    %cst_302 = arith.constant 5.000000e-01 : f32
    %977 = vector.broadcast %cst_302 : f32 to vector<8x32xf32>
    %978 = arith.addf %976, %977 : vector<8x32xf32>
    %979 = arith.mulf %968, %883 : vector<8x32xf32>
    %980 = arith.mulf %960, %970 : vector<8x32xf32>
    %981 = arith.addf %979, %980 : vector<8x32xf32>
    %982 = math.tanh %981 : vector<8x32xf32>
    %983 = arith.mulf %978, %982 : vector<8x32xf32>
    %984 = vector.broadcast %907 : i32 to vector<8x1xi32>
    %985 = arith.cmpi slt, %984, %3 : vector<8x1xi32>
    %986 = vector.broadcast %908 : i32 to vector<8x1xi32>
    %987 = arith.cmpi slt, %986, %3 : vector<8x1xi32>
    %988 = arith.truncf %952 : vector<8x32xf32> to vector<8x32xbf16>
    %989 = arith.truncf %983 : vector<8x32xf32> to vector<8x32xbf16>
    %990 = vector.shape_cast %985 : vector<8x1xi1> to vector<8x1xi1>
    %991 = vector.broadcast %990 : vector<8x1xi1> to vector<8x32xi1>
    %992 = arith.select %991, %950, %880 : vector<8x32xi1>, vector<8x32xf32>
    %993 = vector.shape_cast %987 : vector<8x1xi1> to vector<8x1xi1>
    %994 = vector.broadcast %993 : vector<8x1xi1> to vector<8x32xi1>
    %995 = arith.select %994, %981, %883 : vector<8x32xi1>, vector<8x32xf32>
    %996 = vector.shape_cast %985 : vector<8x1xi1> to vector<8x1xi1>
    %997 = vector.broadcast %996 : vector<8x1xi1> to vector<8x32xi1>
    %998 = arith.select %997, %988, %886 : vector<8x32xi1>, vector<8x32xbf16>
    %999 = vector.shape_cast %987 : vector<8x1xi1> to vector<8x1xi1>
    %1000 = vector.broadcast %999 : vector<8x1xi1> to vector<8x32xi1>
    %1001 = arith.select %1000, %989, %889 : vector<8x32xi1>, vector<8x32xbf16>
    %cst_303 = arith.constant 0.000000e+00 : bf16
    %1002 = vector.broadcast %cst_303 : bf16 to vector<8x32xbf16>
    %1003 = vector.shape_cast %985 : vector<8x1xi1> to vector<8x1xi1>
    %1004 = vector.broadcast %1003 : vector<8x1xi1> to vector<8x32xi1>
    %1005 = arith.select %1004, %988, %1002 : vector<8x32xi1>, vector<8x32xbf16>
    %1006 = arith.index_cast %c8_i32 : i32 to index
    %c0_304 = arith.constant 0 : index
    %c0_305 = arith.constant 0 : index
    %1007 = vector.load %arg7[%1006, %c0_304, %c0_305] : memref<12x8x32xbf16, #tpu.memory_space<vmem>>, vector<1x8x32xbf16>
    %1008 = vector.shape_cast %1007 : vector<1x8x32xbf16> to vector<8x32xbf16>
    %1009 = vector.shape_cast %1005 : vector<8x32xbf16> to vector<1x8x32xbf16>
    tpu.vector_store %arg7[%1006, %c0_304, %c0_305], %1009 {strides = array<i32>} : memref<12x8x32xbf16, #tpu.memory_space<vmem>>, vector<1x8x32xbf16>,
    %cst_306 = arith.constant 0.000000e+00 : bf16
    %1010 = vector.broadcast %cst_306 : bf16 to vector<8x32xbf16>
    %1011 = vector.shape_cast %987 : vector<8x1xi1> to vector<8x1xi1>
    %1012 = vector.broadcast %1011 : vector<8x1xi1> to vector<8x32xi1>
    %1013 = arith.select %1012, %989, %1010 : vector<8x32xi1>, vector<8x32xbf16>
    %c11_i32_307 = arith.constant 11 : i32
    %1014 = arith.subi %c11_i32_307, %c8_i32 : i32
    %1015 = arith.index_cast %1014 : i32 to index
    %c0_308 = arith.constant 0 : index
    %c0_309 = arith.constant 0 : index
    %1016 = vector.load %arg8[%1015, %c0_308, %c0_309] : memref<12x8x32xbf16, #tpu.memory_space<vmem>>, vector<1x8x32xbf16>
    %1017 = vector.shape_cast %1016 : vector<1x8x32xbf16> to vector<8x32xbf16>
    %1018 = vector.shape_cast %1013 : vector<8x32xbf16> to vector<1x8x32xbf16>
    tpu.vector_store %arg8[%1015, %c0_308, %c0_309], %1018 {strides = array<i32>} : memref<12x8x32xbf16, #tpu.memory_space<vmem>>, vector<1x8x32xbf16>,
    %c9_i32 = arith.constant 9 : i32
    %1019 = arith.addi %6, %c9_i32 : i32
    %c11_i32_310 = arith.constant 11 : i32
    %1020 = arith.subi %c11_i32_310, %1019 : i32
    %cst_311 = arith.constant dense<0.000000e+00> : vector<8x128xf32>
    %1021 = tpu.matmul %998, %4, %cst_311 {dimension_numbers = #tpu.dot_dimension_numbers<[1], [0], [0], [1], [0, 0, 1, 1], [], []>} : vector<8x32xbf16>, vector<32x128xbf16>, vector<8x128xf32> -> vector<8x128xf32>
    %cst_312 = arith.constant dense<0.000000e+00> : vector<8x128xf32>
    %1022 = tpu.matmul %1001, %5, %cst_312 {dimension_numbers = #tpu.dot_dimension_numbers<[1], [0], [0], [1], [0, 0, 1, 1], [], []>} : vector<8x32xbf16>, vector<32x128xbf16>, vector<8x128xf32> -> vector<8x128xf32>
    %1023 = arith.index_cast %c9_i32 : i32 to index
    %c0_313 = arith.constant 0 : index
    %c0_314 = arith.constant 0 : index
    %1024 = vector.load %arg3[%1023, %c0_313, %c0_314] : memref<12x8x128xbf16, #tpu.memory_space<vmem>>, vector<1x8x128xbf16>
    %1025 = vector.shape_cast %1024 : vector<1x8x128xbf16> to vector<8x128xbf16>
    %1026 = arith.extf %1025 : vector<8x128xbf16> to vector<8x128xf32>
    %1027 = arith.addf %1026, %1021 : vector<8x128xf32>
    %c11_i32_315 = arith.constant 11 : i32
    %1028 = arith.subi %c11_i32_315, %c9_i32 : i32
    %1029 = arith.index_cast %1028 : i32 to index
    %c0_316 = arith.constant 0 : index
    %c0_317 = arith.constant 0 : index
    %1030 = vector.load %arg4[%1029, %c0_316, %c0_317] : memref<12x8x128xbf16, #tpu.memory_space<vmem>>, vector<1x8x128xbf16>
    %1031 = vector.shape_cast %1030 : vector<1x8x128xbf16> to vector<8x128xbf16>
    %1032 = arith.extf %1031 : vector<8x128xbf16> to vector<8x128xf32>
    %1033 = arith.addf %1032, %1022 : vector<8x128xf32>
    %1034 = vector.extract_strided_slice %1027 {offsets = [0, 0], sizes = [8, 32], strides = [1, 1]} : vector<8x128xf32> to vector<8x32xf32>
    %cst_318 = arith.constant 5.000000e-01 : f32
    %1035 = vector.broadcast %cst_318 : f32 to vector<8x32xf32>
    %1036 = arith.mulf %1035, %1034 : vector<8x32xf32>
    %1037 = math.tanh %1036 : vector<8x32xf32>
    %cst_319 = arith.constant 5.000000e-01 : f32
    %1038 = vector.broadcast %cst_319 : f32 to vector<8x32xf32>
    %1039 = arith.mulf %1038, %1037 : vector<8x32xf32>
    %cst_320 = arith.constant 5.000000e-01 : f32
    %1040 = vector.broadcast %cst_320 : f32 to vector<8x32xf32>
    %1041 = arith.addf %1039, %1040 : vector<8x32xf32>
    %1042 = vector.extract_strided_slice %1027 {offsets = [0, 32], sizes = [8, 32], strides = [1, 1]} : vector<8x128xf32> to vector<8x32xf32>
    %cst_321 = arith.constant 5.000000e-01 : f32
    %1043 = vector.broadcast %cst_321 : f32 to vector<8x32xf32>
    %1044 = arith.mulf %1043, %1042 : vector<8x32xf32>
    %1045 = math.tanh %1044 : vector<8x32xf32>
    %cst_322 = arith.constant 5.000000e-01 : f32
    %1046 = vector.broadcast %cst_322 : f32 to vector<8x32xf32>
    %1047 = arith.mulf %1046, %1045 : vector<8x32xf32>
    %cst_323 = arith.constant 5.000000e-01 : f32
    %1048 = vector.broadcast %cst_323 : f32 to vector<8x32xf32>
    %1049 = arith.addf %1047, %1048 : vector<8x32xf32>
    %1050 = vector.extract_strided_slice %1027 {offsets = [0, 64], sizes = [8, 32], strides = [1, 1]} : vector<8x128xf32> to vector<8x32xf32>
    %1051 = math.tanh %1050 : vector<8x32xf32>
    %1052 = vector.extract_strided_slice %1027 {offsets = [0, 96], sizes = [8, 32], strides = [1, 1]} : vector<8x128xf32> to vector<8x32xf32>
    %cst_324 = arith.constant 5.000000e-01 : f32
    %1053 = vector.broadcast %cst_324 : f32 to vector<8x32xf32>
    %1054 = arith.mulf %1053, %1052 : vector<8x32xf32>
    %1055 = math.tanh %1054 : vector<8x32xf32>
    %cst_325 = arith.constant 5.000000e-01 : f32
    %1056 = vector.broadcast %cst_325 : f32 to vector<8x32xf32>
    %1057 = arith.mulf %1056, %1055 : vector<8x32xf32>
    %cst_326 = arith.constant 5.000000e-01 : f32
    %1058 = vector.broadcast %cst_326 : f32 to vector<8x32xf32>
    %1059 = arith.addf %1057, %1058 : vector<8x32xf32>
    %1060 = arith.mulf %1049, %992 : vector<8x32xf32>
    %1061 = arith.mulf %1041, %1051 : vector<8x32xf32>
    %1062 = arith.addf %1060, %1061 : vector<8x32xf32>
    %1063 = math.tanh %1062 : vector<8x32xf32>
    %1064 = arith.mulf %1059, %1063 : vector<8x32xf32>
    %1065 = vector.extract_strided_slice %1033 {offsets = [0, 0], sizes = [8, 32], strides = [1, 1]} : vector<8x128xf32> to vector<8x32xf32>
    %cst_327 = arith.constant 5.000000e-01 : f32
    %1066 = vector.broadcast %cst_327 : f32 to vector<8x32xf32>
    %1067 = arith.mulf %1066, %1065 : vector<8x32xf32>
    %1068 = math.tanh %1067 : vector<8x32xf32>
    %cst_328 = arith.constant 5.000000e-01 : f32
    %1069 = vector.broadcast %cst_328 : f32 to vector<8x32xf32>
    %1070 = arith.mulf %1069, %1068 : vector<8x32xf32>
    %cst_329 = arith.constant 5.000000e-01 : f32
    %1071 = vector.broadcast %cst_329 : f32 to vector<8x32xf32>
    %1072 = arith.addf %1070, %1071 : vector<8x32xf32>
    %1073 = vector.extract_strided_slice %1033 {offsets = [0, 32], sizes = [8, 32], strides = [1, 1]} : vector<8x128xf32> to vector<8x32xf32>
    %cst_330 = arith.constant 5.000000e-01 : f32
    %1074 = vector.broadcast %cst_330 : f32 to vector<8x32xf32>
    %1075 = arith.mulf %1074, %1073 : vector<8x32xf32>
    %1076 = math.tanh %1075 : vector<8x32xf32>
    %cst_331 = arith.constant 5.000000e-01 : f32
    %1077 = vector.broadcast %cst_331 : f32 to vector<8x32xf32>
    %1078 = arith.mulf %1077, %1076 : vector<8x32xf32>
    %cst_332 = arith.constant 5.000000e-01 : f32
    %1079 = vector.broadcast %cst_332 : f32 to vector<8x32xf32>
    %1080 = arith.addf %1078, %1079 : vector<8x32xf32>
    %1081 = vector.extract_strided_slice %1033 {offsets = [0, 64], sizes = [8, 32], strides = [1, 1]} : vector<8x128xf32> to vector<8x32xf32>
    %1082 = math.tanh %1081 : vector<8x32xf32>
    %1083 = vector.extract_strided_slice %1033 {offsets = [0, 96], sizes = [8, 32], strides = [1, 1]} : vector<8x128xf32> to vector<8x32xf32>
    %cst_333 = arith.constant 5.000000e-01 : f32
    %1084 = vector.broadcast %cst_333 : f32 to vector<8x32xf32>
    %1085 = arith.mulf %1084, %1083 : vector<8x32xf32>
    %1086 = math.tanh %1085 : vector<8x32xf32>
    %cst_334 = arith.constant 5.000000e-01 : f32
    %1087 = vector.broadcast %cst_334 : f32 to vector<8x32xf32>
    %1088 = arith.mulf %1087, %1086 : vector<8x32xf32>
    %cst_335 = arith.constant 5.000000e-01 : f32
    %1089 = vector.broadcast %cst_335 : f32 to vector<8x32xf32>
    %1090 = arith.addf %1088, %1089 : vector<8x32xf32>
    %1091 = arith.mulf %1080, %995 : vector<8x32xf32>
    %1092 = arith.mulf %1072, %1082 : vector<8x32xf32>
    %1093 = arith.addf %1091, %1092 : vector<8x32xf32>
    %1094 = math.tanh %1093 : vector<8x32xf32>
    %1095 = arith.mulf %1090, %1094 : vector<8x32xf32>
    %1096 = vector.broadcast %1019 : i32 to vector<8x1xi32>
    %1097 = arith.cmpi slt, %1096, %3 : vector<8x1xi32>
    %1098 = vector.broadcast %1020 : i32 to vector<8x1xi32>
    %1099 = arith.cmpi slt, %1098, %3 : vector<8x1xi32>
    %1100 = arith.truncf %1064 : vector<8x32xf32> to vector<8x32xbf16>
    %1101 = arith.truncf %1095 : vector<8x32xf32> to vector<8x32xbf16>
    %1102 = vector.shape_cast %1097 : vector<8x1xi1> to vector<8x1xi1>
    %1103 = vector.broadcast %1102 : vector<8x1xi1> to vector<8x32xi1>
    %1104 = arith.select %1103, %1062, %992 : vector<8x32xi1>, vector<8x32xf32>
    %1105 = vector.shape_cast %1099 : vector<8x1xi1> to vector<8x1xi1>
    %1106 = vector.broadcast %1105 : vector<8x1xi1> to vector<8x32xi1>
    %1107 = arith.select %1106, %1093, %995 : vector<8x32xi1>, vector<8x32xf32>
    %1108 = vector.shape_cast %1097 : vector<8x1xi1> to vector<8x1xi1>
    %1109 = vector.broadcast %1108 : vector<8x1xi1> to vector<8x32xi1>
    %1110 = arith.select %1109, %1100, %998 : vector<8x32xi1>, vector<8x32xbf16>
    %1111 = vector.shape_cast %1099 : vector<8x1xi1> to vector<8x1xi1>
    %1112 = vector.broadcast %1111 : vector<8x1xi1> to vector<8x32xi1>
    %1113 = arith.select %1112, %1101, %1001 : vector<8x32xi1>, vector<8x32xbf16>
    %cst_336 = arith.constant 0.000000e+00 : bf16
    %1114 = vector.broadcast %cst_336 : bf16 to vector<8x32xbf16>
    %1115 = vector.shape_cast %1097 : vector<8x1xi1> to vector<8x1xi1>
    %1116 = vector.broadcast %1115 : vector<8x1xi1> to vector<8x32xi1>
    %1117 = arith.select %1116, %1100, %1114 : vector<8x32xi1>, vector<8x32xbf16>
    %1118 = arith.index_cast %c9_i32 : i32 to index
    %c0_337 = arith.constant 0 : index
    %c0_338 = arith.constant 0 : index
    %1119 = vector.load %arg7[%1118, %c0_337, %c0_338] : memref<12x8x32xbf16, #tpu.memory_space<vmem>>, vector<1x8x32xbf16>
    %1120 = vector.shape_cast %1119 : vector<1x8x32xbf16> to vector<8x32xbf16>
    %1121 = vector.shape_cast %1117 : vector<8x32xbf16> to vector<1x8x32xbf16>
    tpu.vector_store %arg7[%1118, %c0_337, %c0_338], %1121 {strides = array<i32>} : memref<12x8x32xbf16, #tpu.memory_space<vmem>>, vector<1x8x32xbf16>,
    %cst_339 = arith.constant 0.000000e+00 : bf16
    %1122 = vector.broadcast %cst_339 : bf16 to vector<8x32xbf16>
    %1123 = vector.shape_cast %1099 : vector<8x1xi1> to vector<8x1xi1>
    %1124 = vector.broadcast %1123 : vector<8x1xi1> to vector<8x32xi1>
    %1125 = arith.select %1124, %1101, %1122 : vector<8x32xi1>, vector<8x32xbf16>
    %c11_i32_340 = arith.constant 11 : i32
    %1126 = arith.subi %c11_i32_340, %c9_i32 : i32
    %1127 = arith.index_cast %1126 : i32 to index
    %c0_341 = arith.constant 0 : index
    %c0_342 = arith.constant 0 : index
    %1128 = vector.load %arg8[%1127, %c0_341, %c0_342] : memref<12x8x32xbf16, #tpu.memory_space<vmem>>, vector<1x8x32xbf16>
    %1129 = vector.shape_cast %1128 : vector<1x8x32xbf16> to vector<8x32xbf16>
    %1130 = vector.shape_cast %1125 : vector<8x32xbf16> to vector<1x8x32xbf16>
    tpu.vector_store %arg8[%1127, %c0_341, %c0_342], %1130 {strides = array<i32>} : memref<12x8x32xbf16, #tpu.memory_space<vmem>>, vector<1x8x32xbf16>,
    %c10_i32 = arith.constant 10 : i32
    %1131 = arith.addi %6, %c10_i32 : i32
    %c11_i32_343 = arith.constant 11 : i32
    %1132 = arith.subi %c11_i32_343, %1131 : i32
    %cst_344 = arith.constant dense<0.000000e+00> : vector<8x128xf32>
    %1133 = tpu.matmul %1110, %4, %cst_344 {dimension_numbers = #tpu.dot_dimension_numbers<[1], [0], [0], [1], [0, 0, 1, 1], [], []>} : vector<8x32xbf16>, vector<32x128xbf16>, vector<8x128xf32> -> vector<8x128xf32>
    %cst_345 = arith.constant dense<0.000000e+00> : vector<8x128xf32>
    %1134 = tpu.matmul %1113, %5, %cst_345 {dimension_numbers = #tpu.dot_dimension_numbers<[1], [0], [0], [1], [0, 0, 1, 1], [], []>} : vector<8x32xbf16>, vector<32x128xbf16>, vector<8x128xf32> -> vector<8x128xf32>
    %1135 = arith.index_cast %c10_i32 : i32 to index
    %c0_346 = arith.constant 0 : index
    %c0_347 = arith.constant 0 : index
    %1136 = vector.load %arg3[%1135, %c0_346, %c0_347] : memref<12x8x128xbf16, #tpu.memory_space<vmem>>, vector<1x8x128xbf16>
    %1137 = vector.shape_cast %1136 : vector<1x8x128xbf16> to vector<8x128xbf16>
    %1138 = arith.extf %1137 : vector<8x128xbf16> to vector<8x128xf32>
    %1139 = arith.addf %1138, %1133 : vector<8x128xf32>
    %c11_i32_348 = arith.constant 11 : i32
    %1140 = arith.subi %c11_i32_348, %c10_i32 : i32
    %1141 = arith.index_cast %1140 : i32 to index
    %c0_349 = arith.constant 0 : index
    %c0_350 = arith.constant 0 : index
    %1142 = vector.load %arg4[%1141, %c0_349, %c0_350] : memref<12x8x128xbf16, #tpu.memory_space<vmem>>, vector<1x8x128xbf16>
    %1143 = vector.shape_cast %1142 : vector<1x8x128xbf16> to vector<8x128xbf16>
    %1144 = arith.extf %1143 : vector<8x128xbf16> to vector<8x128xf32>
    %1145 = arith.addf %1144, %1134 : vector<8x128xf32>
    %1146 = vector.extract_strided_slice %1139 {offsets = [0, 0], sizes = [8, 32], strides = [1, 1]} : vector<8x128xf32> to vector<8x32xf32>
    %cst_351 = arith.constant 5.000000e-01 : f32
    %1147 = vector.broadcast %cst_351 : f32 to vector<8x32xf32>
    %1148 = arith.mulf %1147, %1146 : vector<8x32xf32>
    %1149 = math.tanh %1148 : vector<8x32xf32>
    %cst_352 = arith.constant 5.000000e-01 : f32
    %1150 = vector.broadcast %cst_352 : f32 to vector<8x32xf32>
    %1151 = arith.mulf %1150, %1149 : vector<8x32xf32>
    %cst_353 = arith.constant 5.000000e-01 : f32
    %1152 = vector.broadcast %cst_353 : f32 to vector<8x32xf32>
    %1153 = arith.addf %1151, %1152 : vector<8x32xf32>
    %1154 = vector.extract_strided_slice %1139 {offsets = [0, 32], sizes = [8, 32], strides = [1, 1]} : vector<8x128xf32> to vector<8x32xf32>
    %cst_354 = arith.constant 5.000000e-01 : f32
    %1155 = vector.broadcast %cst_354 : f32 to vector<8x32xf32>
    %1156 = arith.mulf %1155, %1154 : vector<8x32xf32>
    %1157 = math.tanh %1156 : vector<8x32xf32>
    %cst_355 = arith.constant 5.000000e-01 : f32
    %1158 = vector.broadcast %cst_355 : f32 to vector<8x32xf32>
    %1159 = arith.mulf %1158, %1157 : vector<8x32xf32>
    %cst_356 = arith.constant 5.000000e-01 : f32
    %1160 = vector.broadcast %cst_356 : f32 to vector<8x32xf32>
    %1161 = arith.addf %1159, %1160 : vector<8x32xf32>
    %1162 = vector.extract_strided_slice %1139 {offsets = [0, 64], sizes = [8, 32], strides = [1, 1]} : vector<8x128xf32> to vector<8x32xf32>
    %1163 = math.tanh %1162 : vector<8x32xf32>
    %1164 = vector.extract_strided_slice %1139 {offsets = [0, 96], sizes = [8, 32], strides = [1, 1]} : vector<8x128xf32> to vector<8x32xf32>
    %cst_357 = arith.constant 5.000000e-01 : f32
    %1165 = vector.broadcast %cst_357 : f32 to vector<8x32xf32>
    %1166 = arith.mulf %1165, %1164 : vector<8x32xf32>
    %1167 = math.tanh %1166 : vector<8x32xf32>
    %cst_358 = arith.constant 5.000000e-01 : f32
    %1168 = vector.broadcast %cst_358 : f32 to vector<8x32xf32>
    %1169 = arith.mulf %1168, %1167 : vector<8x32xf32>
    %cst_359 = arith.constant 5.000000e-01 : f32
    %1170 = vector.broadcast %cst_359 : f32 to vector<8x32xf32>
    %1171 = arith.addf %1169, %1170 : vector<8x32xf32>
    %1172 = arith.mulf %1161, %1104 : vector<8x32xf32>
    %1173 = arith.mulf %1153, %1163 : vector<8x32xf32>
    %1174 = arith.addf %1172, %1173 : vector<8x32xf32>
    %1175 = math.tanh %1174 : vector<8x32xf32>
    %1176 = arith.mulf %1171, %1175 : vector<8x32xf32>
    %1177 = vector.extract_strided_slice %1145 {offsets = [0, 0], sizes = [8, 32], strides = [1, 1]} : vector<8x128xf32> to vector<8x32xf32>
    %cst_360 = arith.constant 5.000000e-01 : f32
    %1178 = vector.broadcast %cst_360 : f32 to vector<8x32xf32>
    %1179 = arith.mulf %1178, %1177 : vector<8x32xf32>
    %1180 = math.tanh %1179 : vector<8x32xf32>
    %cst_361 = arith.constant 5.000000e-01 : f32
    %1181 = vector.broadcast %cst_361 : f32 to vector<8x32xf32>
    %1182 = arith.mulf %1181, %1180 : vector<8x32xf32>
    %cst_362 = arith.constant 5.000000e-01 : f32
    %1183 = vector.broadcast %cst_362 : f32 to vector<8x32xf32>
    %1184 = arith.addf %1182, %1183 : vector<8x32xf32>
    %1185 = vector.extract_strided_slice %1145 {offsets = [0, 32], sizes = [8, 32], strides = [1, 1]} : vector<8x128xf32> to vector<8x32xf32>
    %cst_363 = arith.constant 5.000000e-01 : f32
    %1186 = vector.broadcast %cst_363 : f32 to vector<8x32xf32>
    %1187 = arith.mulf %1186, %1185 : vector<8x32xf32>
    %1188 = math.tanh %1187 : vector<8x32xf32>
    %cst_364 = arith.constant 5.000000e-01 : f32
    %1189 = vector.broadcast %cst_364 : f32 to vector<8x32xf32>
    %1190 = arith.mulf %1189, %1188 : vector<8x32xf32>
    %cst_365 = arith.constant 5.000000e-01 : f32
    %1191 = vector.broadcast %cst_365 : f32 to vector<8x32xf32>
    %1192 = arith.addf %1190, %1191 : vector<8x32xf32>
    %1193 = vector.extract_strided_slice %1145 {offsets = [0, 64], sizes = [8, 32], strides = [1, 1]} : vector<8x128xf32> to vector<8x32xf32>
    %1194 = math.tanh %1193 : vector<8x32xf32>
    %1195 = vector.extract_strided_slice %1145 {offsets = [0, 96], sizes = [8, 32], strides = [1, 1]} : vector<8x128xf32> to vector<8x32xf32>
    %cst_366 = arith.constant 5.000000e-01 : f32
    %1196 = vector.broadcast %cst_366 : f32 to vector<8x32xf32>
    %1197 = arith.mulf %1196, %1195 : vector<8x32xf32>
    %1198 = math.tanh %1197 : vector<8x32xf32>
    %cst_367 = arith.constant 5.000000e-01 : f32
    %1199 = vector.broadcast %cst_367 : f32 to vector<8x32xf32>
    %1200 = arith.mulf %1199, %1198 : vector<8x32xf32>
    %cst_368 = arith.constant 5.000000e-01 : f32
    %1201 = vector.broadcast %cst_368 : f32 to vector<8x32xf32>
    %1202 = arith.addf %1200, %1201 : vector<8x32xf32>
    %1203 = arith.mulf %1192, %1107 : vector<8x32xf32>
    %1204 = arith.mulf %1184, %1194 : vector<8x32xf32>
    %1205 = arith.addf %1203, %1204 : vector<8x32xf32>
    %1206 = math.tanh %1205 : vector<8x32xf32>
    %1207 = arith.mulf %1202, %1206 : vector<8x32xf32>
    %1208 = vector.broadcast %1131 : i32 to vector<8x1xi32>
    %1209 = arith.cmpi slt, %1208, %3 : vector<8x1xi32>
    %1210 = vector.broadcast %1132 : i32 to vector<8x1xi32>
    %1211 = arith.cmpi slt, %1210, %3 : vector<8x1xi32>
    %1212 = arith.truncf %1176 : vector<8x32xf32> to vector<8x32xbf16>
    %1213 = arith.truncf %1207 : vector<8x32xf32> to vector<8x32xbf16>
    %1214 = vector.shape_cast %1209 : vector<8x1xi1> to vector<8x1xi1>
    %1215 = vector.broadcast %1214 : vector<8x1xi1> to vector<8x32xi1>
    %1216 = arith.select %1215, %1174, %1104 : vector<8x32xi1>, vector<8x32xf32>
    %1217 = vector.shape_cast %1211 : vector<8x1xi1> to vector<8x1xi1>
    %1218 = vector.broadcast %1217 : vector<8x1xi1> to vector<8x32xi1>
    %1219 = arith.select %1218, %1205, %1107 : vector<8x32xi1>, vector<8x32xf32>
    %1220 = vector.shape_cast %1209 : vector<8x1xi1> to vector<8x1xi1>
    %1221 = vector.broadcast %1220 : vector<8x1xi1> to vector<8x32xi1>
    %1222 = arith.select %1221, %1212, %1110 : vector<8x32xi1>, vector<8x32xbf16>
    %1223 = vector.shape_cast %1211 : vector<8x1xi1> to vector<8x1xi1>
    %1224 = vector.broadcast %1223 : vector<8x1xi1> to vector<8x32xi1>
    %1225 = arith.select %1224, %1213, %1113 : vector<8x32xi1>, vector<8x32xbf16>
    %cst_369 = arith.constant 0.000000e+00 : bf16
    %1226 = vector.broadcast %cst_369 : bf16 to vector<8x32xbf16>
    %1227 = vector.shape_cast %1209 : vector<8x1xi1> to vector<8x1xi1>
    %1228 = vector.broadcast %1227 : vector<8x1xi1> to vector<8x32xi1>
    %1229 = arith.select %1228, %1212, %1226 : vector<8x32xi1>, vector<8x32xbf16>
    %1230 = arith.index_cast %c10_i32 : i32 to index
    %c0_370 = arith.constant 0 : index
    %c0_371 = arith.constant 0 : index
    %1231 = vector.load %arg7[%1230, %c0_370, %c0_371] : memref<12x8x32xbf16, #tpu.memory_space<vmem>>, vector<1x8x32xbf16>
    %1232 = vector.shape_cast %1231 : vector<1x8x32xbf16> to vector<8x32xbf16>
    %1233 = vector.shape_cast %1229 : vector<8x32xbf16> to vector<1x8x32xbf16>
    tpu.vector_store %arg7[%1230, %c0_370, %c0_371], %1233 {strides = array<i32>} : memref<12x8x32xbf16, #tpu.memory_space<vmem>>, vector<1x8x32xbf16>,
    %cst_372 = arith.constant 0.000000e+00 : bf16
    %1234 = vector.broadcast %cst_372 : bf16 to vector<8x32xbf16>
    %1235 = vector.shape_cast %1211 : vector<8x1xi1> to vector<8x1xi1>
    %1236 = vector.broadcast %1235 : vector<8x1xi1> to vector<8x32xi1>
    %1237 = arith.select %1236, %1213, %1234 : vector<8x32xi1>, vector<8x32xbf16>
    %c11_i32_373 = arith.constant 11 : i32
    %1238 = arith.subi %c11_i32_373, %c10_i32 : i32
    %1239 = arith.index_cast %1238 : i32 to index
    %c0_374 = arith.constant 0 : index
    %c0_375 = arith.constant 0 : index
    %1240 = vector.load %arg8[%1239, %c0_374, %c0_375] : memref<12x8x32xbf16, #tpu.memory_space<vmem>>, vector<1x8x32xbf16>
    %1241 = vector.shape_cast %1240 : vector<1x8x32xbf16> to vector<8x32xbf16>
    %1242 = vector.shape_cast %1237 : vector<8x32xbf16> to vector<1x8x32xbf16>
    tpu.vector_store %arg8[%1239, %c0_374, %c0_375], %1242 {strides = array<i32>} : memref<12x8x32xbf16, #tpu.memory_space<vmem>>, vector<1x8x32xbf16>,
    %c11_i32_376 = arith.constant 11 : i32
    %1243 = arith.addi %6, %c11_i32_376 : i32
    %c11_i32_377 = arith.constant 11 : i32
    %1244 = arith.subi %c11_i32_377, %1243 : i32
    %cst_378 = arith.constant dense<0.000000e+00> : vector<8x128xf32>
    %1245 = tpu.matmul %1222, %4, %cst_378 {dimension_numbers = #tpu.dot_dimension_numbers<[1], [0], [0], [1], [0, 0, 1, 1], [], []>} : vector<8x32xbf16>, vector<32x128xbf16>, vector<8x128xf32> -> vector<8x128xf32>
    %cst_379 = arith.constant dense<0.000000e+00> : vector<8x128xf32>
    %1246 = tpu.matmul %1225, %5, %cst_379 {dimension_numbers = #tpu.dot_dimension_numbers<[1], [0], [0], [1], [0, 0, 1, 1], [], []>} : vector<8x32xbf16>, vector<32x128xbf16>, vector<8x128xf32> -> vector<8x128xf32>
    %1247 = arith.index_cast %c11_i32_376 : i32 to index
    %c0_380 = arith.constant 0 : index
    %c0_381 = arith.constant 0 : index
    %1248 = vector.load %arg3[%1247, %c0_380, %c0_381] : memref<12x8x128xbf16, #tpu.memory_space<vmem>>, vector<1x8x128xbf16>
    %1249 = vector.shape_cast %1248 : vector<1x8x128xbf16> to vector<8x128xbf16>
    %1250 = arith.extf %1249 : vector<8x128xbf16> to vector<8x128xf32>
    %1251 = arith.addf %1250, %1245 : vector<8x128xf32>
    %c11_i32_382 = arith.constant 11 : i32
    %1252 = arith.subi %c11_i32_382, %c11_i32_376 : i32
    %1253 = arith.index_cast %1252 : i32 to index
    %c0_383 = arith.constant 0 : index
    %c0_384 = arith.constant 0 : index
    %1254 = vector.load %arg4[%1253, %c0_383, %c0_384] : memref<12x8x128xbf16, #tpu.memory_space<vmem>>, vector<1x8x128xbf16>
    %1255 = vector.shape_cast %1254 : vector<1x8x128xbf16> to vector<8x128xbf16>
    %1256 = arith.extf %1255 : vector<8x128xbf16> to vector<8x128xf32>
    %1257 = arith.addf %1256, %1246 : vector<8x128xf32>
    %1258 = vector.extract_strided_slice %1251 {offsets = [0, 0], sizes = [8, 32], strides = [1, 1]} : vector<8x128xf32> to vector<8x32xf32>
    %cst_385 = arith.constant 5.000000e-01 : f32
    %1259 = vector.broadcast %cst_385 : f32 to vector<8x32xf32>
    %1260 = arith.mulf %1259, %1258 : vector<8x32xf32>
    %1261 = math.tanh %1260 : vector<8x32xf32>
    %cst_386 = arith.constant 5.000000e-01 : f32
    %1262 = vector.broadcast %cst_386 : f32 to vector<8x32xf32>
    %1263 = arith.mulf %1262, %1261 : vector<8x32xf32>
    %cst_387 = arith.constant 5.000000e-01 : f32
    %1264 = vector.broadcast %cst_387 : f32 to vector<8x32xf32>
    %1265 = arith.addf %1263, %1264 : vector<8x32xf32>
    %1266 = vector.extract_strided_slice %1251 {offsets = [0, 32], sizes = [8, 32], strides = [1, 1]} : vector<8x128xf32> to vector<8x32xf32>
    %cst_388 = arith.constant 5.000000e-01 : f32
    %1267 = vector.broadcast %cst_388 : f32 to vector<8x32xf32>
    %1268 = arith.mulf %1267, %1266 : vector<8x32xf32>
    %1269 = math.tanh %1268 : vector<8x32xf32>
    %cst_389 = arith.constant 5.000000e-01 : f32
    %1270 = vector.broadcast %cst_389 : f32 to vector<8x32xf32>
    %1271 = arith.mulf %1270, %1269 : vector<8x32xf32>
    %cst_390 = arith.constant 5.000000e-01 : f32
    %1272 = vector.broadcast %cst_390 : f32 to vector<8x32xf32>
    %1273 = arith.addf %1271, %1272 : vector<8x32xf32>
    %1274 = vector.extract_strided_slice %1251 {offsets = [0, 64], sizes = [8, 32], strides = [1, 1]} : vector<8x128xf32> to vector<8x32xf32>
    %1275 = math.tanh %1274 : vector<8x32xf32>
    %1276 = vector.extract_strided_slice %1251 {offsets = [0, 96], sizes = [8, 32], strides = [1, 1]} : vector<8x128xf32> to vector<8x32xf32>
    %cst_391 = arith.constant 5.000000e-01 : f32
    %1277 = vector.broadcast %cst_391 : f32 to vector<8x32xf32>
    %1278 = arith.mulf %1277, %1276 : vector<8x32xf32>
    %1279 = math.tanh %1278 : vector<8x32xf32>
    %cst_392 = arith.constant 5.000000e-01 : f32
    %1280 = vector.broadcast %cst_392 : f32 to vector<8x32xf32>
    %1281 = arith.mulf %1280, %1279 : vector<8x32xf32>
    %cst_393 = arith.constant 5.000000e-01 : f32
    %1282 = vector.broadcast %cst_393 : f32 to vector<8x32xf32>
    %1283 = arith.addf %1281, %1282 : vector<8x32xf32>
    %1284 = arith.mulf %1273, %1216 : vector<8x32xf32>
    %1285 = arith.mulf %1265, %1275 : vector<8x32xf32>
    %1286 = arith.addf %1284, %1285 : vector<8x32xf32>
    %1287 = math.tanh %1286 : vector<8x32xf32>
    %1288 = arith.mulf %1283, %1287 : vector<8x32xf32>
    %1289 = vector.extract_strided_slice %1257 {offsets = [0, 0], sizes = [8, 32], strides = [1, 1]} : vector<8x128xf32> to vector<8x32xf32>
    %cst_394 = arith.constant 5.000000e-01 : f32
    %1290 = vector.broadcast %cst_394 : f32 to vector<8x32xf32>
    %1291 = arith.mulf %1290, %1289 : vector<8x32xf32>
    %1292 = math.tanh %1291 : vector<8x32xf32>
    %cst_395 = arith.constant 5.000000e-01 : f32
    %1293 = vector.broadcast %cst_395 : f32 to vector<8x32xf32>
    %1294 = arith.mulf %1293, %1292 : vector<8x32xf32>
    %cst_396 = arith.constant 5.000000e-01 : f32
    %1295 = vector.broadcast %cst_396 : f32 to vector<8x32xf32>
    %1296 = arith.addf %1294, %1295 : vector<8x32xf32>
    %1297 = vector.extract_strided_slice %1257 {offsets = [0, 32], sizes = [8, 32], strides = [1, 1]} : vector<8x128xf32> to vector<8x32xf32>
    %cst_397 = arith.constant 5.000000e-01 : f32
    %1298 = vector.broadcast %cst_397 : f32 to vector<8x32xf32>
    %1299 = arith.mulf %1298, %1297 : vector<8x32xf32>
    %1300 = math.tanh %1299 : vector<8x32xf32>
    %cst_398 = arith.constant 5.000000e-01 : f32
    %1301 = vector.broadcast %cst_398 : f32 to vector<8x32xf32>
    %1302 = arith.mulf %1301, %1300 : vector<8x32xf32>
    %cst_399 = arith.constant 5.000000e-01 : f32
    %1303 = vector.broadcast %cst_399 : f32 to vector<8x32xf32>
    %1304 = arith.addf %1302, %1303 : vector<8x32xf32>
    %1305 = vector.extract_strided_slice %1257 {offsets = [0, 64], sizes = [8, 32], strides = [1, 1]} : vector<8x128xf32> to vector<8x32xf32>
    %1306 = math.tanh %1305 : vector<8x32xf32>
    %1307 = vector.extract_strided_slice %1257 {offsets = [0, 96], sizes = [8, 32], strides = [1, 1]} : vector<8x128xf32> to vector<8x32xf32>
    %cst_400 = arith.constant 5.000000e-01 : f32
    %1308 = vector.broadcast %cst_400 : f32 to vector<8x32xf32>
    %1309 = arith.mulf %1308, %1307 : vector<8x32xf32>
    %1310 = math.tanh %1309 : vector<8x32xf32>
    %cst_401 = arith.constant 5.000000e-01 : f32
    %1311 = vector.broadcast %cst_401 : f32 to vector<8x32xf32>
    %1312 = arith.mulf %1311, %1310 : vector<8x32xf32>
    %cst_402 = arith.constant 5.000000e-01 : f32
    %1313 = vector.broadcast %cst_402 : f32 to vector<8x32xf32>
    %1314 = arith.addf %1312, %1313 : vector<8x32xf32>
    %1315 = arith.mulf %1304, %1219 : vector<8x32xf32>
    %1316 = arith.mulf %1296, %1306 : vector<8x32xf32>
    %1317 = arith.addf %1315, %1316 : vector<8x32xf32>
    %1318 = math.tanh %1317 : vector<8x32xf32>
    %1319 = arith.mulf %1314, %1318 : vector<8x32xf32>
    %1320 = vector.broadcast %1243 : i32 to vector<8x1xi32>
    %1321 = arith.cmpi slt, %1320, %3 : vector<8x1xi32>
    %1322 = vector.broadcast %1244 : i32 to vector<8x1xi32>
    %1323 = arith.cmpi slt, %1322, %3 : vector<8x1xi32>
    %1324 = arith.truncf %1288 : vector<8x32xf32> to vector<8x32xbf16>
    %1325 = arith.truncf %1319 : vector<8x32xf32> to vector<8x32xbf16>
    %1326 = vector.shape_cast %1321 : vector<8x1xi1> to vector<8x1xi1>
    %1327 = vector.broadcast %1326 : vector<8x1xi1> to vector<8x32xi1>
    %1328 = arith.select %1327, %1286, %1216 : vector<8x32xi1>, vector<8x32xf32>
    %1329 = vector.shape_cast %1323 : vector<8x1xi1> to vector<8x1xi1>
    %1330 = vector.broadcast %1329 : vector<8x1xi1> to vector<8x32xi1>
    %1331 = arith.select %1330, %1317, %1219 : vector<8x32xi1>, vector<8x32xf32>
    %1332 = vector.shape_cast %1321 : vector<8x1xi1> to vector<8x1xi1>
    %1333 = vector.broadcast %1332 : vector<8x1xi1> to vector<8x32xi1>
    %1334 = arith.select %1333, %1324, %1222 : vector<8x32xi1>, vector<8x32xbf16>
    %1335 = vector.shape_cast %1323 : vector<8x1xi1> to vector<8x1xi1>
    %1336 = vector.broadcast %1335 : vector<8x1xi1> to vector<8x32xi1>
    %1337 = arith.select %1336, %1325, %1225 : vector<8x32xi1>, vector<8x32xbf16>
    %cst_403 = arith.constant 0.000000e+00 : bf16
    %1338 = vector.broadcast %cst_403 : bf16 to vector<8x32xbf16>
    %1339 = vector.shape_cast %1321 : vector<8x1xi1> to vector<8x1xi1>
    %1340 = vector.broadcast %1339 : vector<8x1xi1> to vector<8x32xi1>
    %1341 = arith.select %1340, %1324, %1338 : vector<8x32xi1>, vector<8x32xbf16>
    %1342 = arith.index_cast %c11_i32_376 : i32 to index
    %c0_404 = arith.constant 0 : index
    %c0_405 = arith.constant 0 : index
    %1343 = vector.load %arg7[%1342, %c0_404, %c0_405] : memref<12x8x32xbf16, #tpu.memory_space<vmem>>, vector<1x8x32xbf16>
    %1344 = vector.shape_cast %1343 : vector<1x8x32xbf16> to vector<8x32xbf16>
    %1345 = vector.shape_cast %1341 : vector<8x32xbf16> to vector<1x8x32xbf16>
    tpu.vector_store %arg7[%1342, %c0_404, %c0_405], %1345 {strides = array<i32>} : memref<12x8x32xbf16, #tpu.memory_space<vmem>>, vector<1x8x32xbf16>,
    %cst_406 = arith.constant 0.000000e+00 : bf16
    %1346 = vector.broadcast %cst_406 : bf16 to vector<8x32xbf16>
    %1347 = vector.shape_cast %1323 : vector<8x1xi1> to vector<8x1xi1>
    %1348 = vector.broadcast %1347 : vector<8x1xi1> to vector<8x32xi1>
    %1349 = arith.select %1348, %1325, %1346 : vector<8x32xi1>, vector<8x32xbf16>
    %c11_i32_407 = arith.constant 11 : i32
    %1350 = arith.subi %c11_i32_407, %c11_i32_376 : i32
    %1351 = arith.index_cast %1350 : i32 to index
    %c0_408 = arith.constant 0 : index
    %c0_409 = arith.constant 0 : index
    %1352 = vector.load %arg8[%1351, %c0_408, %c0_409] : memref<12x8x32xbf16, #tpu.memory_space<vmem>>, vector<1x8x32xbf16>
    %1353 = vector.shape_cast %1352 : vector<1x8x32xbf16> to vector<8x32xbf16>
    %1354 = vector.shape_cast %1349 : vector<8x32xbf16> to vector<1x8x32xbf16>
    tpu.vector_store %arg8[%1351, %c0_408, %c0_409], %1354 {strides = array<i32>} : memref<12x8x32xbf16, #tpu.memory_space<vmem>>, vector<1x8x32xbf16>,
    %c12_i32_410 = arith.constant 12 : i32
    %c0_411 = arith.constant 0 : index
    %c0_412 = arith.constant 0 : index
    %1355 = vector.load %arg9[%c0_411, %c0_412] : memref<8x32xbf16, #tpu.memory_space<vmem>>, vector<8x32xbf16>
    tpu.vector_store %arg9[%c0_411, %c0_412], %1334 {strides = array<i32>} : memref<8x32xbf16, #tpu.memory_space<vmem>>, vector<8x32xbf16>,
    %c0_413 = arith.constant 0 : index
    %c0_414 = arith.constant 0 : index
    %1356 = vector.load %arg10[%c0_413, %c0_414] : memref<8x32xbf16, #tpu.memory_space<vmem>>, vector<8x32xbf16>
    tpu.vector_store %arg10[%c0_413, %c0_414], %1337 {strides = array<i32>} : memref<8x32xbf16, #tpu.memory_space<vmem>>, vector<8x32xbf16>,
    %c0_415 = arith.constant 0 : index
    %c0_416 = arith.constant 0 : index
    %1357 = vector.load %arg11[%c0_415, %c0_416] : memref<8x32xf32, #tpu.memory_space<vmem>>, vector<8x32xf32>
    tpu.vector_store %arg11[%c0_415, %c0_416], %1328 {strides = array<i32>} : memref<8x32xf32, #tpu.memory_space<vmem>>, vector<8x32xf32>,
    %c0_417 = arith.constant 0 : index
    %c0_418 = arith.constant 0 : index
    %1358 = vector.load %arg12[%c0_417, %c0_418] : memref<8x32xf32, #tpu.memory_space<vmem>>, vector<8x32xf32>
    tpu.vector_store %arg12[%c0_417, %c0_418], %1331 {strides = array<i32>} : memref<8x32xf32, #tpu.memory_space<vmem>>, vector<8x32xf32>,
    return
  }
  func.func @transform_0(%arg0: i32, %arg1: i32) -> (i32, i32) {
    %c0_i32 = arith.constant 0 : i32
    %c0_i32_0 = arith.constant 0 : i32
    return %arg0, %c0_i32 : i32, i32
  }
  func.func @transform_1(%arg0: i32, %arg1: i32) -> (i32, i32, i32) {
    %c0_i32 = arith.constant 0 : i32
    %c0_i32_0 = arith.constant 0 : i32
    return %arg1, %arg0, %c0_i32 : i32, i32, i32
  }
  func.func @transform_2(%arg0: i32, %arg1: i32) -> (i32, i32, i32) {
    %c0_i32 = arith.constant 0 : i32
    %0 = arith.subi %c0_i32, %arg1 : i32
    %c0_i32_0 = arith.constant 0 : i32
    %c0_i32_1 = arith.constant 0 : i32
    return %0, %arg0, %c0_i32_0 : i32, i32, i32
  }
  func.func @transform_3(%arg0: i32, %arg1: i32) -> (i32, i32) {
    %c0_i32 = arith.constant 0 : i32
    %c0_i32_0 = arith.constant 0 : i32
    %c0_i32_1 = arith.constant 0 : i32
    return %c0_i32, %c0_i32_0 : i32, i32
  }
  func.func @transform_4(%arg0: i32, %arg1: i32) -> (i32, i32) {
    %c0_i32 = arith.constant 0 : i32
    %c0_i32_0 = arith.constant 0 : i32
    %c0_i32_1 = arith.constant 0 : i32
    return %c0_i32, %c0_i32_0 : i32, i32
  }
  func.func @transform_5(%arg0: i32, %arg1: i32) -> (i32, i32, i32) {
    %c0_i32 = arith.constant 0 : i32
    %c0_i32_0 = arith.constant 0 : i32
    return %arg1, %arg0, %c0_i32 : i32, i32, i32
  }
  func.func @transform_6(%arg0: i32, %arg1: i32) -> (i32, i32, i32) {
    %c0_i32 = arith.constant 0 : i32
    %0 = arith.subi %c0_i32, %arg1 : i32
    %c0_i32_0 = arith.constant 0 : i32
    %c0_i32_1 = arith.constant 0 : i32
    return %0, %arg0, %c0_i32_0 : i32, i32, i32
  }
}

</mosaic_0001>

<llo_original>
// kernel: rnn_encoder_forward.2
$region0: #{rnn_encoder_forward.2}
  #allocation0 [shape = 'u32[]', space=smem, size = 0x4, offset = 0x4, fixed_abs, tag = 'smem constant byte address 0x4 - core index']
  #allocation1 [shape = 'u32[72,128]{1,0:T(1,128)}', space=vmem, size = 0x9000, scoped, tag = 'internal scratch']
  #allocation2 [shape = 'bf16[8,32]{1,0:T(8,128)(2,1)}', space=vmem, size = 0x800, scoped, tag = 'scratch operand']
  #allocation3 [shape = 'bf16[8,32]{1,0:T(8,128)(2,1)}', space=vmem, size = 0x800, scoped, tag = 'scratch operand']
  #allocation4 [shape = 'f32[8,32]{1,0:T(8,128)}', space=vmem, size = 0x1000, scoped, tag = 'scratch operand']
  #allocation5 [shape = 'f32[8,32]{1,0:T(8,128)}', space=vmem, size = 0x1000, scoped, tag = 'scratch operand']
  %s0 = inlined_call_operand.vmem [shape: s32[16,1], index: 0, kind: input, shape index: {}]
  %s1 = inlined_call_operand.vmem [shape: bf16[12,16,128], index: 1, kind: input, shape index: {}]
  %s2 = inlined_call_operand.vmem [shape: bf16[12,16,128], index: 2, kind: input, shape index: {}]
  %s3 = inlined_call_operand.vmem [shape: bf16[32,128], index: 3, kind: input, shape index: {}]
  %s4 = inlined_call_operand.vmem [shape: bf16[32,128], index: 4, kind: input, shape index: {}]
  %s5 = inlined_call_operand.vmem [shape: bf16[12,16,32], index: 5, kind: output, shape index: {0}]
  %s6 = inlined_call_operand.vmem [shape: bf16[12,16,32], index: 6, kind: output, shape index: {1}]
  %7 = xla_tuple %s5, %s6
  %s8 = sld [smem:[#allocation0]]
  $region221: #{rnn_encoder_forward.2} parent=0
    _
  %s10 = ssub.s32 1, %s8
  %s11 = scalar_select 0, %s10, %s8
  $region1: #{rnn_encoder_forward.2} parent=0
    #allocation6 [shape = 'u8[49152]{0}', space=vmem, size = 0xc000, scoped, tag = 'input window, operand 1']
    #allocation7 [shape = 'u8[49152]{0}', space=vmem, size = 0xc000, scoped, tag = 'input window, operand 2']
    #allocation8 [shape = 'u8[49152]{0}', space=vmem, size = 0xc000, scoped, tag = 'output window, operand 0']
    #allocation9 [shape = 'u8[49152]{0}', space=vmem, size = 0xc000, scoped, tag = 'output window, operand 1']
    loop: start=0, step=1, limit=4
    $region2: #{rnn_encoder_forward.2} parent=1 // loop_pre_header
      _
    $region3: #{rnn_encoder_forward.2} parent=1 // loop_header
      %s13 = sphi 0, %s17
      %p14 = scmp.ge.s32.totalorder %s13, 4
      %s20 = sphi 0, %s32
      %s21 = sphi 0, %s28
      %s22 = sphi 0, %s20
      %s23 = sphi 0, %s21
      %s24 = sphi 0, %s22
      %s25 = sphi 0, %s23
      %s35 = sphi 0, %s37
      %s38 = sphi 0, %s35
      %s39 = sphi 0, %s38
      %s55 = sphi 0, %s39
      %s63 = sphi 0, %s65
      %s66 = sphi 0, %s63
      %s67 = sphi 0, %s66
      %s83 = sphi 0, %s67
      %s93 = sphi 0, %s95
      %s96 = sphi 0, %s93
      %s97 = sphi 0, %s96
      %s113 = sphi 0, %s97
      %s117 = sphi 0, %s117
      %s119 = sphi 0, %s117
      %s120 = sphi 0, %s119
      %s134 = sphi 0, %s120
      %s138 = sphi 0, %s138
      %s140 = sphi 0, %s138
      %s141 = sphi 0, %s140
      %s155 = sphi 0, %s141
      %s163 = sphi 0, %s165
      %s166 = sphi 0, %s163
      %s167 = sphi 0, %s166
      %s183 = sphi 0, %s167
      %s193 = sphi 0, %s195
      %s196 = sphi 0, %s193
      %s197 = sphi 0, %s196
      %s213 = sphi 0, %s197
    $region4: #{rnn_encoder_forward.2} parent=1 // loop_header_branch
      %16 = sbr.rel (%p14) target = $region8
    $region5: #{rnn_encoder_forward.2} parent=1 // loop_body
      %s18 = ssub.s32 %s13, 1
      %s19 = ssub.s32 %s13, 2
      %s26 = sadd.s32 1, %s21
      %p27 = scmp.ge.s32.totalorder %s26, 1
      %s28 = scalar_select %p27, 0, %s26
      %s29 = sadd.s32 1, %s20
      %s30 = scalar_select %p27, %s29, %s20
      %p31 = scmp.ge.s32.totalorder %s30, 2
      %s32 = scalar_select %p31, 0, %s30
      %s33 = ssub.s32 %s20, %s32
      %p34 = scmp.eq.s32.totalorder %s33, 0
      %s36 = sadd.s32 %s35, 1
      %s37 = scalar_select %p34, %s35, %s36
      %p40 = pneg %p34
      %p41 = scmp.eq.s32.totalorder %s13, 1
      %p42 = por %p40, %p41
      %p43 = scmp.ne.s32.totalorder %s35, %s38
      %p44 = scmp.eq.s32.totalorder %s13, 0
      %p45 = por %p43, %p44
      %p46 = scmp.ne.s32.totalorder %s35, %s38
      %p47 = scmp.eq.s32.totalorder %s18, 1
      %p48 = por %p46, %p47
      %p49 = scmp.ne.s32.totalorder %s38, %s39
      %p50 = scmp.eq.s32.totalorder %s18, 0
      %p51 = por %p49, %p50
      %p52 = scmp.ne.s32.totalorder %s38, %s39
      %p53 = scmp.eq.s32.totalorder %s19, 1
      %p54 = por %p52, %p53
      %p56 = scmp.ne.s32.totalorder %s39, %s55
      %p57 = scmp.eq.s32.totalorder %s19, 0
      %p58 = por %p56, %p57
      %s59 = ssub.s32 %s21, %s28
      %s60 = ssub.s32 %s20, %s32
      %s61 = sor.u32 %s59, %s60
      %p62 = scmp.eq.s32.totalorder %s61, 0
      %s64 = sadd.s32 %s63, 1
      %s65 = scalar_select %p62, %s63, %s64
      %p68 = pneg %p62
      %p69 = scmp.eq.s32.totalorder %s13, 1
      %p70 = por %p68, %p69
      %p71 = scmp.ne.s32.totalorder %s63, %s66
      %p72 = scmp.eq.s32.totalorder %s13, 0
      %p73 = por %p71, %p72
      %p74 = scmp.ne.s32.totalorder %s63, %s66
      %p75 = scmp.eq.s32.totalorder %s18, 1
      %p76 = por %p74, %p75
      %p77 = scmp.ne.s32.totalorder %s66, %s67
      %p78 = scmp.eq.s32.totalorder %s18, 0
      %p79 = por %p77, %p78
      %p80 = scmp.ne.s32.totalorder %s66, %s67
      %p81 = scmp.eq.s32.totalorder %s19, 1
      %p82 = por %p80, %p81
      %p84 = scmp.ne.s32.totalorder %s67, %s83
      %p85 = scmp.eq.s32.totalorder %s19, 0
      %p86 = por %p84, %p85
      %s87 = ssub.s32 0, %s21
      %s88 = ssub.s32 0, %s28
      %s89 = ssub.s32 %s87, %s88
      %s90 = ssub.s32 %s20, %s32
      %s91 = sor.u32 %s89, %s90
      %p92 = scmp.eq.s32.totalorder %s91, 0
      %s94 = sadd.s32 %s93, 1
      %s95 = scalar_select %p92, %s93, %s94
      %p98 = pneg %p92
      %p99 = scmp.eq.s32.totalorder %s13, 1
      %p100 = por %p98, %p99
      %p101 = scmp.ne.s32.totalorder %s93, %s96
      %p102 = scmp.eq.s32.totalorder %s13, 0
      %p103 = por %p101, %p102
      %p104 = scmp.ne.s32.totalorder %s93, %s96
      %p105 = scmp.eq.s32.totalorder %s18, 1
      %p106 = por %p104, %p105
      %p107 = scmp.ne.s32.totalorder %s96, %s97
      %p108 = scmp.eq.s32.totalorder %s18, 0
      %p109 = por %p107, %p108
      %p110 = scmp.ne.s32.totalorder %s96, %s97
      %p111 = scmp.eq.s32.totalorder %s19, 1
      %p112 = por %p110, %p111
      %p114 = scmp.ne.s32.totalorder %s97, %s113
      %p115 = scmp.eq.s32.totalorder %s19, 0
      %p116 = por %p114, %p115
      %s118 = sadd.s32 %s117, 1
      %p121 = scmp.eq.s32.totalorder %s13, 1
      %p122 = scmp.ne.s32.totalorder %s117, %s119
      %p123 = scmp.eq.s32.totalorder %s13, 0
      %p124 = por %p122, %p123
      %p125 = scmp.ne.s32.totalorder %s117, %s119
      %p126 = scmp.eq.s32.totalorder %s18, 1
      %p127 = por %p125, %p126
      %p128 = scmp.ne.s32.totalorder %s119, %s120
      %p129 = scmp.eq.s32.totalorder %s18, 0
      %p130 = por %p128, %p129
      %p131 = scmp.ne.s32.totalorder %s119, %s120
      %p132 = scmp.eq.s32.totalorder %s19, 1
      %p133 = por %p131, %p132
      %p135 = scmp.ne.s32.totalorder %s120, %s134
      %p136 = scmp.eq.s32.totalorder %s19, 0
      %p137 = por %p135, %p136
      %s139 = sadd.s32 %s138, 1
      %p142 = scmp.eq.s32.totalorder %s13, 1
      %p143 = scmp.ne.s32.totalorder %s138, %s140
      %p144 = scmp.eq.s32.totalorder %s13, 0
      %p145 = por %p143, %p144
      %p146 = scmp.ne.s32.totalorder %s138, %s140
      %p147 = scmp.eq.s32.totalorder %s18, 1
      %p148 = por %p146, %p147
      %p149 = scmp.ne.s32.totalorder %s140, %s141
      %p150 = scmp.eq.s32.totalorder %s18, 0
      %p151 = por %p149, %p150
      %p152 = scmp.ne.s32.totalorder %s140, %s141
      %p153 = scmp.eq.s32.totalorder %s19, 1
      %p154 = por %p152, %p153
      %p156 = scmp.ne.s32.totalorder %s141, %s155
      %p157 = scmp.eq.s32.totalorder %s19, 0
      %p158 = por %p156, %p157
      %s159 = ssub.s32 %s21, %s28
      %s160 = ssub.s32 %s20, %s32
      %s161 = sor.u32 %s159, %s160
      %p162 = scmp.eq.s32.totalorder %s161, 0
      %s164 = sadd.s32 %s163, 1
      %s165 = scalar_select %p162, %s163, %s164
      %p168 = pneg %p162
      %p169 = scmp.eq.s32.totalorder %s13, 1
      %p170 = por %p168, %p169
      %p171 = scmp.ne.s32.totalorder %s163, %s166
      %p172 = scmp.eq.s32.totalorder %s13, 0
      %p173 = por %p171, %p172
      %p174 = scmp.ne.s32.totalorder %s163, %s166
      %p175 = scmp.eq.s32.totalorder %s18, 1
      %p176 = por %p174, %p175
      %p177 = scmp.ne.s32.totalorder %s166, %s167
      %p178 = scmp.eq.s32.totalorder %s18, 0
      %p179 = por %p177, %p178
      %p180 = scmp.ne.s32.totalorder %s166, %s167
      %p181 = scmp.eq.s32.totalorder %s19, 1
      %p182 = por %p180, %p181
      %p184 = scmp.ne.s32.totalorder %s167, %s183
      %p185 = scmp.eq.s32.totalorder %s19, 0
      %p186 = por %p184, %p185
      %s187 = ssub.s32 0, %s21
      %s188 = ssub.s32 0, %s28
      %s189 = ssub.s32 %s187, %s188
      %s190 = ssub.s32 %s20, %s32
      %s191 = sor.u32 %s189, %s190
      %p192 = scmp.eq.s32.totalorder %s191, 0
      %s194 = sadd.s32 %s193, 1
      %s195 = scalar_select %p192, %s193, %s194
      %p198 = pneg %p192
      %p199 = scmp.eq.s32.totalorder %s13, 1
      %p200 = por %p198, %p199
      %p201 = scmp.ne.s32.totalorder %s193, %s196
      %p202 = scmp.eq.s32.totalorder %s13, 0
      %p203 = por %p201, %p202
      %p204 = scmp.ne.s32.totalorder %s193, %s196
      %p205 = scmp.eq.s32.totalorder %s18, 1
      %p206 = por %p204, %p205
      %p207 = scmp.ne.s32.totalorder %s196, %s197
      %p208 = scmp.eq.s32.totalorder %s18, 0
      %p209 = por %p207, %p208
      %p210 = scmp.ne.s32.totalorder %s196, %s197
      %p211 = scmp.eq.s32.totalorder %s19, 1
      %p212 = por %p210, %p211
      %p214 = scmp.ne.s32.totalorder %s197, %s213
      %p215 = scmp.eq.s32.totalorder %s19, 0
      %p216 = por %p214, %p215
      %p217 = scmp.le.s32.totalorder 1, %s13
      %p218 = scmp.lt.s32.totalorder %s13, 3
      %p219 = pnand %p217, %p218
      %p220 = pneg %p219
      // Predicated region
      $region9: #{rnn_encoder_forward.2} parent=5 // pred_check
        _
      $region10: #{rnn_encoder_forward.2} parent=5 // pred_check_branch
        %222 = sbr.rel (%p219) target = $region12
      $region11: #{rnn_encoder_forward.2} parent=5 // pred_region
        %s223 = ssub.s32 %s13, 1
        // Predicated region
        $region13: #{rnn_encoder_forward.2} parent=11 // pred_check
          %p224 = pneg %p130
        $region14: #{rnn_encoder_forward.2} parent=11 // pred_check_branch
          %226 = sbr.rel (%p224) target = $region16
        $region15: #{rnn_encoder_forward.2} parent=11 // pred_region
          _
        $region16: #{rnn_encoder_forward.2} parent=11 // pred_fallthru
          _
        // Predicated region
        $region17: #{rnn_encoder_forward.2} parent=11 // pred_check
          %p227 = pneg %p151
        $region18: #{rnn_encoder_forward.2} parent=11 // pred_check_branch
          %229 = sbr.rel (%p227) target = $region20
        $region19: #{rnn_encoder_forward.2} parent=11 // pred_region
          _
        $region20: #{rnn_encoder_forward.2} parent=11 // pred_fallthru
          _
      $region12: #{rnn_encoder_forward.2} parent=5 // pred_fallthru
        _
      %p230 = scmp.lt.s32.totalorder %s13, 2
      // Predicated region
      $region21: #{rnn_encoder_forward.2} parent=5 // pred_check
        %p231 = pneg %p230
      $region22: #{rnn_encoder_forward.2} parent=5 // pred_check_branch
        %233 = sbr.rel (%p231) target = $region24
      $region23: #{rnn_encoder_forward.2} parent=5 // pred_region
        // Predicated region
        $region25: #{rnn_encoder_forward.2} parent=23 // pred_check
          %p234 = pneg %p45
        $region26: #{rnn_encoder_forward.2} parent=23 // pred_check_branch
          %236 = sbr.rel (%p234) target = $region28
        $region27: #{rnn_encoder_forward.2} parent=23 // pred_region
          %p237 = scmp.lt.s32.totalorder %s20, 1
          %s238 = scalar_select %p237, %s20, 1
          %s239 = smul.addr %s238, 8
          %s240 = scalar_lea.vmem %s0, %s239
        $region28: #{rnn_encoder_forward.2} parent=23 // pred_fallthru
          _
        // Predicated region
        $region29: #{rnn_encoder_forward.2} parent=23 // pred_check
          %p241 = pneg %p73
        $region30: #{rnn_encoder_forward.2} parent=23 // pred_check_branch
          %243 = sbr.rel (%p241) target = $region32
        $region31: #{rnn_encoder_forward.2} parent=23 // pred_region
          %s244 = sand.u32 %s63, 1
          %s245 = sand.u32 %s63, 1
          %s246 = smul.addr %s245, 48
          %s247 = scalar_lea.vmem [#allocation6], %s246
          %s248 = smul.u32 12, %s21
          %s249 = smul.addr %s248, 2
          %s250 = sadd.s32 %s20, %s249
          %s251 = smul.addr %s250, 4
          %s252 = scalar_lea.vmem %s1, %s251
          // Predicated region
          $region33: #{rnn_encoder_forward.2} parent=31 // pred_check
            _
          $region34: #{rnn_encoder_forward.2} parent=31 // pred_check_branch
            %254 = sbr.rel (0) target = $region36
          $region35: #{rnn_encoder_forward.2} parent=31 // pred_region
            // Predicated region
            $region37: #{rnn_encoder_forward.2} parent=35 // pred_check
              _
            $region38: #{rnn_encoder_forward.2} parent=35 // pred_check_branch
              %256 = sbr.rel target = $region40
            $region39: #{rnn_encoder_forward.2} parent=35 // pred_region
              // Predicated region
              $region52: #{rnn_encoder_forward.2} parent=39 // pred_check
                _
              $region53: #{rnn_encoder_forward.2} parent=39 // pred_check_branch
                %294 = sbr.rel (0) target = $region55
              $region54: #{rnn_encoder_forward.2} parent=39 // pred_region
                loop: start=0, step=1, limit=1
                $region56: #{rnn_encoder_forward.2} parent=54 // loop_pre_header
                  _
                $region57: #{rnn_encoder_forward.2} parent=54 // loop_header
                  %s296 = sphi 0, %s300
                  %p297 = scmp.ge.s32.totalorder %s296, 1
                  %s301 = sphi %s252, %s252
                  %s302 = sphi %s247, %s247
                $region58: #{rnn_encoder_forward.2} parent=54 // loop_header_branch
                  %299 = sbr.rel (%p297) target = $region62
                $region59: #{rnn_encoder_forward.2} parent=54 // loop_body
                  _
                $region60: #{rnn_encoder_forward.2} parent=54 // loop_footer
                  %s300 = sadd.s32 1, %s296
                $region61: #{rnn_encoder_forward.2} parent=54 // loop_footer_branch
                  %295 = sbr.rel target = $region57
                $region62: #{rnn_encoder_forward.2} parent=54 // loop_exit
                  _
                %s304 = ssub.s32 16, 1
                loop: start=0, step=1, limit=1
                $region63: #{rnn_encoder_forward.2} parent=54 // loop_pre_header
                  _
                $region64: #{rnn_encoder_forward.2} parent=54 // loop_header
                  %s306 = sphi 0, %s310
                  %p307 = scmp.ge.s32.totalorder %s306, 1
                  %s311 = sphi %s252, %s252
                  %s312 = sphi %s247, %s247
                $region65: #{rnn_encoder_forward.2} parent=54 // loop_header_branch
                  %309 = sbr.rel (%p307) target = $region69
                $region66: #{rnn_encoder_forward.2} parent=54 // loop_body
                  %v313 = vld [vmem:[%s311] sm:%s304]
                  %314 = vst [vmem:[%s312] sm:%s304] %v313
                  %v315 = vld [vmem:[%s311 + $0x8] sm:%s304]
                  %316 = vst [vmem:[%s312 + $0x4] sm:%s304] %v315
                  %v317 = vld [vmem:[%s311 + $0x10] sm:%s304]
                  %318 = vst [vmem:[%s312 + $0x8] sm:%s304] %v317
                  %v319 = vld [vmem:[%s311 + $0x18] sm:%s304]
                  %320 = vst [vmem:[%s312 + $0xc] sm:%s304] %v319
                  %v321 = vld [vmem:[%s311 + $0x20] sm:%s304]
                  %322 = vst [vmem:[%s312 + $0x10] sm:%s304] %v321
                  %v323 = vld [vmem:[%s311 + $0x28] sm:%s304]
                  %324 = vst [vmem:[%s312 + $0x14] sm:%s304] %v323
                  %v325 = vld [vmem:[%s311 + $0x30] sm:%s304]
                  %326 = vst [vmem:[%s312 + $0x18] sm:%s304] %v325
                  %v327 = vld [vmem:[%s311 + $0x38] sm:%s304]
                  %328 = vst [vmem:[%s312 + $0x1c] sm:%s304] %v327
                  %v329 = vld [vmem:[%s311 + $0x40] sm:%s304]
                  %330 = vst [vmem:[%s312 + $0x20] sm:%s304] %v329
                  %v331 = vld [vmem:[%s311 + $0x48] sm:%s304]
                  %332 = vst [vmem:[%s312 + $0x24] sm:%s304] %v331
                  %v333 = vld [vmem:[%s311 + $0x50] sm:%s304]
                  %334 = vst [vmem:[%s312 + $0x28] sm:%s304] %v333
                  %v335 = vld [vmem:[%s311 + $0x58] sm:%s304]
                  %336 = vst [vmem:[%s312 + $0x2c] sm:%s304] %v335
                $region67: #{rnn_encoder_forward.2} parent=54 // loop_footer
                  %s310 = sadd.s32 1, %s306
                $region68: #{rnn_encoder_forward.2} parent=54 // loop_footer_branch
                  %305 = sbr.rel target = $region64
                $region69: #{rnn_encoder_forward.2} parent=54 // loop_exit
                  _
              $region55: #{rnn_encoder_forward.2} parent=39 // pred_fallthru
                _
            $region40: #{rnn_encoder_forward.2} parent=35 // pred_fallthru
              _
            // Predicated region
            $region41: #{rnn_encoder_forward.2} parent=35 // pred_check
              _
            $region42: #{rnn_encoder_forward.2} parent=35 // pred_check_branch
              %258 = sbr.rel (0) target = $region44
            $region43: #{rnn_encoder_forward.2} parent=35 // pred_region
              %s260 = ssub.s32 16, 1
              loop: start=0, step=1, limit=1
              $region45: #{rnn_encoder_forward.2} parent=43 // loop_pre_header
                _
              $region46: #{rnn_encoder_forward.2} parent=43 // loop_header
                %s262 = sphi 0, %s266
                %p263 = scmp.ge.s32.totalorder %s262, 1
                %s267 = sphi %s252, %s252
                %s268 = sphi %s247, %s247
              $region47: #{rnn_encoder_forward.2} parent=43 // loop_header_branch
                %265 = sbr.rel (%p263) target = $region51
              $region48: #{rnn_encoder_forward.2} parent=43 // loop_body
                %v269 = vld [vmem:[%s267] sm:%s260]
                %270 = vst [vmem:[%s268] sm:%s260] %v269
                %v271 = vld [vmem:[%s267 + $0x8] sm:%s260]
                %272 = vst [vmem:[%s268 + $0x4] sm:%s260] %v271
                %v273 = vld [vmem:[%s267 + $0x10] sm:%s260]
                %274 = vst [vmem:[%s268 + $0x8] sm:%s260] %v273
                %v275 = vld [vmem:[%s267 + $0x18] sm:%s260]
                %276 = vst [vmem:[%s268 + $0xc] sm:%s260] %v275
                %v277 = vld [vmem:[%s267 + $0x20] sm:%s260]
                %278 = vst [vmem:[%s268 + $0x10] sm:%s260] %v277
                %v279 = vld [vmem:[%s267 + $0x28] sm:%s260]
                %280 = vst [vmem:[%s268 + $0x14] sm:%s260] %v279
                %v281 = vld [vmem:[%s267 + $0x30] sm:%s260]
                %282 = vst [vmem:[%s268 + $0x18] sm:%s260] %v281
                %v283 = vld [vmem:[%s267 + $0x38] sm:%s260]
                %284 = vst [vmem:[%s268 + $0x1c] sm:%s260] %v283
                %v285 = vld [vmem:[%s267 + $0x40] sm:%s260]
                %286 = vst [vmem:[%s268 + $0x20] sm:%s260] %v285
                %v287 = vld [vmem:[%s267 + $0x48] sm:%s260]
                %288 = vst [vmem:[%s268 + $0x24] sm:%s260] %v287
                %v289 = vld [vmem:[%s267 + $0x50] sm:%s260]
                %290 = vst [vmem:[%s268 + $0x28] sm:%s260] %v289
                %v291 = vld [vmem:[%s267 + $0x58] sm:%s260]
                %292 = vst [vmem:[%s268 + $0x2c] sm:%s260] %v291
              $region49: #{rnn_encoder_forward.2} parent=43 // loop_footer
                %s266 = sadd.s32 1, %s262
              $region50: #{rnn_encoder_forward.2} parent=43 // loop_footer_branch
                %261 = sbr.rel target = $region46
              $region51: #{rnn_encoder_forward.2} parent=43 // loop_exit
                _
            $region44: #{rnn_encoder_forward.2} parent=35 // pred_fallthru
              _
          $region36: #{rnn_encoder_forward.2} parent=31 // pred_fallthru
            _
          %337 = vnop
        $region32: #{rnn_encoder_forward.2} parent=23 // pred_fallthru
          _
        // Predicated region
        $region70: #{rnn_encoder_forward.2} parent=23 // pred_check
          %p338 = pneg %p103
        $region71: #{rnn_encoder_forward.2} parent=23 // pred_check_branch
          %340 = sbr.rel (%p338) target = $region73
        $region72: #{rnn_encoder_forward.2} parent=23 // pred_region
          %s341 = sand.u32 %s93, 1
          %s342 = sand.u32 %s93, 1
          %s343 = smul.addr %s342, 48
          %s344 = scalar_lea.vmem [#allocation7], %s343
          %s345 = ssub.s32 0, %s21
          %s346 = smul.u32 12, %s345
          %s347 = smul.addr %s346, 2
          %s348 = sadd.s32 %s20, %s347
          %s349 = smul.addr %s348, 4
          %s350 = scalar_lea.vmem %s2, %s349
          // Predicated region
          $region74: #{rnn_encoder_forward.2} parent=72 // pred_check
            _
          $region75: #{rnn_encoder_forward.2} parent=72 // pred_check_branch
            %352 = sbr.rel (0) target = $region77
          $region76: #{rnn_encoder_forward.2} parent=72 // pred_region
            // Predicated region
            $region78: #{rnn_encoder_forward.2} parent=76 // pred_check
              _
            $region79: #{rnn_encoder_forward.2} parent=76 // pred_check_branch
              %354 = sbr.rel target = $region81
            $region80: #{rnn_encoder_forward.2} parent=76 // pred_region
              // Predicated region
              $region93: #{rnn_encoder_forward.2} parent=80 // pred_check
                _
              $region94: #{rnn_encoder_forward.2} parent=80 // pred_check_branch
                %392 = sbr.rel (0) target = $region96
              $region95: #{rnn_encoder_forward.2} parent=80 // pred_region
                loop: start=0, step=1, limit=1
                $region97: #{rnn_encoder_forward.2} parent=95 // loop_pre_header
                  _
                $region98: #{rnn_encoder_forward.2} parent=95 // loop_header
                  %s394 = sphi 0, %s398
                  %p395 = scmp.ge.s32.totalorder %s394, 1
                  %s399 = sphi %s350, %s350
                  %s400 = sphi %s344, %s344
                $region99: #{rnn_encoder_forward.2} parent=95 // loop_header_branch
                  %397 = sbr.rel (%p395) target = $region103
                $region100: #{rnn_encoder_forward.2} parent=95 // loop_body
                  _
                $region101: #{rnn_encoder_forward.2} parent=95 // loop_footer
                  %s398 = sadd.s32 1, %s394
                $region102: #{rnn_encoder_forward.2} parent=95 // loop_footer_branch
                  %393 = sbr.rel target = $region98
                $region103: #{rnn_encoder_forward.2} parent=95 // loop_exit
                  _
                %s402 = ssub.s32 16, 1
                loop: start=0, step=1, limit=1
                $region104: #{rnn_encoder_forward.2} parent=95 // loop_pre_header
                  _
                $region105: #{rnn_encoder_forward.2} parent=95 // loop_header
                  %s404 = sphi 0, %s408
                  %p405 = scmp.ge.s32.totalorder %s404, 1
                  %s409 = sphi %s350, %s350
                  %s410 = sphi %s344, %s344
                $region106: #{rnn_encoder_forward.2} parent=95 // loop_header_branch
                  %407 = sbr.rel (%p405) target = $region110
                $region107: #{rnn_encoder_forward.2} parent=95 // loop_body
                  %v411 = vld [vmem:[%s409] sm:%s402]
                  %412 = vst [vmem:[%s410] sm:%s402] %v411
                  %v413 = vld [vmem:[%s409 + $0x8] sm:%s402]
                  %414 = vst [vmem:[%s410 + $0x4] sm:%s402] %v413
                  %v415 = vld [vmem:[%s409 + $0x10] sm:%s402]
                  %416 = vst [vmem:[%s410 + $0x8] sm:%s402] %v415
                  %v417 = vld [vmem:[%s409 + $0x18] sm:%s402]
                  %418 = vst [vmem:[%s410 + $0xc] sm:%s402] %v417
                  %v419 = vld [vmem:[%s409 + $0x20] sm:%s402]
                  %420 = vst [vmem:[%s410 + $0x10] sm:%s402] %v419
                  %v421 = vld [vmem:[%s409 + $0x28] sm:%s402]
                  %422 = vst [vmem:[%s410 + $0x14] sm:%s402] %v421
                  %v423 = vld [vmem:[%s409 + $0x30] sm:%s402]
                  %424 = vst [vmem:[%s410 + $0x18] sm:%s402] %v423
                  %v425 = vld [vmem:[%s409 + $0x38] sm:%s402]
                  %426 = vst [vmem:[%s410 + $0x1c] sm:%s402] %v425
                  %v427 = vld [vmem:[%s409 + $0x40] sm:%s402]
                  %428 = vst [vmem:[%s410 + $0x20] sm:%s402] %v427
                  %v429 = vld [vmem:[%s409 + $0x48] sm:%s402]
                  %430 = vst [vmem:[%s410 + $0x24] sm:%s402] %v429
                  %v431 = vld [vmem:[%s409 + $0x50] sm:%s402]
                  %432 = vst [vmem:[%s410 + $0x28] sm:%s402] %v431
                  %v433 = vld [vmem:[%s409 + $0x58] sm:%s402]
                  %434 = vst [vmem:[%s410 + $0x2c] sm:%s402] %v433
                $region108: #{rnn_encoder_forward.2} parent=95 // loop_footer
                  %s408 = sadd.s32 1, %s404
                $region109: #{rnn_encoder_forward.2} parent=95 // loop_footer_branch
                  %403 = sbr.rel target = $region105
                $region110: #{rnn_encoder_forward.2} parent=95 // loop_exit
                  _
              $region96: #{rnn_encoder_forward.2} parent=80 // pred_fallthru
                _
            $region81: #{rnn_encoder_forward.2} parent=76 // pred_fallthru
              _
            // Predicated region
            $region82: #{rnn_encoder_forward.2} parent=76 // pred_check
              _
            $region83: #{rnn_encoder_forward.2} parent=76 // pred_check_branch
              %356 = sbr.rel (0) target = $region85
            $region84: #{rnn_encoder_forward.2} parent=76 // pred_region
              %s358 = ssub.s32 16, 1
              loop: start=0, step=1, limit=1
              $region86: #{rnn_encoder_forward.2} parent=84 // loop_pre_header
                _
              $region87: #{rnn_encoder_forward.2} parent=84 // loop_header
                %s360 = sphi 0, %s364
                %p361 = scmp.ge.s32.totalorder %s360, 1
                %s365 = sphi %s350, %s350
                %s366 = sphi %s344, %s344
              $region88: #{rnn_encoder_forward.2} parent=84 // loop_header_branch
                %363 = sbr.rel (%p361) target = $region92
              $region89: #{rnn_encoder_forward.2} parent=84 // loop_body
                %v367 = vld [vmem:[%s365] sm:%s358]
                %368 = vst [vmem:[%s366] sm:%s358] %v367
                %v369 = vld [vmem:[%s365 + $0x8] sm:%s358]
                %370 = vst [vmem:[%s366 + $0x4] sm:%s358] %v369
                %v371 = vld [vmem:[%s365 + $0x10] sm:%s358]
                %372 = vst [vmem:[%s366 + $0x8] sm:%s358] %v371
                %v373 = vld [vmem:[%s365 + $0x18] sm:%s358]
                %374 = vst [vmem:[%s366 + $0xc] sm:%s358] %v373
                %v375 = vld [vmem:[%s365 + $0x20] sm:%s358]
                %376 = vst [vmem:[%s366 + $0x10] sm:%s358] %v375
                %v377 = vld [vmem:[%s365 + $0x28] sm:%s358]
                %378 = vst [vmem:[%s366 + $0x14] sm:%s358] %v377
                %v379 = vld [vmem:[%s365 + $0x30] sm:%s358]
                %380 = vst [vmem:[%s366 + $0x18] sm:%s358] %v379
                %v381 = vld [vmem:[%s365 + $0x38] sm:%s358]
                %382 = vst [vmem:[%s366 + $0x1c] sm:%s358] %v381
                %v383 = vld [vmem:[%s365 + $0x40] sm:%s358]
                %384 = vst [vmem:[%s366 + $0x20] sm:%s358] %v383
                %v385 = vld [vmem:[%s365 + $0x48] sm:%s358]
                %386 = vst [vmem:[%s366 + $0x24] sm:%s358] %v385
                %v387 = vld [vmem:[%s365 + $0x50] sm:%s358]
                %388 = vst [vmem:[%s366 + $0x28] sm:%s358] %v387
                %v389 = vld [vmem:[%s365 + $0x58] sm:%s358]
                %390 = vst [vmem:[%s366 + $0x2c] sm:%s358] %v389
              $region90: #{rnn_encoder_forward.2} parent=84 // loop_footer
                %s364 = sadd.s32 1, %s360
              $region91: #{rnn_encoder_forward.2} parent=84 // loop_footer_branch
                %359 = sbr.rel target = $region87
              $region92: #{rnn_encoder_forward.2} parent=84 // loop_exit
                _
            $region85: #{rnn_encoder_forward.2} parent=76 // pred_fallthru
              _
          $region77: #{rnn_encoder_forward.2} parent=72 // pred_fallthru
            _
          %435 = vnop
        $region73: #{rnn_encoder_forward.2} parent=23 // pred_fallthru
          _
      $region24: #{rnn_encoder_forward.2} parent=5 // pred_fallthru
        _
      %p436 = scmp.le.s32.totalorder 1, %s13
      %p437 = scmp.lt.s32.totalorder %s13, 3
      %p438 = pnand %p436, %p437
      %p439 = pneg %p438
      // Predicated region
      $region111: #{rnn_encoder_forward.2} parent=5 // pred_check
        _
      $region112: #{rnn_encoder_forward.2} parent=5 // pred_check_branch
        %441 = sbr.rel (%p438) target = $region114
      $region113: #{rnn_encoder_forward.2} parent=5 // pred_region
        %s442 = ssub.s32 %s13, 1
        %s443 = sand.u32 %s66, 1
        %s444 = sand.u32 %s66, 1
        %s445 = smul.addr %s444, 48
        %s446 = scalar_lea.vmem [#allocation6], %s445
        // Predicated region
        $region115: #{rnn_encoder_forward.2} parent=113 // pred_check
          %p447 = pneg %p79
        $region116: #{rnn_encoder_forward.2} parent=113 // pred_check_branch
          %449 = sbr.rel (%p447) target = $region118
        $region117: #{rnn_encoder_forward.2} parent=113 // pred_region
          _
        $region118: #{rnn_encoder_forward.2} parent=113 // pred_fallthru
          _
        %s450 = sand.u32 %s96, 1
        %s451 = sand.u32 %s96, 1
        %s452 = smul.addr %s451, 48
        %s453 = scalar_lea.vmem [#allocation7], %s452
        // Predicated region
        $region119: #{rnn_encoder_forward.2} parent=113 // pred_check
          %p454 = pneg %p109
        $region120: #{rnn_encoder_forward.2} parent=113 // pred_check_branch
          %456 = sbr.rel (%p454) target = $region122
        $region121: #{rnn_encoder_forward.2} parent=113 // pred_region
          _
        $region122: #{rnn_encoder_forward.2} parent=113 // pred_fallthru
          _
        %p457 = scmp.lt.s32.totalorder %s22, 1
        %s458 = scalar_select %p457, %s22, 1
        %s459 = smul.addr %s458, 8
        %s460 = scalar_lea.vmem %s0, %s459
        %p461 = pneg %p51
        %p462 = pneg %p48
        %s463 = sand.u32 %s66, 1
        %s464 = sand.u32 %s66, 1
        %s465 = smul.addr %s464, 48
        %s466 = scalar_lea.vmem [#allocation6], %s465
        %p467 = pneg %p79
        %p468 = pneg %p76
        %s469 = sand.u32 %s96, 1
        %s470 = sand.u32 %s96, 1
        %s471 = smul.addr %s470, 48
        %s472 = scalar_lea.vmem [#allocation7], %s471
        %p473 = pneg %p109
        %p474 = pneg %p106
        %p475 = pneg %p130
        %p476 = pneg %p127
        %p477 = pneg %p151
        %p478 = pneg %p148
        %p479 = pneg %p179
        %p480 = pneg %p176
        %s481 = sand.u32 %s166, 1
        %s482 = sand.u32 %s166, 1
        %s483 = smul.addr %s482, 48
        %s484 = scalar_lea.vmem [#allocation8], %s483
        %p485 = pneg %p209
        %p486 = pneg %p206
        %s487 = sand.u32 %s196, 1
        %s488 = sand.u32 %s196, 1
        %s489 = smul.addr %s488, 48
        %s490 = scalar_lea.vmem [#allocation9], %s489
        %p491 = scmp.lt.s32.totalorder %s22, 1
        %s492 = scalar_select %p491, %s22, 1
        %s493 = smul.addr %s492, 8
        %s494 = scalar_lea.vmem %s0, %s493
        %s495 = smul.u32 12, %s23
        %s496 = ssub.s32 0, %s23
        %s497 = smul.u32 12, %s496
        %s498 = smul.u32 12, %s23
        %s499 = ssub.s32 0, %s23
        %s500 = smul.u32 12, %s499
        %p502 = scmp.eq.s32.totalorder %s23, 0
        // Predicated region
        $region123: #{rnn_encoder_forward.2} parent=113 // pred_check
          %p503 = pneg %p502
        $region124: #{rnn_encoder_forward.2} parent=113 // pred_check_branch
          %505 = sbr.rel (%p503) target = $region126
        $region125: #{rnn_encoder_forward.2} parent=113 // pred_region
          %vm506 = vcmask 257024
          %507 = vst.msk [vmem:[#allocation2] sm:$0xf] %vm506, 0
          %508 = vst.msk [vmem:[#allocation3] sm:$0xf] %vm506, 0
          %vm509 = vcmask 261120
          %510 = vst.msk [vmem:[#allocation4] sm:$0xff] %vm509, 0.0
          %511 = vst.msk [vmem:[#allocation5] sm:$0xff] %vm509, 0.0
        $region126: #{rnn_encoder_forward.2} parent=113 // pred_fallthru
          _
        %v512 = vld [vmem:[%s494] sm:$0xff]
        %v513 = vld [vmem:[%s3] sm:$0xf]
        %v514 = vld [vmem:[%s3 + $0x4] sm:$0xf]
        %v515 = vld [vmem:[%s3 + $0x8] sm:$0xf]
        %v516 = vld [vmem:[%s3 + $0xc] sm:$0xf]
        %v517 = vld [vmem:[%s4] sm:$0xf]
        %v518 = vld [vmem:[%s4 + $0x4] sm:$0xf]
        %v519 = vld [vmem:[%s4 + $0x8] sm:$0xf]
        %v520 = vld [vmem:[%s4 + $0xc] sm:$0xf]
        %s521 = smul.u32 %s23, 12
        %v522 = vld [vmem:[#allocation2] sm:$0xf]
        %v523 = vld [vmem:[#allocation3] sm:$0xf]
        %v524 = vld [vmem:[#allocation4] sm:$0xff]
        %v525 = vld [vmem:[#allocation5] sm:$0xff]
        %s526 = ssub.s32 11, %s521
        %v531 = vunpack.c.l.b16 %v513
        %v532 = vunpack.c.l.b16 %v514
        %v533 = vunpack.c.l.b16 %v515
        %v534 = vunpack.c.l.b16 %v516
        %v535 = vpack.c.b16 %v532, %v531
        %v536 = vpack.c.b16 %v534, %v533
        %vm539 = vcmask 261120
        %v541 = vsel %vm539, %v522, 0
        %543 = vmatpush.bf16.msra.mxu0 0
        %544 = vmatpush.bf16.msra.mxu0 0
        %545 = vmatpush.bf16.msra.mxu0 0
        %546 = vmatpush.bf16.msra.mxu0 0
        %547 = vmatpush.bf16.msra.mxu0 0
        %548 = vmatpush.bf16.msra.mxu0 0
        %549 = vmatpush.bf16.msra.mxu0 %v536
        %550 = vmatpush.bf16.msra.mxu0 %v535
        %551 = vmatmul.bf16.gmra.mxu0 %v541
        %v552 = vpop.f32.mrf.mxu0
        %v553 = vadd.f32 0.0, %v552
        %v554 = vpop.f32.mrf.mxu0
        %555 = vdwg.mxu0
        %v560 = vunpack.c.l.b16 %v517
        %v561 = vunpack.c.l.b16 %v518
        %v562 = vunpack.c.l.b16 %v519
        %v563 = vunpack.c.l.b16 %v520
        %v564 = vpack.c.b16 %v561, %v560
        %v565 = vpack.c.b16 %v563, %v562
        %v569 = vsel %vm539, %v523, 0
        %571 = vmatpush.bf16.msra.mxu0 0
        %572 = vmatpush.bf16.msra.mxu0 0
        %573 = vmatpush.bf16.msra.mxu0 0
        %574 = vmatpush.bf16.msra.mxu0 0
        %575 = vmatpush.bf16.msra.mxu0 0
        %576 = vmatpush.bf16.msra.mxu0 0
        %577 = vmatpush.bf16.msra.mxu0 %v565
        %578 = vmatpush.bf16.msra.mxu0 %v564
        %579 = vmatmul.bf16.gmra.mxu0 %v569
        %v580 = vpop.f32.mrf.mxu0
        %v581 = vadd.f32 0.0, %v580
        %v582 = vpop.f32.mrf.mxu0
        %583 = vdwg.mxu0
        %v584 = vld [vmem:[%s446] sm:$0xf]
        %v585 = vunpack.c.l.bf16 %v584
        %v586 = vadd.f32 %v585, %v553
        %s587 = scalar_lea.vmem %s453, 44 [#allocation7]
        %v588 = vld [vmem:[%s587] sm:$0xf]
        %v589 = vunpack.c.l.bf16 %v588
        %v590 = vadd.f32 %v589, %v581
        %v591 = vmul.f32 %v586, 0.5
        %v592 = vtanh.pop %v591
        %v593 = vmul.f32 %v592, 0.5
        %v594 = vadd.f32 %v593, 0.5
        %v595 = vtanh.pop %v586
        %597 = vrot.lane.b32.xlu0 %v524, 32
        %v598 = vpop.permute.xlu0 %597
        %v600 = vmul.f32 %v594, %v598
        %602 = vrot.lane.b32.xlu0 %v595, 64
        %v603 = vpop.permute.xlu0 %602
        %v605 = vmul.f32 %v594, %v603
        %607 = vrot.lane.b32.xlu0 %v605, 32
        %v608 = vpop.permute.xlu0 %607
        %v610 = vadd.f32 %v600, %v608
        %v611 = vtanh.pop %v610
        %613 = vrot.lane.b32.xlu0 %v611, 64
        %v614 = vpop.permute.xlu0 %613
        %v616 = vmul.f32 %v594, %v614
        %v617 = vmul.f32 %v590, 0.5
        %v618 = vtanh.pop %v617
        %v619 = vmul.f32 %v618, 0.5
        %v620 = vadd.f32 %v619, 0.5
        %v621 = vtanh.pop %v590
        %623 = vrot.lane.b32.xlu0 %v525, 32
        %v624 = vpop.permute.xlu0 %623
        %v626 = vmul.f32 %v620, %v624
        %628 = vrot.lane.b32.xlu0 %v621, 64
        %v629 = vpop.permute.xlu0 %628
        %v631 = vmul.f32 %v620, %v629
        %633 = vrot.lane.b32.xlu0 %v631, 32
        %v634 = vpop.permute.xlu0 %633
        %v636 = vadd.f32 %v626, %v634
        %v637 = vtanh.pop %v636
        %639 = vrot.lane.b32.xlu0 %v637, 64
        %v640 = vpop.permute.xlu0 %639
        %v642 = vmul.f32 %v620, %v640
        %v643 = vstv %s521
        %vm644 = vcmp.lt.s32.totalorder %v643, %v512
        %v645 = vstv %s526
        %vm646 = vcmp.lt.s32.totalorder %v645, %v512
        %v647 = vpack.c.bf16 %v616, %v616
        %v648 = vpack.c.bf16 %v642, %v642
        %v649 = vsel %vm644, 1, 0
        %650 = vset.pattern.permute.xlu0 0
        %651 = vperm.xlu0 %650, %v649
        %v652 = vpop.permute.xlu0 %651
        %vm653 = vcmp.eq.s32.totalorder %v652, 1
        %v654 = vsel %vm653, %v610, %v598
        %v655 = vsel %vm646, 1, 0
        %656 = vset.pattern.permute.xlu0 0
        %657 = vperm.xlu0 %656, %v655
        %v658 = vpop.permute.xlu0 %657
        %vm659 = vcmp.eq.s32.totalorder %v658, 1
        %v660 = vsel %vm659, %v636, %v624
        %vm661 = vmpackc.low %vm653, %vm653
        %663 = vrot.lane.b32.xlu0 %v522, 96
        %v664 = vpop.permute.xlu0 %663
        %v666 = vsel %vm661, %v647, %v664
        %vm667 = vmpackc.low %vm659, %vm659
        %669 = vrot.lane.b32.xlu0 %v523, 96
        %v670 = vpop.permute.xlu0 %669
        %v672 = vsel %vm667, %v648, %v670
        %v673 = vsel %vm661, %v647, 0
        %675 = vrot.lane.b32.xlu0 %v673, 32
        %v676 = vpop.permute.xlu0 %675
        %vm678 = vcmask 257024
        %679 = vst.msk [vmem:[%s484] sm:$0xf] %vm678, %v676
        %v680 = vsel %vm667, %v648, 0
        %682 = vrot.lane.b32.xlu0 %v680, 32
        %v683 = vpop.permute.xlu0 %682
        %s685 = scalar_lea.vmem %s490, 44 [#allocation9]
        %686 = vst.msk [vmem:[%s685] sm:$0xf] %vm678, %v683
        %s687 = sadd.s32 %s521, 1
        %s688 = ssub.s32 10, %s521
        %v690 = vunpack.c.l.b16 %v666
        %v691 = vpack.c.b16 %v690, %v690
        %692 = vrot.lane.b32.xlu0 %v691, 32
        %v693 = vpop.permute.xlu0 %692
        %v695 = vsel %vm539, %v693, 0
        %697 = vmatpush.bf16.msra.mxu0 0
        %698 = vmatpush.bf16.msra.mxu0 0
        %699 = vmatpush.bf16.msra.mxu0 0
        %700 = vmatpush.bf16.msra.mxu0 0
        %701 = vmatpush.bf16.msra.mxu0 0
        %702 = vmatpush.bf16.msra.mxu0 0
        %703 = vmatpush.bf16.msra.mxu0 %v536
        %704 = vmatpush.bf16.msra.mxu0 %v535
        %705 = vmatmul.bf16.gmra.mxu0 %v695
        %v706 = vpop.f32.mrf.mxu0
        %v707 = vadd.f32 0.0, %v706
        %v708 = vpop.f32.mrf.mxu0
        %709 = vdwg.mxu0
        %v711 = vunpack.c.l.b16 %v672
        %v712 = vpack.c.b16 %v711, %v711
        %713 = vrot.lane.b32.xlu0 %v712, 32
        %v714 = vpop.permute.xlu0 %713
        %v716 = vsel %vm539, %v714, 0
        %718 = vmatpush.bf16.msra.mxu0 0
        %719 = vmatpush.bf16.msra.mxu0 0
        %720 = vmatpush.bf16.msra.mxu0 0
        %721 = vmatpush.bf16.msra.mxu0 0
        %722 = vmatpush.bf16.msra.mxu0 0
        %723 = vmatpush.bf16.msra.mxu0 0
        %724 = vmatpush.bf16.msra.mxu0 %v565
        %725 = vmatpush.bf16.msra.mxu0 %v564
        %726 = vmatmul.bf16.gmra.mxu0 %v716
        %v727 = vpop.f32.mrf.mxu0
        %v728 = vadd.f32 0.0, %v727
        %v729 = vpop.f32.mrf.mxu0
        %730 = vdwg.mxu0
        %s731 = scalar_lea.vmem %s446, 4 [#allocation6]
        %v732 = vld [vmem:[%s731] sm:$0xf]
        %v733 = vunpack.c.l.bf16 %v732
        %v734 = vadd.f32 %v733, %v707
        %s735 = scalar_lea.vmem %s453, 40 [#allocation7]
        %v736 = vld [vmem:[%s735] sm:$0xf]
        %v737 = vunpack.c.l.bf16 %v736
        %v738 = vadd.f32 %v737, %v728
        %v739 = vmul.f32 %v734, 0.5
        %v740 = vtanh.pop %v739
        %v741 = vmul.f32 %v740, 0.5
        %v742 = vadd.f32 %v741, 0.5
        %v743 = vtanh.pop %v734
        %v744 = vmul.f32 %v742, %v654
        %746 = vrot.lane.b32.xlu0 %v743, 64
        %v747 = vpop.permute.xlu0 %746
        %v749 = vmul.f32 %v742, %v747
        %751 = vrot.lane.b32.xlu0 %v749, 32
        %v752 = vpop.permute.xlu0 %751
        %v754 = vadd.f32 %v744, %v752
        %v755 = vtanh.pop %v754
        %757 = vrot.lane.b32.xlu0 %v755, 64
        %v758 = vpop.permute.xlu0 %757
        %v760 = vmul.f32 %v742, %v758
        %v761 = vmul.f32 %v738, 0.5
        %v762 = vtanh.pop %v761
        %v763 = vmul.f32 %v762, 0.5
        %v764 = vadd.f32 %v763, 0.5
        %v765 = vtanh.pop %v738
        %v766 = vmul.f32 %v764, %v660
        %768 = vrot.lane.b32.xlu0 %v765, 64
        %v769 = vpop.permute.xlu0 %768
        %v771 = vmul.f32 %v764, %v769
        %773 = vrot.lane.b32.xlu0 %v771, 32
        %v774 = vpop.permute.xlu0 %773
        %v776 = vadd.f32 %v766, %v774
        %v777 = vtanh.pop %v776
        %779 = vrot.lane.b32.xlu0 %v777, 64
        %v780 = vpop.permute.xlu0 %779
        %v782 = vmul.f32 %v764, %v780
        %v783 = vstv %s687
        %vm784 = vcmp.lt.s32.totalorder %v783, %v512
        %v785 = vstv %s688
        %vm786 = vcmp.lt.s32.totalorder %v785, %v512
        %v787 = vpack.c.bf16 %v760, %v760
        %v788 = vpack.c.bf16 %v782, %v782
        %v789 = vsel %vm784, 1, 0
        %790 = vset.pattern.permute.xlu0 0
        %791 = vperm.xlu0 %790, %v789
        %v792 = vpop.permute.xlu0 %791
        %vm793 = vcmp.eq.s32.totalorder %v792, 1
        %v794 = vsel %vm793, %v754, %v654
        %v795 = vsel %vm786, 1, 0
        %796 = vset.pattern.permute.xlu0 0
        %797 = vperm.xlu0 %796, %v795
        %v798 = vpop.permute.xlu0 %797
        %vm799 = vcmp.eq.s32.totalorder %v798, 1
        %v800 = vsel %vm799, %v776, %v660
        %vm801 = vmpackc.low %vm793, %vm793
        %v802 = vsel %vm801, %v787, %v666
        %vm803 = vmpackc.low %vm799, %vm799
        %v804 = vsel %vm803, %v788, %v672
        %v805 = vsel %vm801, %v787, 0
        %807 = vrot.lane.b32.xlu0 %v805, 32
        %v808 = vpop.permute.xlu0 %807
        %s810 = scalar_lea.vmem %s484, 4 [#allocation8]
        %811 = vst.msk [vmem:[%s810] sm:$0xf] %vm678, %v808
        %v812 = vsel %vm803, %v788, 0
        %814 = vrot.lane.b32.xlu0 %v812, 32
        %v815 = vpop.permute.xlu0 %814
        %s817 = scalar_lea.vmem %s490, 40 [#allocation9]
        %818 = vst.msk [vmem:[%s817] sm:$0xf] %vm678, %v815
        %s819 = sadd.s32 %s521, 2
        %s820 = ssub.s32 9, %s521
        %v822 = vunpack.c.l.b16 %v802
        %v823 = vpack.c.b16 %v822, %v822
        %824 = vrot.lane.b32.xlu0 %v823, 32
        %v825 = vpop.permute.xlu0 %824
        %v827 = vsel %vm539, %v825, 0
        %829 = vmatpush.bf16.msra.mxu0 0
        %830 = vmatpush.bf16.msra.mxu0 0
        %831 = vmatpush.bf16.msra.mxu0 0
        %832 = vmatpush.bf16.msra.mxu0 0
        %833 = vmatpush.bf16.msra.mxu0 0
        %834 = vmatpush.bf16.msra.mxu0 0
        %835 = vmatpush.bf16.msra.mxu0 %v536
        %836 = vmatpush.bf16.msra.mxu0 %v535
        %837 = vmatmul.bf16.gmra.mxu0 %v827
        %v838 = vpop.f32.mrf.mxu0
        %v839 = vadd.f32 0.0, %v838
        %v840 = vpop.f32.mrf.mxu0
        %841 = vdwg.mxu0
        %v843 = vunpack.c.l.b16 %v804
        %v844 = vpack.c.b16 %v843, %v843
        %845 = vrot.lane.b32.xlu0 %v844, 32
        %v846 = vpop.permute.xlu0 %845
        %v848 = vsel %vm539, %v846, 0
        %850 = vmatpush.bf16.msra.mxu0 0
        %851 = vmatpush.bf16.msra.mxu0 0
        %852 = vmatpush.bf16.msra.mxu0 0
        %853 = vmatpush.bf16.msra.mxu0 0
        %854 = vmatpush.bf16.msra.mxu0 0
        %855 = vmatpush.bf16.msra.mxu0 0
        %856 = vmatpush.bf16.msra.mxu0 %v565
        %857 = vmatpush.bf16.msra.mxu0 %v564
        %858 = vmatmul.bf16.gmra.mxu0 %v848
        %v859 = vpop.f32.mrf.mxu0
        %v860 = vadd.f32 0.0, %v859
        %v861 = vpop.f32.mrf.mxu0
        %862 = vdwg.mxu0
        %s863 = scalar_lea.vmem %s446, 8 [#allocation6]
        %v864 = vld [vmem:[%s863] sm:$0xf]
        %v865 = vunpack.c.l.bf16 %v864
        %v866 = vadd.f32 %v865, %v839
        %s867 = scalar_lea.vmem %s453, 36 [#allocation7]
        %v868 = vld [vmem:[%s867] sm:$0xf]
        %v869 = vunpack.c.l.bf16 %v868
        %v870 = vadd.f32 %v869, %v860
        %v871 = vmul.f32 %v866, 0.5
        %v872 = vtanh.pop %v871
        %v873 = vmul.f32 %v872, 0.5
        %v874 = vadd.f32 %v873, 0.5
        %v875 = vtanh.pop %v866
        %v876 = vmul.f32 %v874, %v794
        %878 = vrot.lane.b32.xlu0 %v875, 64
        %v879 = vpop.permute.xlu0 %878
        %v881 = vmul.f32 %v874, %v879
        %883 = vrot.lane.b32.xlu0 %v881, 32
        %v884 = vpop.permute.xlu0 %883
        %v886 = vadd.f32 %v876, %v884
        %v887 = vtanh.pop %v886
        %889 = vrot.lane.b32.xlu0 %v887, 64
        %v890 = vpop.permute.xlu0 %889
        %v892 = vmul.f32 %v874, %v890
        %v893 = vmul.f32 %v870, 0.5
        %v894 = vtanh.pop %v893
        %v895 = vmul.f32 %v894, 0.5
        %v896 = vadd.f32 %v895, 0.5
        %v897 = vtanh.pop %v870
        %v898 = vmul.f32 %v896, %v800
        %900 = vrot.lane.b32.xlu0 %v897, 64
        %v901 = vpop.permute.xlu0 %900
        %v903 = vmul.f32 %v896, %v901
        %905 = vrot.lane.b32.xlu0 %v903, 32
        %v906 = vpop.permute.xlu0 %905
        %v908 = vadd.f32 %v898, %v906
        %v909 = vtanh.pop %v908
        %911 = vrot.lane.b32.xlu0 %v909, 64
        %v912 = vpop.permute.xlu0 %911
        %v914 = vmul.f32 %v896, %v912
        %v915 = vstv %s819
        %vm916 = vcmp.lt.s32.totalorder %v915, %v512
        %v917 = vstv %s820
        %vm918 = vcmp.lt.s32.totalorder %v917, %v512
        %v919 = vpack.c.bf16 %v892, %v892
        %v920 = vpack.c.bf16 %v914, %v914
        %v921 = vsel %vm916, 1, 0
        %922 = vset.pattern.permute.xlu0 0
        %923 = vperm.xlu0 %922, %v921
        %v924 = vpop.permute.xlu0 %923
        %vm925 = vcmp.eq.s32.totalorder %v924, 1
        %v926 = vsel %vm925, %v886, %v794
        %v927 = vsel %vm918, 1, 0
        %928 = vset.pattern.permute.xlu0 0
        %929 = vperm.xlu0 %928, %v927
        %v930 = vpop.permute.xlu0 %929
        %vm931 = vcmp.eq.s32.totalorder %v930, 1
        %v932 = vsel %vm931, %v908, %v800
        %vm933 = vmpackc.low %vm925, %vm925
        %v934 = vsel %vm933, %v919, %v802
        %vm935 = vmpackc.low %vm931, %vm931
        %v936 = vsel %vm935, %v920, %v804
        %v937 = vsel %vm933, %v919, 0
        %939 = vrot.lane.b32.xlu0 %v937, 32
        %v940 = vpop.permute.xlu0 %939
        %s942 = scalar_lea.vmem %s484, 8 [#allocation8]
        %943 = vst.msk [vmem:[%s942] sm:$0xf] %vm678, %v940
        %v944 = vsel %vm935, %v920, 0
        %946 = vrot.lane.b32.xlu0 %v944, 32
        %v947 = vpop.permute.xlu0 %946
        %s949 = scalar_lea.vmem %s490, 36 [#allocation9]
        %950 = vst.msk [vmem:[%s949] sm:$0xf] %vm678, %v947
        %s951 = sadd.s32 %s521, 3
        %s952 = ssub.s32 8, %s521
        %v954 = vunpack.c.l.b16 %v934
        %v955 = vpack.c.b16 %v954, %v954
        %956 = vrot.lane.b32.xlu0 %v955, 32
        %v957 = vpop.permute.xlu0 %956
        %v959 = vsel %vm539, %v957, 0
        %961 = vmatpush.bf16.msra.mxu0 0
        %962 = vmatpush.bf16.msra.mxu0 0
        %963 = vmatpush.bf16.msra.mxu0 0
        %964 = vmatpush.bf16.msra.mxu0 0
        %965 = vmatpush.bf16.msra.mxu0 0
        %966 = vmatpush.bf16.msra.mxu0 0
        %967 = vmatpush.bf16.msra.mxu0 %v536
        %968 = vmatpush.bf16.msra.mxu0 %v535
        %969 = vmatmul.bf16.gmra.mxu0 %v959
        %v970 = vpop.f32.mrf.mxu0
        %v971 = vadd.f32 0.0, %v970
        %v972 = vpop.f32.mrf.mxu0
        %973 = vdwg.mxu0
        %v975 = vunpack.c.l.b16 %v936
        %v976 = vpack.c.b16 %v975, %v975
        %977 = vrot.lane.b32.xlu0 %v976, 32
        %v978 = vpop.permute.xlu0 %977
        %v980 = vsel %vm539, %v978, 0
        %982 = vmatpush.bf16.msra.mxu0 0
        %983 = vmatpush.bf16.msra.mxu0 0
        %984 = vmatpush.bf16.msra.mxu0 0
        %985 = vmatpush.bf16.msra.mxu0 0
        %986 = vmatpush.bf16.msra.mxu0 0
        %987 = vmatpush.bf16.msra.mxu0 0
        %988 = vmatpush.bf16.msra.mxu0 %v565
        %989 = vmatpush.bf16.msra.mxu0 %v564
        %990 = vmatmul.bf16.gmra.mxu0 %v980
        %v991 = vpop.f32.mrf.mxu0
        %v992 = vadd.f32 0.0, %v991
        %v993 = vpop.f32.mrf.mxu0
        %994 = vdwg.mxu0
        %s995 = scalar_lea.vmem %s446, 12 [#allocation6]
        %v996 = vld [vmem:[%s995] sm:$0xf]
        %v997 = vunpack.c.l.bf16 %v996
        %v998 = vadd.f32 %v997, %v971
        %s999 = scalar_lea.vmem %s453, 32 [#allocation7]
        %v1000 = vld [vmem:[%s999] sm:$0xf]
        %v1001 = vunpack.c.l.bf16 %v1000
        %v1002 = vadd.f32 %v1001, %v992
        %v1003 = vmul.f32 %v998, 0.5
        %v1004 = vtanh.pop %v1003
        %v1005 = vmul.f32 %v1004, 0.5
        %v1006 = vadd.f32 %v1005, 0.5
        %v1007 = vtanh.pop %v998
        %v1008 = vmul.f32 %v1006, %v926
        %1010 = vrot.lane.b32.xlu0 %v1007, 64
        %v1011 = vpop.permute.xlu0 %1010
        %v1013 = vmul.f32 %v1006, %v1011
        %1015 = vrot.lane.b32.xlu0 %v1013, 32
        %v1016 = vpop.permute.xlu0 %1015
        %v1018 = vadd.f32 %v1008, %v1016
        %v1019 = vtanh.pop %v1018
        %1021 = vrot.lane.b32.xlu0 %v1019, 64
        %v1022 = vpop.permute.xlu0 %1021
        %v1024 = vmul.f32 %v1006, %v1022
        %v1025 = vmul.f32 %v1002, 0.5
        %v1026 = vtanh.pop %v1025
        %v1027 = vmul.f32 %v1026, 0.5
        %v1028 = vadd.f32 %v1027, 0.5
        %v1029 = vtanh.pop %v1002
        %v1030 = vmul.f32 %v1028, %v932
        %1032 = vrot.lane.b32.xlu0 %v1029, 64
        %v1033 = vpop.permute.xlu0 %1032
        %v1035 = vmul.f32 %v1028, %v1033
        %1037 = vrot.lane.b32.xlu0 %v1035, 32
        %v1038 = vpop.permute.xlu0 %1037
        %v1040 = vadd.f32 %v1030, %v1038
        %v1041 = vtanh.pop %v1040
        %1043 = vrot.lane.b32.xlu0 %v1041, 64
        %v1044 = vpop.permute.xlu0 %1043
        %v1046 = vmul.f32 %v1028, %v1044
        %v1047 = vstv %s951
        %vm1048 = vcmp.lt.s32.totalorder %v1047, %v512
        %v1049 = vstv %s952
        %vm1050 = vcmp.lt.s32.totalorder %v1049, %v512
        %v1051 = vpack.c.bf16 %v1024, %v1024
        %v1052 = vpack.c.bf16 %v1046, %v1046
        %v1053 = vsel %vm1048, 1, 0
        %1054 = vset.pattern.permute.xlu0 0
        %1055 = vperm.xlu0 %1054, %v1053
        %v1056 = vpop.permute.xlu0 %1055
        %vm1057 = vcmp.eq.s32.totalorder %v1056, 1
        %v1058 = vsel %vm1057, %v1018, %v926
        %v1059 = vsel %vm1050, 1, 0
        %1060 = vset.pattern.permute.xlu0 0
        %1061 = vperm.xlu0 %1060, %v1059
        %v1062 = vpop.permute.xlu0 %1061
        %vm1063 = vcmp.eq.s32.totalorder %v1062, 1
        %v1064 = vsel %vm1063, %v1040, %v932
        %vm1065 = vmpackc.low %vm1057, %vm1057
        %v1066 = vsel %vm1065, %v1051, %v934
        %vm1067 = vmpackc.low %vm1063, %vm1063
        %v1068 = vsel %vm1067, %v1052, %v936
        %v1069 = vsel %vm1065, %v1051, 0
        %1071 = vrot.lane.b32.xlu0 %v1069, 32
        %v1072 = vpop.permute.xlu0 %1071
        %s1074 = scalar_lea.vmem %s484, 12 [#allocation8]
        %1075 = vst.msk [vmem:[%s1074] sm:$0xf] %vm678, %v1072
        %v1076 = vsel %vm1067, %v1052, 0
        %1078 = vrot.lane.b32.xlu0 %v1076, 32
        %v1079 = vpop.permute.xlu0 %1078
        %s1081 = scalar_lea.vmem %s490, 32 [#allocation9]
        %1082 = vst.msk [vmem:[%s1081] sm:$0xf] %vm678, %v1079
        %s1083 = sadd.s32 %s521, 4
        %s1084 = ssub.s32 7, %s521
        %v1086 = vunpack.c.l.b16 %v1066
        %v1087 = vpack.c.b16 %v1086, %v1086
        %1088 = vrot.lane.b32.xlu0 %v1087, 32
        %v1089 = vpop.permute.xlu0 %1088
        %v1091 = vsel %vm539, %v1089, 0
        %1093 = vmatpush.bf16.msra.mxu0 0
        %1094 = vmatpush.bf16.msra.mxu0 0
        %1095 = vmatpush.bf16.msra.mxu0 0
        %1096 = vmatpush.bf16.msra.mxu0 0
        %1097 = vmatpush.bf16.msra.mxu0 0
        %1098 = vmatpush.bf16.msra.mxu0 0
        %1099 = vmatpush.bf16.msra.mxu0 %v536
        %1100 = vmatpush.bf16.msra.mxu0 %v535
        %1101 = vmatmul.bf16.gmra.mxu0 %v1091
        %v1102 = vpop.f32.mrf.mxu0
        %v1103 = vadd.f32 0.0, %v1102
        %v1104 = vpop.f32.mrf.mxu0
        %1105 = vdwg.mxu0
        %v1107 = vunpack.c.l.b16 %v1068
        %v1108 = vpack.c.b16 %v1107, %v1107
        %1109 = vrot.lane.b32.xlu0 %v1108, 32
        %v1110 = vpop.permute.xlu0 %1109
        %v1112 = vsel %vm539, %v1110, 0
        %1114 = vmatpush.bf16.msra.mxu0 0
        %1115 = vmatpush.bf16.msra.mxu0 0
        %1116 = vmatpush.bf16.msra.mxu0 0
        %1117 = vmatpush.bf16.msra.mxu0 0
        %1118 = vmatpush.bf16.msra.mxu0 0
        %1119 = vmatpush.bf16.msra.mxu0 0
        %1120 = vmatpush.bf16.msra.mxu0 %v565
        %1121 = vmatpush.bf16.msra.mxu0 %v564
        %1122 = vmatmul.bf16.gmra.mxu0 %v1112
        %v1123 = vpop.f32.mrf.mxu0
        %v1124 = vadd.f32 0.0, %v1123
        %v1125 = vpop.f32.mrf.mxu0
        %1126 = vdwg.mxu0
        %s1127 = scalar_lea.vmem %s446, 16 [#allocation6]
        %v1128 = vld [vmem:[%s1127] sm:$0xf]
        %v1129 = vunpack.c.l.bf16 %v1128
        %v1130 = vadd.f32 %v1129, %v1103
        %s1131 = scalar_lea.vmem %s453, 28 [#allocation7]
        %v1132 = vld [vmem:[%s1131] sm:$0xf]
        %v1133 = vunpack.c.l.bf16 %v1132
        %v1134 = vadd.f32 %v1133, %v1124
        %v1135 = vmul.f32 %v1130, 0.5
        %v1136 = vtanh.pop %v1135
        %v1137 = vmul.f32 %v1136, 0.5
        %v1138 = vadd.f32 %v1137, 0.5
        %v1139 = vtanh.pop %v1130
        %v1140 = vmul.f32 %v1138, %v1058
        %1142 = vrot.lane.b32.xlu0 %v1139, 64
        %v1143 = vpop.permute.xlu0 %1142
        %v1145 = vmul.f32 %v1138, %v1143
        %1147 = vrot.lane.b32.xlu0 %v1145, 32
        %v1148 = vpop.permute.xlu0 %1147
        %v1150 = vadd.f32 %v1140, %v1148
        %v1151 = vtanh.pop %v1150
        %1153 = vrot.lane.b32.xlu0 %v1151, 64
        %v1154 = vpop.permute.xlu0 %1153
        %v1156 = vmul.f32 %v1138, %v1154
        %v1157 = vmul.f32 %v1134, 0.5
        %v1158 = vtanh.pop %v1157
        %v1159 = vmul.f32 %v1158, 0.5
        %v1160 = vadd.f32 %v1159, 0.5
        %v1161 = vtanh.pop %v1134
        %v1162 = vmul.f32 %v1160, %v1064
        %1164 = vrot.lane.b32.xlu0 %v1161, 64
        %v1165 = vpop.permute.xlu0 %1164
        %v1167 = vmul.f32 %v1160, %v1165
        %1169 = vrot.lane.b32.xlu0 %v1167, 32
        %v1170 = vpop.permute.xlu0 %1169
        %v1172 = vadd.f32 %v1162, %v1170
        %v1173 = vtanh.pop %v1172
        %1175 = vrot.lane.b32.xlu0 %v1173, 64
        %v1176 = vpop.permute.xlu0 %1175
        %v1178 = vmul.f32 %v1160, %v1176
        %v1179 = vstv %s1083
        %vm1180 = vcmp.lt.s32.totalorder %v1179, %v512
        %v1181 = vstv %s1084
        %vm1182 = vcmp.lt.s32.totalorder %v1181, %v512
        %v1183 = vpack.c.bf16 %v1156, %v1156
        %v1184 = vpack.c.bf16 %v1178, %v1178
        %v1185 = vsel %vm1180, 1, 0
        %1186 = vset.pattern.permute.xlu0 0
        %1187 = vperm.xlu0 %1186, %v1185
        %v1188 = vpop.permute.xlu0 %1187
        %vm1189 = vcmp.eq.s32.totalorder %v1188, 1
        %v1190 = vsel %vm1189, %v1150, %v1058
        %v1191 = vsel %vm1182, 1, 0
        %1192 = vset.pattern.permute.xlu0 0
        %1193 = vperm.xlu0 %1192, %v1191
        %v1194 = vpop.permute.xlu0 %1193
        %vm1195 = vcmp.eq.s32.totalorder %v1194, 1
        %v1196 = vsel %vm1195, %v1172, %v1064
        %vm1197 = vmpackc.low %vm1189, %vm1189
        %v1198 = vsel %vm1197, %v1183, %v1066
        %vm1199 = vmpackc.low %vm1195, %vm1195
        %v1200 = vsel %vm1199, %v1184, %v1068
        %v1201 = vsel %vm1197, %v1183, 0
        %1203 = vrot.lane.b32.xlu0 %v1201, 32
        %v1204 = vpop.permute.xlu0 %1203
        %s1206 = scalar_lea.vmem %s484, 16 [#allocation8]
        %1207 = vst.msk [vmem:[%s1206] sm:$0xf] %vm678, %v1204
        %v1208 = vsel %vm1199, %v1184, 0
        %1210 = vrot.lane.b32.xlu0 %v1208, 32
        %v1211 = vpop.permute.xlu0 %1210
        %s1213 = scalar_lea.vmem %s490, 28 [#allocation9]
        %1214 = vst.msk [vmem:[%s1213] sm:$0xf] %vm678, %v1211
        %s1215 = sadd.s32 %s521, 5
        %s1216 = ssub.s32 6, %s521
        %v1218 = vunpack.c.l.b16 %v1198
        %v1219 = vpack.c.b16 %v1218, %v1218
        %1220 = vrot.lane.b32.xlu0 %v1219, 32
        %v1221 = vpop.permute.xlu0 %1220
        %v1223 = vsel %vm539, %v1221, 0
        %1225 = vmatpush.bf16.msra.mxu0 0
        %1226 = vmatpush.bf16.msra.mxu0 0
        %1227 = vmatpush.bf16.msra.mxu0 0
        %1228 = vmatpush.bf16.msra.mxu0 0
        %1229 = vmatpush.bf16.msra.mxu0 0
        %1230 = vmatpush.bf16.msra.mxu0 0
        %1231 = vmatpush.bf16.msra.mxu0 %v536
        %1232 = vmatpush.bf16.msra.mxu0 %v535
        %1233 = vmatmul.bf16.gmra.mxu0 %v1223
        %v1234 = vpop.f32.mrf.mxu0
        %v1235 = vadd.f32 0.0, %v1234
        %v1236 = vpop.f32.mrf.mxu0
        %1237 = vdwg.mxu0
        %v1239 = vunpack.c.l.b16 %v1200
        %v1240 = vpack.c.b16 %v1239, %v1239
        %1241 = vrot.lane.b32.xlu0 %v1240, 32
        %v1242 = vpop.permute.xlu0 %1241
        %v1244 = vsel %vm539, %v1242, 0
        %1246 = vmatpush.bf16.msra.mxu0 0
        %1247 = vmatpush.bf16.msra.mxu0 0
        %1248 = vmatpush.bf16.msra.mxu0 0
        %1249 = vmatpush.bf16.msra.mxu0 0
        %1250 = vmatpush.bf16.msra.mxu0 0
        %1251 = vmatpush.bf16.msra.mxu0 0
        %1252 = vmatpush.bf16.msra.mxu0 %v565
        %1253 = vmatpush.bf16.msra.mxu0 %v564
        %1254 = vmatmul.bf16.gmra.mxu0 %v1244
        %v1255 = vpop.f32.mrf.mxu0
        %v1256 = vadd.f32 0.0, %v1255
        %v1257 = vpop.f32.mrf.mxu0
        %1258 = vdwg.mxu0
        %s1259 = scalar_lea.vmem %s446, 20 [#allocation6]
        %v1260 = vld [vmem:[%s1259] sm:$0xf]
        %v1261 = vunpack.c.l.bf16 %v1260
        %v1262 = vadd.f32 %v1261, %v1235
        %s1263 = scalar_lea.vmem %s453, 24 [#allocation7]
        %v1264 = vld [vmem:[%s1263] sm:$0xf]
        %v1265 = vunpack.c.l.bf16 %v1264
        %v1266 = vadd.f32 %v1265, %v1256
        %v1267 = vmul.f32 %v1262, 0.5
        %v1268 = vtanh.pop %v1267
        %v1269 = vmul.f32 %v1268, 0.5
        %v1270 = vadd.f32 %v1269, 0.5
        %v1271 = vtanh.pop %v1262
        %v1272 = vmul.f32 %v1270, %v1190
        %1274 = vrot.lane.b32.xlu0 %v1271, 64
        %v1275 = vpop.permute.xlu0 %1274
        %v1277 = vmul.f32 %v1270, %v1275
        %1279 = vrot.lane.b32.xlu0 %v1277, 32
        %v1280 = vpop.permute.xlu0 %1279
        %v1282 = vadd.f32 %v1272, %v1280
        %v1283 = vtanh.pop %v1282
        %1285 = vrot.lane.b32.xlu0 %v1283, 64
        %v1286 = vpop.permute.xlu0 %1285
        %v1288 = vmul.f32 %v1270, %v1286
        %v1289 = vmul.f32 %v1266, 0.5
        %v1290 = vtanh.pop %v1289
        %v1291 = vmul.f32 %v1290, 0.5
        %v1292 = vadd.f32 %v1291, 0.5
        %v1293 = vtanh.pop %v1266
        %v1294 = vmul.f32 %v1292, %v1196
        %1296 = vrot.lane.b32.xlu0 %v1293, 64
        %v1297 = vpop.permute.xlu0 %1296
        %v1299 = vmul.f32 %v1292, %v1297
        %1301 = vrot.lane.b32.xlu0 %v1299, 32
        %v1302 = vpop.permute.xlu0 %1301
        %v1304 = vadd.f32 %v1294, %v1302
        %v1305 = vtanh.pop %v1304
        %1307 = vrot.lane.b32.xlu0 %v1305, 64
        %v1308 = vpop.permute.xlu0 %1307
        %v1310 = vmul.f32 %v1292, %v1308
        %v1311 = vstv %s1215
        %vm1312 = vcmp.lt.s32.totalorder %v1311, %v512
        %v1313 = vstv %s1216
        %vm1314 = vcmp.lt.s32.totalorder %v1313, %v512
        %v1315 = vpack.c.bf16 %v1288, %v1288
        %v1316 = vpack.c.bf16 %v1310, %v1310
        %v1317 = vsel %vm1312, 1, 0
        %1318 = vset.pattern.permute.xlu0 0
        %1319 = vperm.xlu0 %1318, %v1317
        %v1320 = vpop.permute.xlu0 %1319
        %vm1321 = vcmp.eq.s32.totalorder %v1320, 1
        %v1322 = vsel %vm1321, %v1282, %v1190
        %v1323 = vsel %vm1314, 1, 0
        %1324 = vset.pattern.permute.xlu0 0
        %1325 = vperm.xlu0 %1324, %v1323
        %v1326 = vpop.permute.xlu0 %1325
        %vm1327 = vcmp.eq.s32.totalorder %v1326, 1
        %v1328 = vsel %vm1327, %v1304, %v1196
        %vm1329 = vmpackc.low %vm1321, %vm1321
        %v1330 = vsel %vm1329, %v1315, %v1198
        %vm1331 = vmpackc.low %vm1327, %vm1327
        %v1332 = vsel %vm1331, %v1316, %v1200
        %v1333 = vsel %vm1329, %v1315, 0
        %1335 = vrot.lane.b32.xlu0 %v1333, 32
        %v1336 = vpop.permute.xlu0 %1335
        %s1338 = scalar_lea.vmem %s484, 20 [#allocation8]
        %1339 = vst.msk [vmem:[%s1338] sm:$0xf] %vm678, %v1336
        %v1340 = vsel %vm1331, %v1316, 0
        %1342 = vrot.lane.b32.xlu0 %v1340, 32
        %v1343 = vpop.permute.xlu0 %1342
        %s1345 = scalar_lea.vmem %s490, 24 [#allocation9]
        %1346 = vst.msk [vmem:[%s1345] sm:$0xf] %vm678, %v1343
        %s1347 = sadd.s32 %s521, 6
        %s1348 = ssub.s32 5, %s521
        %v1350 = vunpack.c.l.b16 %v1330
        %v1351 = vpack.c.b16 %v1350, %v1350
        %1352 = vrot.lane.b32.xlu0 %v1351, 32
        %v1353 = vpop.permute.xlu0 %1352
        %v1355 = vsel %vm539, %v1353, 0
        %1357 = vmatpush.bf16.msra.mxu0 0
        %1358 = vmatpush.bf16.msra.mxu0 0
        %1359 = vmatpush.bf16.msra.mxu0 0
        %1360 = vmatpush.bf16.msra.mxu0 0
        %1361 = vmatpush.bf16.msra.mxu0 0
        %1362 = vmatpush.bf16.msra.mxu0 0
        %1363 = vmatpush.bf16.msra.mxu0 %v536
        %1364 = vmatpush.bf16.msra.mxu0 %v535
        %1365 = vmatmul.bf16.gmra.mxu0 %v1355
        %v1366 = vpop.f32.mrf.mxu0
        %v1367 = vadd.f32 0.0, %v1366
        %v1368 = vpop.f32.mrf.mxu0
        %1369 = vdwg.mxu0
        %v1371 = vunpack.c.l.b16 %v1332
        %v1372 = vpack.c.b16 %v1371, %v1371
        %1373 = vrot.lane.b32.xlu0 %v1372, 32
        %v1374 = vpop.permute.xlu0 %1373
        %v1376 = vsel %vm539, %v1374, 0
        %1378 = vmatpush.bf16.msra.mxu0 0
        %1379 = vmatpush.bf16.msra.mxu0 0
        %1380 = vmatpush.bf16.msra.mxu0 0
        %1381 = vmatpush.bf16.msra.mxu0 0
        %1382 = vmatpush.bf16.msra.mxu0 0
        %1383 = vmatpush.bf16.msra.mxu0 0
        %1384 = vmatpush.bf16.msra.mxu0 %v565
        %1385 = vmatpush.bf16.msra.mxu0 %v564
        %1386 = vmatmul.bf16.gmra.mxu0 %v1376
        %v1387 = vpop.f32.mrf.mxu0
        %v1388 = vadd.f32 0.0, %v1387
        %v1389 = vpop.f32.mrf.mxu0
        %1390 = vdwg.mxu0
        %s1391 = scalar_lea.vmem %s446, 24 [#allocation6]
        %v1392 = vld [vmem:[%s1391] sm:$0xf]
        %v1393 = vunpack.c.l.bf16 %v1392
        %v1394 = vadd.f32 %v1393, %v1367
        %s1395 = scalar_lea.vmem %s453, 20 [#allocation7]
        %v1396 = vld [vmem:[%s1395] sm:$0xf]
        %v1397 = vunpack.c.l.bf16 %v1396
        %v1398 = vadd.f32 %v1397, %v1388
        %v1399 = vmul.f32 %v1394, 0.5
        %v1400 = vtanh.pop %v1399
        %v1401 = vmul.f32 %v1400, 0.5
        %v1402 = vadd.f32 %v1401, 0.5
        %v1403 = vtanh.pop %v1394
        %v1404 = vmul.f32 %v1402, %v1322
        %1406 = vrot.lane.b32.xlu0 %v1403, 64
        %v1407 = vpop.permute.xlu0 %1406
        %v1409 = vmul.f32 %v1402, %v1407
        %1411 = vrot.lane.b32.xlu0 %v1409, 32
        %v1412 = vpop.permute.xlu0 %1411
        %v1414 = vadd.f32 %v1404, %v1412
        %v1415 = vtanh.pop %v1414
        %1417 = vrot.lane.b32.xlu0 %v1415, 64
        %v1418 = vpop.permute.xlu0 %1417
        %v1420 = vmul.f32 %v1402, %v1418
        %v1421 = vmul.f32 %v1398, 0.5
        %v1422 = vtanh.pop %v1421
        %v1423 = vmul.f32 %v1422, 0.5
        %v1424 = vadd.f32 %v1423, 0.5
        %v1425 = vtanh.pop %v1398
        %v1426 = vmul.f32 %v1424, %v1328
        %1428 = vrot.lane.b32.xlu0 %v1425, 64
        %v1429 = vpop.permute.xlu0 %1428
        %v1431 = vmul.f32 %v1424, %v1429
        %1433 = vrot.lane.b32.xlu0 %v1431, 32
        %v1434 = vpop.permute.xlu0 %1433
        %v1436 = vadd.f32 %v1426, %v1434
        %v1437 = vtanh.pop %v1436
        %1439 = vrot.lane.b32.xlu0 %v1437, 64
        %v1440 = vpop.permute.xlu0 %1439
        %v1442 = vmul.f32 %v1424, %v1440
        %v1443 = vstv %s1347
        %vm1444 = vcmp.lt.s32.totalorder %v1443, %v512
        %v1445 = vstv %s1348
        %vm1446 = vcmp.lt.s32.totalorder %v1445, %v512
        %v1447 = vpack.c.bf16 %v1420, %v1420
        %v1448 = vpack.c.bf16 %v1442, %v1442
        %v1449 = vsel %vm1444, 1, 0
        %1450 = vset.pattern.permute.xlu0 0
        %1451 = vperm.xlu0 %1450, %v1449
        %v1452 = vpop.permute.xlu0 %1451
        %vm1453 = vcmp.eq.s32.totalorder %v1452, 1
        %v1454 = vsel %vm1453, %v1414, %v1322
        %v1455 = vsel %vm1446, 1, 0
        %1456 = vset.pattern.permute.xlu0 0
        %1457 = vperm.xlu0 %1456, %v1455
        %v1458 = vpop.permute.xlu0 %1457
        %vm1459 = vcmp.eq.s32.totalorder %v1458, 1
        %v1460 = vsel %vm1459, %v1436, %v1328
        %vm1461 = vmpackc.low %vm1453, %vm1453
        %v1462 = vsel %vm1461, %v1447, %v1330
        %vm1463 = vmpackc.low %vm1459, %vm1459
        %v1464 = vsel %vm1463, %v1448, %v1332
        %v1465 = vsel %vm1461, %v1447, 0
        %1467 = vrot.lane.b32.xlu0 %v1465, 32
        %v1468 = vpop.permute.xlu0 %1467
        %s1470 = scalar_lea.vmem %s484, 24 [#allocation8]
        %1471 = vst.msk [vmem:[%s1470] sm:$0xf] %vm678, %v1468
        %v1472 = vsel %vm1463, %v1448, 0
        %1474 = vrot.lane.b32.xlu0 %v1472, 32
        %v1475 = vpop.permute.xlu0 %1474
        %s1477 = scalar_lea.vmem %s490, 20 [#allocation9]
        %1478 = vst.msk [vmem:[%s1477] sm:$0xf] %vm678, %v1475
        %s1479 = sadd.s32 %s521, 7
        %s1480 = ssub.s32 4, %s521
        %v1482 = vunpack.c.l.b16 %v1462
        %v1483 = vpack.c.b16 %v1482, %v1482
        %1484 = vrot.lane.b32.xlu0 %v1483, 32
        %v1485 = vpop.permute.xlu0 %1484
        %v1487 = vsel %vm539, %v1485, 0
        %1489 = vmatpush.bf16.msra.mxu0 0
        %1490 = vmatpush.bf16.msra.mxu0 0
        %1491 = vmatpush.bf16.msra.mxu0 0
        %1492 = vmatpush.bf16.msra.mxu0 0
        %1493 = vmatpush.bf16.msra.mxu0 0
        %1494 = vmatpush.bf16.msra.mxu0 0
        %1495 = vmatpush.bf16.msra.mxu0 %v536
        %1496 = vmatpush.bf16.msra.mxu0 %v535
        %1497 = vmatmul.bf16.gmra.mxu0 %v1487
        %v1498 = vpop.f32.mrf.mxu0
        %v1499 = vadd.f32 0.0, %v1498
        %v1500 = vpop.f32.mrf.mxu0
        %1501 = vdwg.mxu0
        %v1503 = vunpack.c.l.b16 %v1464
        %v1504 = vpack.c.b16 %v1503, %v1503
        %1505 = vrot.lane.b32.xlu0 %v1504, 32
        %v1506 = vpop.permute.xlu0 %1505
        %v1508 = vsel %vm539, %v1506, 0
        %1510 = vmatpush.bf16.msra.mxu0 0
        %1511 = vmatpush.bf16.msra.mxu0 0
        %1512 = vmatpush.bf16.msra.mxu0 0
        %1513 = vmatpush.bf16.msra.mxu0 0
        %1514 = vmatpush.bf16.msra.mxu0 0
        %1515 = vmatpush.bf16.msra.mxu0 0
        %1516 = vmatpush.bf16.msra.mxu0 %v565
        %1517 = vmatpush.bf16.msra.mxu0 %v564
        %1518 = vmatmul.bf16.gmra.mxu0 %v1508
        %v1519 = vpop.f32.mrf.mxu0
        %v1520 = vadd.f32 0.0, %v1519
        %v1521 = vpop.f32.mrf.mxu0
        %1522 = vdwg.mxu0
        %s1523 = scalar_lea.vmem %s446, 28 [#allocation6]
        %v1524 = vld [vmem:[%s1523] sm:$0xf]
        %v1525 = vunpack.c.l.bf16 %v1524
        %v1526 = vadd.f32 %v1525, %v1499
        %s1527 = scalar_lea.vmem %s453, 16 [#allocation7]
        %v1528 = vld [vmem:[%s1527] sm:$0xf]
        %v1529 = vunpack.c.l.bf16 %v1528
        %v1530 = vadd.f32 %v1529, %v1520
        %v1531 = vmul.f32 %v1526, 0.5
        %v1532 = vtanh.pop %v1531
        %v1533 = vmul.f32 %v1532, 0.5
        %v1534 = vadd.f32 %v1533, 0.5
        %v1535 = vtanh.pop %v1526
        %v1536 = vmul.f32 %v1534, %v1454
        %1538 = vrot.lane.b32.xlu0 %v1535, 64
        %v1539 = vpop.permute.xlu0 %1538
        %v1541 = vmul.f32 %v1534, %v1539
        %1543 = vrot.lane.b32.xlu0 %v1541, 32
        %v1544 = vpop.permute.xlu0 %1543
        %v1546 = vadd.f32 %v1536, %v1544
        %v1547 = vtanh.pop %v1546
        %1549 = vrot.lane.b32.xlu0 %v1547, 64
        %v1550 = vpop.permute.xlu0 %1549
        %v1552 = vmul.f32 %v1534, %v1550
        %v1553 = vmul.f32 %v1530, 0.5
        %v1554 = vtanh.pop %v1553
        %v1555 = vmul.f32 %v1554, 0.5
        %v1556 = vadd.f32 %v1555, 0.5
        %v1557 = vtanh.pop %v1530
        %v1558 = vmul.f32 %v1556, %v1460
        %1560 = vrot.lane.b32.xlu0 %v1557, 64
        %v1561 = vpop.permute.xlu0 %1560
        %v1563 = vmul.f32 %v1556, %v1561
        %1565 = vrot.lane.b32.xlu0 %v1563, 32
        %v1566 = vpop.permute.xlu0 %1565
        %v1568 = vadd.f32 %v1558, %v1566
        %v1569 = vtanh.pop %v1568
        %1571 = vrot.lane.b32.xlu0 %v1569, 64
        %v1572 = vpop.permute.xlu0 %1571
        %v1574 = vmul.f32 %v1556, %v1572
        %v1575 = vstv %s1479
        %vm1576 = vcmp.lt.s32.totalorder %v1575, %v512
        %v1577 = vstv %s1480
        %vm1578 = vcmp.lt.s32.totalorder %v1577, %v512
        %v1579 = vpack.c.bf16 %v1552, %v1552
        %v1580 = vpack.c.bf16 %v1574, %v1574
        %v1581 = vsel %vm1576, 1, 0
        %1582 = vset.pattern.permute.xlu0 0
        %1583 = vperm.xlu0 %1582, %v1581
        %v1584 = vpop.permute.xlu0 %1583
        %vm1585 = vcmp.eq.s32.totalorder %v1584, 1
        %v1586 = vsel %vm1585, %v1546, %v1454
        %v1587 = vsel %vm1578, 1, 0
        %1588 = vset.pattern.permute.xlu0 0
        %1589 = vperm.xlu0 %1588, %v1587
        %v1590 = vpop.permute.xlu0 %1589
        %vm1591 = vcmp.eq.s32.totalorder %v1590, 1
        %v1592 = vsel %vm1591, %v1568, %v1460
        %vm1593 = vmpackc.low %vm1585, %vm1585
        %v1594 = vsel %vm1593, %v1579, %v1462
        %vm1595 = vmpackc.low %vm1591, %vm1591
        %v1596 = vsel %vm1595, %v1580, %v1464
        %v1597 = vsel %vm1593, %v1579, 0
        %1599 = vrot.lane.b32.xlu0 %v1597, 32
        %v1600 = vpop.permute.xlu0 %1599
        %s1602 = scalar_lea.vmem %s484, 28 [#allocation8]
        %1603 = vst.msk [vmem:[%s1602] sm:$0xf] %vm678, %v1600
        %v1604 = vsel %vm1595, %v1580, 0
        %1606 = vrot.lane.b32.xlu0 %v1604, 32
        %v1607 = vpop.permute.xlu0 %1606
        %s1609 = scalar_lea.vmem %s490, 16 [#allocation9]
        %1610 = vst.msk [vmem:[%s1609] sm:$0xf] %vm678, %v1607
        %s1611 = sadd.s32 %s521, 8
        %s1612 = ssub.s32 3, %s521
        %v1614 = vunpack.c.l.b16 %v1594
        %v1615 = vpack.c.b16 %v1614, %v1614
        %1616 = vrot.lane.b32.xlu0 %v1615, 32
        %v1617 = vpop.permute.xlu0 %1616
        %v1619 = vsel %vm539, %v1617, 0
        %1621 = vmatpush.bf16.msra.mxu0 0
        %1622 = vmatpush.bf16.msra.mxu0 0
        %1623 = vmatpush.bf16.msra.mxu0 0
        %1624 = vmatpush.bf16.msra.mxu0 0
        %1625 = vmatpush.bf16.msra.mxu0 0
        %1626 = vmatpush.bf16.msra.mxu0 0
        %1627 = vmatpush.bf16.msra.mxu0 %v536
        %1628 = vmatpush.bf16.msra.mxu0 %v535
        %1629 = vmatmul.bf16.gmra.mxu0 %v1619
        %v1630 = vpop.f32.mrf.mxu0
        %v1631 = vadd.f32 0.0, %v1630
        %v1632 = vpop.f32.mrf.mxu0
        %1633 = vdwg.mxu0
        %v1635 = vunpack.c.l.b16 %v1596
        %v1636 = vpack.c.b16 %v1635, %v1635
        %1637 = vrot.lane.b32.xlu0 %v1636, 32
        %v1638 = vpop.permute.xlu0 %1637
        %v1640 = vsel %vm539, %v1638, 0
        %1642 = vmatpush.bf16.msra.mxu0 0
        %1643 = vmatpush.bf16.msra.mxu0 0
        %1644 = vmatpush.bf16.msra.mxu0 0
        %1645 = vmatpush.bf16.msra.mxu0 0
        %1646 = vmatpush.bf16.msra.mxu0 0
        %1647 = vmatpush.bf16.msra.mxu0 0
        %1648 = vmatpush.bf16.msra.mxu0 %v565
        %1649 = vmatpush.bf16.msra.mxu0 %v564
        %1650 = vmatmul.bf16.gmra.mxu0 %v1640
        %v1651 = vpop.f32.mrf.mxu0
        %v1652 = vadd.f32 0.0, %v1651
        %v1653 = vpop.f32.mrf.mxu0
        %1654 = vdwg.mxu0
        %s1655 = scalar_lea.vmem %s446, 32 [#allocation6]
        %v1656 = vld [vmem:[%s1655] sm:$0xf]
        %v1657 = vunpack.c.l.bf16 %v1656
        %v1658 = vadd.f32 %v1657, %v1631
        %s1659 = scalar_lea.vmem %s453, 12 [#allocation7]
        %v1660 = vld [vmem:[%s1659] sm:$0xf]
        %v1661 = vunpack.c.l.bf16 %v1660
        %v1662 = vadd.f32 %v1661, %v1652
        %v1663 = vmul.f32 %v1658, 0.5
        %v1664 = vtanh.pop %v1663
        %v1665 = vmul.f32 %v1664, 0.5
        %v1666 = vadd.f32 %v1665, 0.5
        %v1667 = vtanh.pop %v1658
        %v1668 = vmul.f32 %v1666, %v1586
        %1670 = vrot.lane.b32.xlu0 %v1667, 64
        %v1671 = vpop.permute.xlu0 %1670
        %v1673 = vmul.f32 %v1666, %v1671
        %1675 = vrot.lane.b32.xlu0 %v1673, 32
        %v1676 = vpop.permute.xlu0 %1675
        %v1678 = vadd.f32 %v1668, %v1676
        %v1679 = vtanh.pop %v1678
        %1681 = vrot.lane.b32.xlu0 %v1679, 64
        %v1682 = vpop.permute.xlu0 %1681
        %v1684 = vmul.f32 %v1666, %v1682
        %v1685 = vmul.f32 %v1662, 0.5
        %v1686 = vtanh.pop %v1685
        %v1687 = vmul.f32 %v1686, 0.5
        %v1688 = vadd.f32 %v1687, 0.5
        %v1689 = vtanh.pop %v1662
        %v1690 = vmul.f32 %v1688, %v1592
        %1692 = vrot.lane.b32.xlu0 %v1689, 64
        %v1693 = vpop.permute.xlu0 %1692
        %v1695 = vmul.f32 %v1688, %v1693
        %1697 = vrot.lane.b32.xlu0 %v1695, 32
        %v1698 = vpop.permute.xlu0 %1697
        %v1700 = vadd.f32 %v1690, %v1698
        %v1701 = vtanh.pop %v1700
        %1703 = vrot.lane.b32.xlu0 %v1701, 64
        %v1704 = vpop.permute.xlu0 %1703
        %v1706 = vmul.f32 %v1688, %v1704
        %v1707 = vstv %s1611
        %vm1708 = vcmp.lt.s32.totalorder %v1707, %v512
        %v1709 = vstv %s1612
        %vm1710 = vcmp.lt.s32.totalorder %v1709, %v512
        %v1711 = vpack.c.bf16 %v1684, %v1684
        %v1712 = vpack.c.bf16 %v1706, %v1706
        %v1713 = vsel %vm1708, 1, 0
        %1714 = vset.pattern.permute.xlu0 0
        %1715 = vperm.xlu0 %1714, %v1713
        %v1716 = vpop.permute.xlu0 %1715
        %vm1717 = vcmp.eq.s32.totalorder %v1716, 1
        %v1718 = vsel %vm1717, %v1678, %v1586
        %v1719 = vsel %vm1710, 1, 0
        %1720 = vset.pattern.permute.xlu0 0
        %1721 = vperm.xlu0 %1720, %v1719
        %v1722 = vpop.permute.xlu0 %1721
        %vm1723 = vcmp.eq.s32.totalorder %v1722, 1
        %v1724 = vsel %vm1723, %v1700, %v1592
        %vm1725 = vmpackc.low %vm1717, %vm1717
        %v1726 = vsel %vm1725, %v1711, %v1594
        %vm1727 = vmpackc.low %vm1723, %vm1723
        %v1728 = vsel %vm1727, %v1712, %v1596
        %v1729 = vsel %vm1725, %v1711, 0
        %1731 = vrot.lane.b32.xlu0 %v1729, 32
        %v1732 = vpop.permute.xlu0 %1731
        %s1734 = scalar_lea.vmem %s484, 32 [#allocation8]
        %1735 = vst.msk [vmem:[%s1734] sm:$0xf] %vm678, %v1732
        %v1736 = vsel %vm1727, %v1712, 0
        %1738 = vrot.lane.b32.xlu0 %v1736, 32
        %v1739 = vpop.permute.xlu0 %1738
        %s1741 = scalar_lea.vmem %s490, 12 [#allocation9]
        %1742 = vst.msk [vmem:[%s1741] sm:$0xf] %vm678, %v1739
        %s1743 = sadd.s32 %s521, 9
        %s1744 = ssub.s32 2, %s521
        %v1746 = vunpack.c.l.b16 %v1726
        %v1747 = vpack.c.b16 %v1746, %v1746
        %1748 = vrot.lane.b32.xlu0 %v1747, 32
        %v1749 = vpop.permute.xlu0 %1748
        %v1751 = vsel %vm539, %v1749, 0
        %1753 = vmatpush.bf16.msra.mxu0 0
        %1754 = vmatpush.bf16.msra.mxu0 0
        %1755 = vmatpush.bf16.msra.mxu0 0
        %1756 = vmatpush.bf16.msra.mxu0 0
        %1757 = vmatpush.bf16.msra.mxu0 0
        %1758 = vmatpush.bf16.msra.mxu0 0
        %1759 = vmatpush.bf16.msra.mxu0 %v536
        %1760 = vmatpush.bf16.msra.mxu0 %v535
        %1761 = vmatmul.bf16.gmra.mxu0 %v1751
        %v1762 = vpop.f32.mrf.mxu0
        %v1763 = vadd.f32 0.0, %v1762
        %v1764 = vpop.f32.mrf.mxu0
        %1765 = vdwg.mxu0
        %v1767 = vunpack.c.l.b16 %v1728
        %v1768 = vpack.c.b16 %v1767, %v1767
        %1769 = vrot.lane.b32.xlu0 %v1768, 32
        %v1770 = vpop.permute.xlu0 %1769
        %v1772 = vsel %vm539, %v1770, 0
        %1774 = vmatpush.bf16.msra.mxu0 0
        %1775 = vmatpush.bf16.msra.mxu0 0
        %1776 = vmatpush.bf16.msra.mxu0 0
        %1777 = vmatpush.bf16.msra.mxu0 0
        %1778 = vmatpush.bf16.msra.mxu0 0
        %1779 = vmatpush.bf16.msra.mxu0 0
        %1780 = vmatpush.bf16.msra.mxu0 %v565
        %1781 = vmatpush.bf16.msra.mxu0 %v564
        %1782 = vmatmul.bf16.gmra.mxu0 %v1772
        %v1783 = vpop.f32.mrf.mxu0
        %v1784 = vadd.f32 0.0, %v1783
        %v1785 = vpop.f32.mrf.mxu0
        %1786 = vdwg.mxu0
        %s1787 = scalar_lea.vmem %s446, 36 [#allocation6]
        %v1788 = vld [vmem:[%s1787] sm:$0xf]
        %v1789 = vunpack.c.l.bf16 %v1788
        %v1790 = vadd.f32 %v1789, %v1763
        %s1791 = scalar_lea.vmem %s453, 8 [#allocation7]
        %v1792 = vld [vmem:[%s1791] sm:$0xf]
        %v1793 = vunpack.c.l.bf16 %v1792
        %v1794 = vadd.f32 %v1793, %v1784
        %v1795 = vmul.f32 %v1790, 0.5
        %v1796 = vtanh.pop %v1795
        %v1797 = vmul.f32 %v1796, 0.5
        %v1798 = vadd.f32 %v1797, 0.5
        %v1799 = vtanh.pop %v1790
        %v1800 = vmul.f32 %v1798, %v1718
        %1802 = vrot.lane.b32.xlu0 %v1799, 64
        %v1803 = vpop.permute.xlu0 %1802
        %v1805 = vmul.f32 %v1798, %v1803
        %1807 = vrot.lane.b32.xlu0 %v1805, 32
        %v1808 = vpop.permute.xlu0 %1807
        %v1810 = vadd.f32 %v1800, %v1808
        %v1811 = vtanh.pop %v1810
        %1813 = vrot.lane.b32.xlu0 %v1811, 64
        %v1814 = vpop.permute.xlu0 %1813
        %v1816 = vmul.f32 %v1798, %v1814
        %v1817 = vmul.f32 %v1794, 0.5
        %v1818 = vtanh.pop %v1817
        %v1819 = vmul.f32 %v1818, 0.5
        %v1820 = vadd.f32 %v1819, 0.5
        %v1821 = vtanh.pop %v1794
        %v1822 = vmul.f32 %v1820, %v1724
        %1824 = vrot.lane.b32.xlu0 %v1821, 64
        %v1825 = vpop.permute.xlu0 %1824
        %v1827 = vmul.f32 %v1820, %v1825
        %1829 = vrot.lane.b32.xlu0 %v1827, 32
        %v1830 = vpop.permute.xlu0 %1829
        %v1832 = vadd.f32 %v1822, %v1830
        %v1833 = vtanh.pop %v1832
        %1835 = vrot.lane.b32.xlu0 %v1833, 64
        %v1836 = vpop.permute.xlu0 %1835
        %v1838 = vmul.f32 %v1820, %v1836
        %v1839 = vstv %s1743
        %vm1840 = vcmp.lt.s32.totalorder %v1839, %v512
        %v1841 = vstv %s1744
        %vm1842 = vcmp.lt.s32.totalorder %v1841, %v512
        %v1843 = vpack.c.bf16 %v1816, %v1816
        %v1844 = vpack.c.bf16 %v1838, %v1838
        %v1845 = vsel %vm1840, 1, 0
        %1846 = vset.pattern.permute.xlu0 0
        %1847 = vperm.xlu0 %1846, %v1845
        %v1848 = vpop.permute.xlu0 %1847
        %vm1849 = vcmp.eq.s32.totalorder %v1848, 1
        %v1850 = vsel %vm1849, %v1810, %v1718
        %v1851 = vsel %vm1842, 1, 0
        %1852 = vset.pattern.permute.xlu0 0
        %1853 = vperm.xlu0 %1852, %v1851
        %v1854 = vpop.permute.xlu0 %1853
        %vm1855 = vcmp.eq.s32.totalorder %v1854, 1
        %v1856 = vsel %vm1855, %v1832, %v1724
        %vm1857 = vmpackc.low %vm1849, %vm1849
        %v1858 = vsel %vm1857, %v1843, %v1726
        %vm1859 = vmpackc.low %vm1855, %vm1855
        %v1860 = vsel %vm1859, %v1844, %v1728
        %v1861 = vsel %vm1857, %v1843, 0
        %1863 = vrot.lane.b32.xlu0 %v1861, 32
        %v1864 = vpop.permute.xlu0 %1863
        %s1866 = scalar_lea.vmem %s484, 36 [#allocation8]
        %1867 = vst.msk [vmem:[%s1866] sm:$0xf] %vm678, %v1864
        %v1868 = vsel %vm1859, %v1844, 0
        %1870 = vrot.lane.b32.xlu0 %v1868, 32
        %v1871 = vpop.permute.xlu0 %1870
        %s1873 = scalar_lea.vmem %s490, 8 [#allocation9]
        %1874 = vst.msk [vmem:[%s1873] sm:$0xf] %vm678, %v1871
        %s1875 = sadd.s32 %s521, 10
        %s1876 = ssub.s32 1, %s521
        %v1878 = vunpack.c.l.b16 %v1858
        %v1879 = vpack.c.b16 %v1878, %v1878
        %1880 = vrot.lane.b32.xlu0 %v1879, 32
        %v1881 = vpop.permute.xlu0 %1880
        %v1883 = vsel %vm539, %v1881, 0
        %1885 = vmatpush.bf16.msra.mxu0 0
        %1886 = vmatpush.bf16.msra.mxu0 0
        %1887 = vmatpush.bf16.msra.mxu0 0
        %1888 = vmatpush.bf16.msra.mxu0 0
        %1889 = vmatpush.bf16.msra.mxu0 0
        %1890 = vmatpush.bf16.msra.mxu0 0
        %1891 = vmatpush.bf16.msra.mxu0 %v536
        %1892 = vmatpush.bf16.msra.mxu0 %v535
        %1893 = vmatmul.bf16.gmra.mxu0 %v1883
        %v1894 = vpop.f32.mrf.mxu0
        %v1895 = vadd.f32 0.0, %v1894
        %v1896 = vpop.f32.mrf.mxu0
        %1897 = vdwg.mxu0
        %v1899 = vunpack.c.l.b16 %v1860
        %v1900 = vpack.c.b16 %v1899, %v1899
        %1901 = vrot.lane.b32.xlu0 %v1900, 32
        %v1902 = vpop.permute.xlu0 %1901
        %v1904 = vsel %vm539, %v1902, 0
        %1906 = vmatpush.bf16.msra.mxu0 0
        %1907 = vmatpush.bf16.msra.mxu0 0
        %1908 = vmatpush.bf16.msra.mxu0 0
        %1909 = vmatpush.bf16.msra.mxu0 0
        %1910 = vmatpush.bf16.msra.mxu0 0
        %1911 = vmatpush.bf16.msra.mxu0 0
        %1912 = vmatpush.bf16.msra.mxu0 %v565
        %1913 = vmatpush.bf16.msra.mxu0 %v564
        %1914 = vmatmul.bf16.gmra.mxu0 %v1904
        %v1915 = vpop.f32.mrf.mxu0
        %v1916 = vadd.f32 0.0, %v1915
        %v1917 = vpop.f32.mrf.mxu0
        %1918 = vdwg.mxu0
        %s1919 = scalar_lea.vmem %s446, 40 [#allocation6]
        %v1920 = vld [vmem:[%s1919] sm:$0xf]
        %v1921 = vunpack.c.l.bf16 %v1920
        %v1922 = vadd.f32 %v1921, %v1895
        %s1923 = scalar_lea.vmem %s453, 4 [#allocation7]
        %v1924 = vld [vmem:[%s1923] sm:$0xf]
        %v1925 = vunpack.c.l.bf16 %v1924
        %v1926 = vadd.f32 %v1925, %v1916
        %v1927 = vmul.f32 %v1922, 0.5
        %v1928 = vtanh.pop %v1927
        %v1929 = vmul.f32 %v1928, 0.5
        %v1930 = vadd.f32 %v1929, 0.5
        %v1931 = vtanh.pop %v1922
        %v1932 = vmul.f32 %v1930, %v1850
        %1934 = vrot.lane.b32.xlu0 %v1931, 64
        %v1935 = vpop.permute.xlu0 %1934
        %v1937 = vmul.f32 %v1930, %v1935
        %1939 = vrot.lane.b32.xlu0 %v1937, 32
        %v1940 = vpop.permute.xlu0 %1939
        %v1942 = vadd.f32 %v1932, %v1940
        %v1943 = vtanh.pop %v1942
        %1945 = vrot.lane.b32.xlu0 %v1943, 64
        %v1946 = vpop.permute.xlu0 %1945
        %v1948 = vmul.f32 %v1930, %v1946
        %v1949 = vmul.f32 %v1926, 0.5
        %v1950 = vtanh.pop %v1949
        %v1951 = vmul.f32 %v1950, 0.5
        %v1952 = vadd.f32 %v1951, 0.5
        %v1953 = vtanh.pop %v1926
        %v1954 = vmul.f32 %v1952, %v1856
        %1956 = vrot.lane.b32.xlu0 %v1953, 64
        %v1957 = vpop.permute.xlu0 %1956
        %v1959 = vmul.f32 %v1952, %v1957
        %1961 = vrot.lane.b32.xlu0 %v1959, 32
        %v1962 = vpop.permute.xlu0 %1961
        %v1964 = vadd.f32 %v1954, %v1962
        %v1965 = vtanh.pop %v1964
        %1967 = vrot.lane.b32.xlu0 %v1965, 64
        %v1968 = vpop.permute.xlu0 %1967
        %v1970 = vmul.f32 %v1952, %v1968
        %v1971 = vstv %s1875
        %vm1972 = vcmp.lt.s32.totalorder %v1971, %v512
        %v1973 = vstv %s1876
        %vm1974 = vcmp.lt.s32.totalorder %v1973, %v512
        %v1975 = vpack.c.bf16 %v1948, %v1948
        %v1976 = vpack.c.bf16 %v1970, %v1970
        %v1977 = vsel %vm1972, 1, 0
        %1978 = vset.pattern.permute.xlu0 0
        %1979 = vperm.xlu0 %1978, %v1977
        %v1980 = vpop.permute.xlu0 %1979
        %vm1981 = vcmp.eq.s32.totalorder %v1980, 1
        %v1982 = vsel %vm1981, %v1942, %v1850
        %v1983 = vsel %vm1974, 1, 0
        %1984 = vset.pattern.permute.xlu0 0
        %1985 = vperm.xlu0 %1984, %v1983
        %v1986 = vpop.permute.xlu0 %1985
        %vm1987 = vcmp.eq.s32.totalorder %v1986, 1
        %v1988 = vsel %vm1987, %v1964, %v1856
        %vm1989 = vmpackc.low %vm1981, %vm1981
        %v1990 = vsel %vm1989, %v1975, %v1858
        %vm1991 = vmpackc.low %vm1987, %vm1987
        %v1992 = vsel %vm1991, %v1976, %v1860
        %v1993 = vsel %vm1989, %v1975, 0
        %1995 = vrot.lane.b32.xlu0 %v1993, 32
        %v1996 = vpop.permute.xlu0 %1995
        %s1998 = scalar_lea.vmem %s484, 40 [#allocation8]
        %1999 = vst.msk [vmem:[%s1998] sm:$0xf] %vm678, %v1996
        %v2000 = vsel %vm1991, %v1976, 0
        %2002 = vrot.lane.b32.xlu0 %v2000, 32
        %v2003 = vpop.permute.xlu0 %2002
        %s2005 = scalar_lea.vmem %s490, 4 [#allocation9]
        %2006 = vst.msk [vmem:[%s2005] sm:$0xf] %vm678, %v2003
        %s2007 = sadd.s32 %s521, 11
        %s2008 = ssub.s32 0, %s521
        %v2010 = vunpack.c.l.b16 %v1990
        %v2011 = vpack.c.b16 %v2010, %v2010
        %2012 = vrot.lane.b32.xlu0 %v2011, 32
        %v2013 = vpop.permute.xlu0 %2012
        %v2015 = vsel %vm539, %v2013, 0
        %2017 = vmatpush.bf16.msra.mxu0 0
        %2018 = vmatpush.bf16.msra.mxu0 0
        %2019 = vmatpush.bf16.msra.mxu0 0
        %2020 = vmatpush.bf16.msra.mxu0 0
        %2021 = vmatpush.bf16.msra.mxu0 0
        %2022 = vmatpush.bf16.msra.mxu0 0
        %2023 = vmatpush.bf16.msra.mxu0 %v536
        %2024 = vmatpush.bf16.msra.mxu0 %v535
        %2025 = vmatmul.bf16.gmra.mxu0 %v2015
        %v2026 = vpop.f32.mrf.mxu0
        %v2027 = vadd.f32 0.0, %v2026
        %v2028 = vpop.f32.mrf.mxu0
        %2029 = vdwg.mxu0
        %v2031 = vunpack.c.l.b16 %v1992
        %v2032 = vpack.c.b16 %v2031, %v2031
        %2033 = vrot.lane.b32.xlu0 %v2032, 32
        %v2034 = vpop.permute.xlu0 %2033
        %v2036 = vsel %vm539, %v2034, 0
        %2038 = vmatpush.bf16.msra.mxu0 0
        %2039 = vmatpush.bf16.msra.mxu0 0
        %2040 = vmatpush.bf16.msra.mxu0 0
        %2041 = vmatpush.bf16.msra.mxu0 0
        %2042 = vmatpush.bf16.msra.mxu0 0
        %2043 = vmatpush.bf16.msra.mxu0 0
        %2044 = vmatpush.bf16.msra.mxu0 %v565
        %2045 = vmatpush.bf16.msra.mxu0 %v564
        %2046 = vmatmul.bf16.gmra.mxu0 %v2036
        %v2047 = vpop.f32.mrf.mxu0
        %v2048 = vadd.f32 0.0, %v2047
        %v2049 = vpop.f32.mrf.mxu0
        %2050 = vdwg.mxu0
        %s2051 = scalar_lea.vmem %s446, 44 [#allocation6]
        %v2052 = vld [vmem:[%s2051] sm:$0xf]
        %v2053 = vunpack.c.l.bf16 %v2052
        %v2054 = vadd.f32 %v2053, %v2027
        %v2055 = vld [vmem:[%s453] sm:$0xf]
        %v2056 = vunpack.c.l.bf16 %v2055
        %v2057 = vadd.f32 %v2056, %v2048
        %v2058 = vmul.f32 %v2054, 0.5
        %v2059 = vtanh.pop %v2058
        %v2060 = vmul.f32 %v2059, 0.5
        %v2061 = vadd.f32 %v2060, 0.5
        %v2062 = vtanh.pop %v2054
        %v2063 = vmul.f32 %v2061, %v1982
        %2065 = vrot.lane.b32.xlu0 %v2062, 64
        %v2066 = vpop.permute.xlu0 %2065
        %v2068 = vmul.f32 %v2061, %v2066
        %2070 = vrot.lane.b32.xlu0 %v2068, 32
        %v2071 = vpop.permute.xlu0 %2070
        %v2073 = vadd.f32 %v2063, %v2071
        %v2074 = vtanh.pop %v2073
        %2076 = vrot.lane.b32.xlu0 %v2074, 64
        %v2077 = vpop.permute.xlu0 %2076
        %v2079 = vmul.f32 %v2061, %v2077
        %v2080 = vmul.f32 %v2057, 0.5
        %v2081 = vtanh.pop %v2080
        %v2082 = vmul.f32 %v2081, 0.5
        %v2083 = vadd.f32 %v2082, 0.5
        %v2084 = vtanh.pop %v2057
        %v2085 = vmul.f32 %v2083, %v1988
        %2087 = vrot.lane.b32.xlu0 %v2084, 64
        %v2088 = vpop.permute.xlu0 %2087
        %v2090 = vmul.f32 %v2083, %v2088
        %2092 = vrot.lane.b32.xlu0 %v2090, 32
        %v2093 = vpop.permute.xlu0 %2092
        %v2095 = vadd.f32 %v2085, %v2093
        %v2096 = vtanh.pop %v2095
        %2098 = vrot.lane.b32.xlu0 %v2096, 64
        %v2099 = vpop.permute.xlu0 %2098
        %v2101 = vmul.f32 %v2083, %v2099
        %v2102 = vstv %s2007
        %vm2103 = vcmp.lt.s32.totalorder %v2102, %v512
        %v2104 = vstv %s2008
        %vm2105 = vcmp.lt.s32.totalorder %v2104, %v512
        %v2106 = vpack.c.bf16 %v2079, %v2079
        %v2107 = vpack.c.bf16 %v2101, %v2101
        %v2108 = vsel %vm2103, 1, 0
        %2109 = vset.pattern.permute.xlu0 0
        %2110 = vperm.xlu0 %2109, %v2108
        %v2111 = vpop.permute.xlu0 %2110
        %vm2112 = vcmp.eq.s32.totalorder %v2111, 1
        %v2113 = vsel %vm2112, %v2073, %v1982
        %v2114 = vsel %vm2105, 1, 0
        %2115 = vset.pattern.permute.xlu0 0
        %2116 = vperm.xlu0 %2115, %v2114
        %v2117 = vpop.permute.xlu0 %2116
        %vm2118 = vcmp.eq.s32.totalorder %v2117, 1
        %v2119 = vsel %vm2118, %v2095, %v1988
        %vm2120 = vmpackc.low %vm2112, %vm2112
        %v2121 = vsel %vm2120, %v2106, %v1990
        %vm2122 = vmpackc.low %vm2118, %vm2118
        %v2123 = vsel %vm2122, %v2107, %v1992
        %v2124 = vsel %vm2120, %v2106, 0
        %2126 = vrot.lane.b32.xlu0 %v2124, 32
        %v2127 = vpop.permute.xlu0 %2126
        %s2129 = scalar_lea.vmem %s484, 44 [#allocation8]
        %2130 = vst.msk [vmem:[%s2129] sm:$0xf] %vm678, %v2127
        %v2131 = vsel %vm2122, %v2107, 0
        %2133 = vrot.lane.b32.xlu0 %v2131, 32
        %v2134 = vpop.permute.xlu0 %2133
        %2136 = vst.msk [vmem:[%s490] sm:$0xf] %vm678, %v2134
        %2138 = vrot.lane.b32.xlu0 %v2121, 32
        %v2139 = vpop.permute.xlu0 %2138
        %2141 = vst.msk [vmem:[#allocation2] sm:$0xf] %vm678, %v2139
        %2143 = vrot.lane.b32.xlu0 %v2123, 32
        %v2144 = vpop.permute.xlu0 %2143
        %2146 = vst.msk [vmem:[#allocation3] sm:$0xf] %vm678, %v2144
        %2148 = vrot.lane.b32.xlu0 %v2113, 96
        %v2149 = vpop.permute.xlu0 %2148
        %2151 = vst.msk [vmem:[#allocation4] sm:$0xff] %vm539, %v2149
        %2153 = vrot.lane.b32.xlu0 %v2119, 96
        %v2154 = vpop.permute.xlu0 %2153
        %2156 = vst.msk [vmem:[#allocation5] sm:$0xff] %vm539, %v2154
        %s2157 = sand.u32 %s166, 1
        %s2158 = sand.u32 %s166, 1
        %s2159 = smul.addr %s2158, 48
        %s2160 = scalar_lea.vmem [#allocation8], %s2159
        %s2161 = sand.u32 %s196, 1
        %s2162 = sand.u32 %s196, 1
        %s2163 = smul.addr %s2162, 48
        %s2164 = scalar_lea.vmem [#allocation9], %s2163
        // Predicated region
        $region127: #{rnn_encoder_forward.2} parent=113 // pred_check
          %p2165 = pneg %p176
        $region128: #{rnn_encoder_forward.2} parent=113 // pred_check_branch
          %2167 = sbr.rel (%p2165) target = $region130
        $region129: #{rnn_encoder_forward.2} parent=113 // pred_region
          %s2168 = smul.u32 12, %s23
          %s2169 = smul.addr %s2168, 2
          %s2170 = sadd.s32 %s22, %s2169
          %s2171 = smul.addr %s2170, 4
          %s2172 = scalar_lea.vmem %s5, %s2171
          // Predicated region
          $region131: #{rnn_encoder_forward.2} parent=129 // pred_check
            _
          $region132: #{rnn_encoder_forward.2} parent=129 // pred_check_branch
            %2174 = sbr.rel (0) target = $region134
          $region133: #{rnn_encoder_forward.2} parent=129 // pred_region
            // Predicated region
            $region135: #{rnn_encoder_forward.2} parent=133 // pred_check
              _
            $region136: #{rnn_encoder_forward.2} parent=133 // pred_check_branch
              %2176 = sbr.rel target = $region138
            $region137: #{rnn_encoder_forward.2} parent=133 // pred_region
              // Predicated region
              $region150: #{rnn_encoder_forward.2} parent=137 // pred_check
                _
              $region151: #{rnn_encoder_forward.2} parent=137 // pred_check_branch
                %2214 = sbr.rel (0) target = $region153
              $region152: #{rnn_encoder_forward.2} parent=137 // pred_region
                loop: start=0, step=1, limit=1
                $region154: #{rnn_encoder_forward.2} parent=152 // loop_pre_header
                  _
                $region155: #{rnn_encoder_forward.2} parent=152 // loop_header
                  %s2216 = sphi 0, %s2220
                  %p2217 = scmp.ge.s32.totalorder %s2216, 1
                  %s2221 = sphi %s2160, %s2160
                  %s2222 = sphi %s2172, %s2172
                $region156: #{rnn_encoder_forward.2} parent=152 // loop_header_branch
                  %2219 = sbr.rel (%p2217) target = $region160
                $region157: #{rnn_encoder_forward.2} parent=152 // loop_body
                  _
                $region158: #{rnn_encoder_forward.2} parent=152 // loop_footer
                  %s2220 = sadd.s32 1, %s2216
                $region159: #{rnn_encoder_forward.2} parent=152 // loop_footer_branch
                  %2215 = sbr.rel target = $region155
                $region160: #{rnn_encoder_forward.2} parent=152 // loop_exit
                  _
                %s2224 = ssub.s32 16, 1
                loop: start=0, step=1, limit=1
                $region161: #{rnn_encoder_forward.2} parent=152 // loop_pre_header
                  _
                $region162: #{rnn_encoder_forward.2} parent=152 // loop_header
                  %s2226 = sphi 0, %s2230
                  %p2227 = scmp.ge.s32.totalorder %s2226, 1
                  %s2231 = sphi %s2160, %s2160
                  %s2232 = sphi %s2172, %s2172
                $region163: #{rnn_encoder_forward.2} parent=152 // loop_header_branch
                  %2229 = sbr.rel (%p2227) target = $region167
                $region164: #{rnn_encoder_forward.2} parent=152 // loop_body
                  %v2233 = vld [vmem:[%s2231] sm:%s2224]
                  %2234 = vst [vmem:[%s2232] sm:%s2224] %v2233
                  %v2235 = vld [vmem:[%s2231 + $0x4] sm:%s2224]
                  %2236 = vst [vmem:[%s2232 + $0x8] sm:%s2224] %v2235
                  %v2237 = vld [vmem:[%s2231 + $0x8] sm:%s2224]
                  %2238 = vst [vmem:[%s2232 + $0x10] sm:%s2224] %v2237
                  %v2239 = vld [vmem:[%s2231 + $0xc] sm:%s2224]
                  %2240 = vst [vmem:[%s2232 + $0x18] sm:%s2224] %v2239
                  %v2241 = vld [vmem:[%s2231 + $0x10] sm:%s2224]
                  %2242 = vst [vmem:[%s2232 + $0x20] sm:%s2224] %v2241
                  %v2243 = vld [vmem:[%s2231 + $0x14] sm:%s2224]
                  %2244 = vst [vmem:[%s2232 + $0x28] sm:%s2224] %v2243
                  %v2245 = vld [vmem:[%s2231 + $0x18] sm:%s2224]
                  %2246 = vst [vmem:[%s2232 + $0x30] sm:%s2224] %v2245
                  %v2247 = vld [vmem:[%s2231 + $0x1c] sm:%s2224]
                  %2248 = vst [vmem:[%s2232 + $0x38] sm:%s2224] %v2247
                  %v2249 = vld [vmem:[%s2231 + $0x20] sm:%s2224]
                  %2250 = vst [vmem:[%s2232 + $0x40] sm:%s2224] %v2249
                  %v2251 = vld [vmem:[%s2231 + $0x24] sm:%s2224]
                  %2252 = vst [vmem:[%s2232 + $0x48] sm:%s2224] %v2251
                  %v2253 = vld [vmem:[%s2231 + $0x28] sm:%s2224]
                  %2254 = vst [vmem:[%s2232 + $0x50] sm:%s2224] %v2253
                  %v2255 = vld [vmem:[%s2231 + $0x2c] sm:%s2224]
                  %2256 = vst [vmem:[%s2232 + $0x58] sm:%s2224] %v2255
                $region165: #{rnn_encoder_forward.2} parent=152 // loop_footer
                  %s2230 = sadd.s32 1, %s2226
                $region166: #{rnn_encoder_forward.2} parent=152 // loop_footer_branch
                  %2225 = sbr.rel target = $region162
                $region167: #{rnn_encoder_forward.2} parent=152 // loop_exit
                  _
              $region153: #{rnn_encoder_forward.2} parent=137 // pred_fallthru
                _
            $region138: #{rnn_encoder_forward.2} parent=133 // pred_fallthru
              _
            // Predicated region
            $region139: #{rnn_encoder_forward.2} parent=133 // pred_check
              _
            $region140: #{rnn_encoder_forward.2} parent=133 // pred_check_branch
              %2178 = sbr.rel (0) target = $region142
            $region141: #{rnn_encoder_forward.2} parent=133 // pred_region
              %s2180 = ssub.s32 16, 1
              loop: start=0, step=1, limit=1
              $region143: #{rnn_encoder_forward.2} parent=141 // loop_pre_header
                _
              $region144: #{rnn_encoder_forward.2} parent=141 // loop_header
                %s2182 = sphi 0, %s2186
                %p2183 = scmp.ge.s32.totalorder %s2182, 1
                %s2187 = sphi %s2160, %s2160
                %s2188 = sphi %s2172, %s2172
              $region145: #{rnn_encoder_forward.2} parent=141 // loop_header_branch
                %2185 = sbr.rel (%p2183) target = $region149
              $region146: #{rnn_encoder_forward.2} parent=141 // loop_body
                %v2189 = vld [vmem:[%s2187] sm:%s2180]
                %2190 = vst [vmem:[%s2188] sm:%s2180] %v2189
                %v2191 = vld [vmem:[%s2187 + $0x4] sm:%s2180]
                %2192 = vst [vmem:[%s2188 + $0x8] sm:%s2180] %v2191
                %v2193 = vld [vmem:[%s2187 + $0x8] sm:%s2180]
                %2194 = vst [vmem:[%s2188 + $0x10] sm:%s2180] %v2193
                %v2195 = vld [vmem:[%s2187 + $0xc] sm:%s2180]
                %2196 = vst [vmem:[%s2188 + $0x18] sm:%s2180] %v2195
                %v2197 = vld [vmem:[%s2187 + $0x10] sm:%s2180]
                %2198 = vst [vmem:[%s2188 + $0x20] sm:%s2180] %v2197
                %v2199 = vld [vmem:[%s2187 + $0x14] sm:%s2180]
                %2200 = vst [vmem:[%s2188 + $0x28] sm:%s2180] %v2199
                %v2201 = vld [vmem:[%s2187 + $0x18] sm:%s2180]
                %2202 = vst [vmem:[%s2188 + $0x30] sm:%s2180] %v2201
                %v2203 = vld [vmem:[%s2187 + $0x1c] sm:%s2180]
                %2204 = vst [vmem:[%s2188 + $0x38] sm:%s2180] %v2203
                %v2205 = vld [vmem:[%s2187 + $0x20] sm:%s2180]
                %2206 = vst [vmem:[%s2188 + $0x40] sm:%s2180] %v2205
                %v2207 = vld [vmem:[%s2187 + $0x24] sm:%s2180]
                %2208 = vst [vmem:[%s2188 + $0x48] sm:%s2180] %v2207
                %v2209 = vld [vmem:[%s2187 + $0x28] sm:%s2180]
                %2210 = vst [vmem:[%s2188 + $0x50] sm:%s2180] %v2209
                %v2211 = vld [vmem:[%s2187 + $0x2c] sm:%s2180]
                %2212 = vst [vmem:[%s2188 + $0x58] sm:%s2180] %v2211
              $region147: #{rnn_encoder_forward.2} parent=141 // loop_footer
                %s2186 = sadd.s32 1, %s2182
              $region148: #{rnn_encoder_forward.2} parent=141 // loop_footer_branch
                %2181 = sbr.rel target = $region144
              $region149: #{rnn_encoder_forward.2} parent=141 // loop_exit
                _
            $region142: #{rnn_encoder_forward.2} parent=133 // pred_fallthru
              _
          $region134: #{rnn_encoder_forward.2} parent=129 // pred_fallthru
            _
          %2257 = vnop
        $region130: #{rnn_encoder_forward.2} parent=113 // pred_fallthru
          _
        // Predicated region
        $region168: #{rnn_encoder_forward.2} parent=113 // pred_check
          %p2258 = pneg %p206
        $region169: #{rnn_encoder_forward.2} parent=113 // pred_check_branch
          %2260 = sbr.rel (%p2258) target = $region171
        $region170: #{rnn_encoder_forward.2} parent=113 // pred_region
          %s2261 = ssub.s32 0, %s23
          %s2262 = smul.u32 12, %s2261
          %s2263 = smul.addr %s2262, 2
          %s2264 = sadd.s32 %s22, %s2263
          %s2265 = smul.addr %s2264, 4
          %s2266 = scalar_lea.vmem %s6, %s2265
          // Predicated region
          $region172: #{rnn_encoder_forward.2} parent=170 // pred_check
            _
          $region173: #{rnn_encoder_forward.2} parent=170 // pred_check_branch
            %2268 = sbr.rel (0) target = $region175
          $region174: #{rnn_encoder_forward.2} parent=170 // pred_region
            // Predicated region
            $region176: #{rnn_encoder_forward.2} parent=174 // pred_check
              _
            $region177: #{rnn_encoder_forward.2} parent=174 // pred_check_branch
              %2270 = sbr.rel target = $region179
            $region178: #{rnn_encoder_forward.2} parent=174 // pred_region
              // Predicated region
              $region191: #{rnn_encoder_forward.2} parent=178 // pred_check
                _
              $region192: #{rnn_encoder_forward.2} parent=178 // pred_check_branch
                %2308 = sbr.rel (0) target = $region194
              $region193: #{rnn_encoder_forward.2} parent=178 // pred_region
                loop: start=0, step=1, limit=1
                $region195: #{rnn_encoder_forward.2} parent=193 // loop_pre_header
                  _
                $region196: #{rnn_encoder_forward.2} parent=193 // loop_header
                  %s2310 = sphi 0, %s2314
                  %p2311 = scmp.ge.s32.totalorder %s2310, 1
                  %s2315 = sphi %s2164, %s2164
                  %s2316 = sphi %s2266, %s2266
                $region197: #{rnn_encoder_forward.2} parent=193 // loop_header_branch
                  %2313 = sbr.rel (%p2311) target = $region201
                $region198: #{rnn_encoder_forward.2} parent=193 // loop_body
                  _
                $region199: #{rnn_encoder_forward.2} parent=193 // loop_footer
                  %s2314 = sadd.s32 1, %s2310
                $region200: #{rnn_encoder_forward.2} parent=193 // loop_footer_branch
                  %2309 = sbr.rel target = $region196
                $region201: #{rnn_encoder_forward.2} parent=193 // loop_exit
                  _
                %s2318 = ssub.s32 16, 1
                loop: start=0, step=1, limit=1
                $region202: #{rnn_encoder_forward.2} parent=193 // loop_pre_header
                  _
                $region203: #{rnn_encoder_forward.2} parent=193 // loop_header
                  %s2320 = sphi 0, %s2324
                  %p2321 = scmp.ge.s32.totalorder %s2320, 1
                  %s2325 = sphi %s2164, %s2164
                  %s2326 = sphi %s2266, %s2266
                $region204: #{rnn_encoder_forward.2} parent=193 // loop_header_branch
                  %2323 = sbr.rel (%p2321) target = $region208
                $region205: #{rnn_encoder_forward.2} parent=193 // loop_body
                  %v2327 = vld [vmem:[%s2325] sm:%s2318]
                  %2328 = vst [vmem:[%s2326] sm:%s2318] %v2327
                  %v2329 = vld [vmem:[%s2325 + $0x4] sm:%s2318]
                  %2330 = vst [vmem:[%s2326 + $0x8] sm:%s2318] %v2329
                  %v2331 = vld [vmem:[%s2325 + $0x8] sm:%s2318]
                  %2332 = vst [vmem:[%s2326 + $0x10] sm:%s2318] %v2331
                  %v2333 = vld [vmem:[%s2325 + $0xc] sm:%s2318]
                  %2334 = vst [vmem:[%s2326 + $0x18] sm:%s2318] %v2333
                  %v2335 = vld [vmem:[%s2325 + $0x10] sm:%s2318]
                  %2336 = vst [vmem:[%s2326 + $0x20] sm:%s2318] %v2335
                  %v2337 = vld [vmem:[%s2325 + $0x14] sm:%s2318]
                  %2338 = vst [vmem:[%s2326 + $0x28] sm:%s2318] %v2337
                  %v2339 = vld [vmem:[%s2325 + $0x18] sm:%s2318]
                  %2340 = vst [vmem:[%s2326 + $0x30] sm:%s2318] %v2339
                  %v2341 = vld [vmem:[%s2325 + $0x1c] sm:%s2318]
                  %2342 = vst [vmem:[%s2326 + $0x38] sm:%s2318] %v2341
                  %v2343 = vld [vmem:[%s2325 + $0x20] sm:%s2318]
                  %2344 = vst [vmem:[%s2326 + $0x40] sm:%s2318] %v2343
                  %v2345 = vld [vmem:[%s2325 + $0x24] sm:%s2318]
                  %2346 = vst [vmem:[%s2326 + $0x48] sm:%s2318] %v2345
                  %v2347 = vld [vmem:[%s2325 + $0x28] sm:%s2318]
                  %2348 = vst [vmem:[%s2326 + $0x50] sm:%s2318] %v2347
                  %v2349 = vld [vmem:[%s2325 + $0x2c] sm:%s2318]
                  %2350 = vst [vmem:[%s2326 + $0x58] sm:%s2318] %v2349
                $region206: #{rnn_encoder_forward.2} parent=193 // loop_footer
                  %s2324 = sadd.s32 1, %s2320
                $region207: #{rnn_encoder_forward.2} parent=193 // loop_footer_branch
                  %2319 = sbr.rel target = $region203
                $region208: #{rnn_encoder_forward.2} parent=193 // loop_exit
                  _
              $region194: #{rnn_encoder_forward.2} parent=178 // pred_fallthru
                _
            $region179: #{rnn_encoder_forward.2} parent=174 // pred_fallthru
              _
            // Predicated region
            $region180: #{rnn_encoder_forward.2} parent=174 // pred_check
              _
            $region181: #{rnn_encoder_forward.2} parent=174 // pred_check_branch
              %2272 = sbr.rel (0) target = $region183
            $region182: #{rnn_encoder_forward.2} parent=174 // pred_region
              %s2274 = ssub.s32 16, 1
              loop: start=0, step=1, limit=1
              $region184: #{rnn_encoder_forward.2} parent=182 // loop_pre_header
                _
              $region185: #{rnn_encoder_forward.2} parent=182 // loop_header
                %s2276 = sphi 0, %s2280
                %p2277 = scmp.ge.s32.totalorder %s2276, 1
                %s2281 = sphi %s2164, %s2164
                %s2282 = sphi %s2266, %s2266
              $region186: #{rnn_encoder_forward.2} parent=182 // loop_header_branch
                %2279 = sbr.rel (%p2277) target = $region190
              $region187: #{rnn_encoder_forward.2} parent=182 // loop_body
                %v2283 = vld [vmem:[%s2281] sm:%s2274]
                %2284 = vst [vmem:[%s2282] sm:%s2274] %v2283
                %v2285 = vld [vmem:[%s2281 + $0x4] sm:%s2274]
                %2286 = vst [vmem:[%s2282 + $0x8] sm:%s2274] %v2285
                %v2287 = vld [vmem:[%s2281 + $0x8] sm:%s2274]
                %2288 = vst [vmem:[%s2282 + $0x10] sm:%s2274] %v2287
                %v2289 = vld [vmem:[%s2281 + $0xc] sm:%s2274]
                %2290 = vst [vmem:[%s2282 + $0x18] sm:%s2274] %v2289
                %v2291 = vld [vmem:[%s2281 + $0x10] sm:%s2274]
                %2292 = vst [vmem:[%s2282 + $0x20] sm:%s2274] %v2291
                %v2293 = vld [vmem:[%s2281 + $0x14] sm:%s2274]
                %2294 = vst [vmem:[%s2282 + $0x28] sm:%s2274] %v2293
                %v2295 = vld [vmem:[%s2281 + $0x18] sm:%s2274]
                %2296 = vst [vmem:[%s2282 + $0x30] sm:%s2274] %v2295
                %v2297 = vld [vmem:[%s2281 + $0x1c] sm:%s2274]
                %2298 = vst [vmem:[%s2282 + $0x38] sm:%s2274] %v2297
                %v2299 = vld [vmem:[%s2281 + $0x20] sm:%s2274]
                %2300 = vst [vmem:[%s2282 + $0x40] sm:%s2274] %v2299
                %v2301 = vld [vmem:[%s2281 + $0x24] sm:%s2274]
                %2302 = vst [vmem:[%s2282 + $0x48] sm:%s2274] %v2301
                %v2303 = vld [vmem:[%s2281 + $0x28] sm:%s2274]
                %2304 = vst [vmem:[%s2282 + $0x50] sm:%s2274] %v2303
                %v2305 = vld [vmem:[%s2281 + $0x2c] sm:%s2274]
                %2306 = vst [vmem:[%s2282 + $0x58] sm:%s2274] %v2305
              $region188: #{rnn_encoder_forward.2} parent=182 // loop_footer
                %s2280 = sadd.s32 1, %s2276
              $region189: #{rnn_encoder_forward.2} parent=182 // loop_footer_branch
                %2275 = sbr.rel target = $region185
              $region190: #{rnn_encoder_forward.2} parent=182 // loop_exit
                _
            $region183: #{rnn_encoder_forward.2} parent=174 // pred_fallthru
              _
          $region175: #{rnn_encoder_forward.2} parent=170 // pred_fallthru
            _
          %2351 = vnop
        $region171: #{rnn_encoder_forward.2} parent=113 // pred_fallthru
          _
      $region114: #{rnn_encoder_forward.2} parent=5 // pred_fallthru
        _
      %p2352 = scmp.le.s32.totalorder 2, %s13
      // Predicated region
      $region209: #{rnn_encoder_forward.2} parent=5 // pred_check
        %p2353 = pneg %p2352
      $region210: #{rnn_encoder_forward.2} parent=5 // pred_check_branch
        %2355 = sbr.rel (%p2353) target = $region212
      $region211: #{rnn_encoder_forward.2} parent=5 // pred_region
        %s2356 = ssub.s32 %s13, 2
        // Predicated region
        $region213: #{rnn_encoder_forward.2} parent=211 // pred_check
          %p2357 = pneg %p182
        $region214: #{rnn_encoder_forward.2} parent=211 // pred_check_branch
          %2359 = sbr.rel (%p2357) target = $region216
        $region215: #{rnn_encoder_forward.2} parent=211 // pred_region
          %s2360 = sand.u32 %s167, 1
          %s2361 = sand.u32 %s167, 1
          %s2362 = smul.addr %s2361, 48
          %s2363 = scalar_lea.vmem [#allocation8], %s2362
        $region216: #{rnn_encoder_forward.2} parent=211 // pred_fallthru
          _
        // Predicated region
        $region217: #{rnn_encoder_forward.2} parent=211 // pred_check
          %p2364 = pneg %p212
        $region218: #{rnn_encoder_forward.2} parent=211 // pred_check_branch
          %2366 = sbr.rel (%p2364) target = $region220
        $region219: #{rnn_encoder_forward.2} parent=211 // pred_region
          %s2367 = sand.u32 %s197, 1
          %s2368 = sand.u32 %s197, 1
          %s2369 = smul.addr %s2368, 48
          %s2370 = scalar_lea.vmem [#allocation9], %s2369
        $region220: #{rnn_encoder_forward.2} parent=211 // pred_fallthru
          _
      $region212: #{rnn_encoder_forward.2} parent=5 // pred_fallthru
        _
    $region6: #{rnn_encoder_forward.2} parent=1 // loop_footer
      %s17 = sadd.s32 1, %s13
    $region7: #{rnn_encoder_forward.2} parent=1 // loop_footer_branch
      %12 = sbr.rel target = $region3
    $region8: #{rnn_encoder_forward.2} parent=1 // loop_exit
      _

</llo_original>
